<compile_context>
chip_gen: v5e
topology: v5e:2x2
jax: 0.10.0
libtpu: 0.0.40
codegen_flags: <defaults>
</compile_context>

<pallas_src>
import jax
import jax.numpy as jnp
from jax.experimental import pallas as pl
from jax.experimental.pallas import tpu as pltpu


N_EMBED = 384
HIDDEN = 4 * N_EMBED  # 1536
H_CHUNK = 512         # hidden-dim chunk (multiple of 256 -> full MXU passes)


def _round_up(x, m):
    return (x + m - 1) // m * m


def _ffn_kernel(x_ref, w1_ref, b1_ref, w2_ref, b2_ref, o_ref):
    # x_ref : (tm, C)   f32   VMEM (row tile; last block may be partial/masked)
    # w1_ref: (C, 4C)   bf16  VMEM (resident, constant block index)
    # b1_ref: (1, 4C)   f32   VMEM (resident)
    # w2_ref: (4C, C)   bf16  VMEM (resident)
    # b2_ref: (1, C)    f32   VMEM (resident)
    # o_ref : (tm, C)   f32   VMEM
    tm = x_ref.shape[0]
    H = w1_ref.shape[1]
    C = w2_ref.shape[1]

    # In-kernel f32 -> bf16 cast of the activation tile (VPU, hidden under MXU).
    x = x_ref[...].astype(jnp.bfloat16)

    # Hidden-dim chunking: 3 statically-unrolled 512-wide chunks for H=1536.
    # Static slice offsets (128-aligned) are zero-cost ref views; with a fully
    # static trip count this is equivalent to lax.fori_loop(..., unroll=True).
    acc = jnp.zeros((tm, C), jnp.float32)
    for c0 in range(0, H, H_CHUNK):
        sz = min(H_CHUNK, H - c0)
        h = jnp.dot(x, w1_ref[:, c0:c0 + sz],
                    preferred_element_type=jnp.float32)
        # Fused bias + ReLU + downcast: the f32 chunk is read exactly once.
        h = jnp.maximum(h + b1_ref[:, c0:c0 + sz], 0.0).astype(jnp.bfloat16)
        acc = acc + jnp.dot(h, w2_ref[c0:c0 + sz, :],
                            preferred_element_type=jnp.float32)

    o_ref[...] = (acc + b2_ref[...]).astype(o_ref.dtype)


def _pick_row_tile(M, tm):
    # Cap the tile at the request, keep 8-row (sublane) alignment, and make
    # sure the grid has >= 2 steps whenever M allows so v7x's two TensorCores
    # both get work from the "parallel" row axis.
    half = _round_up(max(1, -(-M // 2)), 8)
    return max(8, min(tm, half))


def _ffn_pallas_call(x2d, w1_bf16, b1, w2_bf16, b2, *, tm, out_dtype):
    M, C = x2d.shape
    H = w1_bf16.shape[1]
    grid = (pl.cdiv(M, tm),)  # ragged last block handled by Pallas masking

    cost = pl.CostEstimate(
        flops=4 * M * C * H,  # two (M x C x H)-sized matmuls, 2 flops/MAC
        transcendentals=0,
        bytes_accessed=(x2d.size * 4 + w1_bf16.size * 2 + w2_bf16.size * 2
                        + b1.size * 4 + b2.size * 4
                        + M * C * jnp.dtype(out_dtype).itemsize),
    )

    return pl.pallas_call(
        _ffn_kernel,
        out_shape=jax.ShapeDtypeStruct((M, C), out_dtype),
        grid_spec=pltpu.PrefetchScalarGridSpec(
            num_scalar_prefetch=0,
            grid=grid,
            in_specs=[
                pl.BlockSpec((tm, C), lambda i: (i, 0)),   # x row tile (f32)
                pl.BlockSpec((C, H), lambda i: (0, 0)),    # W1 (resident)
                pl.BlockSpec((1, H), lambda i: (0, 0)),    # b1 (resident)
                pl.BlockSpec((H, C), lambda i: (0, 0)),    # W2 (resident)
                pl.BlockSpec((1, C), lambda i: (0, 0)),    # b2 (resident)
            ],
            out_specs=pl.BlockSpec((tm, C), lambda i: (i, 0)),
        ),
        compiler_params=pltpu.CompilerParams(
            dimension_semantics=("parallel",),
            vmem_limit_bytes=32 * 1024 * 1024,
        ),
        cost_estimate=cost,
    )(x2d, w1_bf16, b1, w2_bf16, b2)


def feed_forward(x, w1, b1, w2, b2, *, tm=512, out_dtype=None):
    """x: (B, T, C) float32.  Returns (B, T, C) in out_dtype (default x.dtype).

    Eval-mode dropout (identity).  Matmuls run in bf16 on the MXU with f32
    accumulation; bias/ReLU are computed in f32.
    """
    B, T, C = x.shape
    M = B * T
    out_dtype = x.dtype if out_dtype is None else out_dtype

    x2d = x.reshape(M, C)                    # f32; cast happens in-kernel
    w1_bf16 = w1.astype(jnp.bfloat16)        # weights: one-time wrapper cast
    w2_bf16 = w2.astype(jnp.bfloat16)
    b1_f32 = b1.astype(jnp.float32).reshape(1, -1)
    b2_f32 = b2.astype(jnp.float32).reshape(1, -1)

    tm_eff = _pick_row_tile(M, tm)
    out2d = _ffn_pallas_call(x2d, w1_bf16, b1_f32, w2_bf16, b2_f32,
                             tm=tm_eff, out_dtype=out_dtype)
    return out2d.reshape(B, T, C)


def init_params(key, n_embed=N_EMBED):
    """Deterministic init mimicking nn.Linear's U(-1/sqrt(fan_in), 1/sqrt(fan_in))."""
    h = 4 * n_embed
    k1, k2, k3, k4 = jax.random.split(key, 4)
    bound1 = 1.0 / jnp.sqrt(jnp.float32(n_embed))
    bound2 = 1.0 / jnp.sqrt(jnp.float32(h))
    # Stored as (in, out) so the kernel computes x @ W + b.
    w1 = jax.random.uniform(k1, (n_embed, h), jnp.float32, -bound1, bound1)
    b1 = jax.random.uniform(k2, (1, h), jnp.float32, -bound1, bound1)
    w2 = jax.random.uniform(k3, (h, n_embed), jnp.float32, -bound2, bound2)
    b2 = jax.random.uniform(k4, (1, n_embed), jnp.float32, -bound2, bound2)
    return w1, b1, w2, b2


if __name__ == "__main__":
    key = jax.random.PRNGKey(0)
    k_x, k_p = jax.random.split(key)

    B, T, C = 2, 8, N_EMBED
    x = jax.random.normal(k_x, (B, T, C), jnp.float32)
    w1, b1, w2, b2 = init_params(k_p, C)

    out = jax.block_until_ready(feed_forward(x, w1, b1, w2, b2))
    assert out.shape == (B, T, C)
    assert out.dtype == jnp.float32

    # Reference matching the kernel's arithmetic (bf16 matmuls, f32 accumulate,
    # f32 bias/ReLU); eval-mode dropout == identity.
    xb = x.reshape(-1, C).astype(jnp.bfloat16)
    h_ref = jnp.maximum(
        jnp.dot(xb, w1.astype(jnp.bfloat16),
                preferred_element_type=jnp.float32) + b1, 0.0)
    ref = jnp.dot(h_ref.astype(jnp.bfloat16), w2.astype(jnp.bfloat16),
                  preferred_element_type=jnp.float32) + b2
    ref = ref.reshape(B, T, C)
    assert jnp.allclose(out, ref, atol=1e-2, rtol=1e-2), (
        float(jnp.max(jnp.abs(out - ref))))

    # Full-f32 reference: looser tolerance for the bf16 MXU path.
    ref32 = (jnp.maximum(x.reshape(-1, C) @ w1 + b1, 0.0) @ w2 + b2
             ).reshape(B, T, C)
    assert jnp.allclose(out, ref32, atol=5e-2, rtol=5e-2), (
        float(jnp.max(jnp.abs(out - ref32))))

    # Ragged-M path (M = 300 is not a multiple of the row tile): exercises the
    # partial-last-block masking with no wrapper pad/slice.
    B2, T2 = 3, 100
    x2 = jax.random.normal(k_x, (B2, T2, C), jnp.float32)
    out2 = jax.block_until_ready(feed_forward(x2, w1, b1, w2, b2))
    ref2 = (jnp.maximum(x2.reshape(-1, C) @ w1 + b1, 0.0) @ w2 + b2
            ).reshape(B2, T2, C)
    assert out2.shape == (B2, T2, C)
    assert jnp.allclose(out2, ref2, atol=5e-2, rtol=5e-2), (
        float(jnp.max(jnp.abs(out2 - ref2))))

    print("KERNEL_OK")
</pallas_src>

<mosaic_0001>
module attributes {stable_mosaic.version = 11 : i64} {
  func.func @_ffn_kernel(%arg0: i32, %arg1: memref<8x384xf32, #tpu.memory_space<vmem>>, %arg2: memref<384x1536xbf16, #tpu.memory_space<vmem>>, %arg3: memref<1x1536xf32, #tpu.memory_space<vmem>>, %arg4: memref<1536x384xbf16, #tpu.memory_space<vmem>>, %arg5: memref<1x384xf32, #tpu.memory_space<vmem>>, %arg6: memref<8x384xf32, #tpu.memory_space<vmem>>) attributes {dimension_semantics = [#tpu.dimension_semantics<parallel>], iteration_bounds = array<i64: 2>, scalar_prefetch = 0 : i64, scratch_operands = 0 : i64, tpu.core_type = #tpu.core_type<tc>, window_params = [{transform_indices = @transform_0, window_bounds = array<i64: 8, 384>}, {pipeline_mode = #tpu.pipeline_mode<synchronous>, transform_indices = @transform_1, window_bounds = array<i64: 384, 1536>}, {pipeline_mode = #tpu.pipeline_mode<synchronous>, transform_indices = @transform_2, window_bounds = array<i64: 1, 1536>}, {pipeline_mode = #tpu.pipeline_mode<synchronous>, transform_indices = @transform_3, window_bounds = array<i64: 1536, 384>}, {pipeline_mode = #tpu.pipeline_mode<synchronous>, transform_indices = @transform_4, window_bounds = array<i64: 1, 384>}, {transform_indices = @transform_5, window_bounds = array<i64: 8, 384>}]} {
    %c0 = arith.constant 0 : index
    %c0_0 = arith.constant 0 : index
    %0 = vector.load %arg1[%c0, %c0_0] : memref<8x384xf32, #tpu.memory_space<vmem>>, vector<8x384xf32>
    %1 = arith.truncf %0 : vector<8x384xf32> to vector<8x384xbf16>
    %cst = arith.constant 0.000000e+00 : f32
    %2 = vector.broadcast %cst : f32 to vector<8x384xf32>
    %c0_1 = arith.constant 0 : index
    %c0_2 = arith.constant 0 : index
    %3 = vector.load %arg2[%c0_1, %c0_2] : memref<384x1536xbf16, #tpu.memory_space<vmem>>, vector<384x512xbf16>
    %cst_3 = arith.constant dense<0.000000e+00> : vector<8x512xf32>
    %4 = tpu.matmul %1, %3, %cst_3 {dimension_numbers = #tpu.dot_dimension_numbers<[1], [0], [0], [1], [0, 0, 1, 1], [], []>} : vector<8x384xbf16>, vector<384x512xbf16>, vector<8x512xf32> -> vector<8x512xf32>
    %c0_4 = arith.constant 0 : index
    %c0_5 = arith.constant 0 : index
    %5 = vector.load %arg3[%c0_4, %c0_5] : memref<1x1536xf32, #tpu.memory_space<vmem>>, vector<1x512xf32>
    %6 = vector.broadcast %5 : vector<1x512xf32> to vector<8x512xf32>
    %7 = arith.addf %4, %6 : vector<8x512xf32>
    %cst_6 = arith.constant 0.000000e+00 : f32
    %8 = vector.broadcast %cst_6 : f32 to vector<8x512xf32>
    %9 = arith.maximumf %7, %8 : vector<8x512xf32>
    %10 = arith.truncf %9 : vector<8x512xf32> to vector<8x512xbf16>
    %c0_7 = arith.constant 0 : index
    %c0_8 = arith.constant 0 : index
    %11 = vector.load %arg4[%c0_7, %c0_8] : memref<1536x384xbf16, #tpu.memory_space<vmem>>, vector<512x384xbf16>
    %cst_9 = arith.constant dense<0.000000e+00> : vector<8x384xf32>
    %12 = tpu.matmul %10, %11, %cst_9 {dimension_numbers = #tpu.dot_dimension_numbers<[1], [0], [0], [1], [0, 0, 1, 1], [], []>} : vector<8x512xbf16>, vector<512x384xbf16>, vector<8x384xf32> -> vector<8x384xf32>
    %13 = arith.addf %2, %12 : vector<8x384xf32>
    %c0_10 = arith.constant 0 : index
    %c512 = arith.constant 512 : index
    %14 = vector.load %arg2[%c0_10, %c512] : memref<384x1536xbf16, #tpu.memory_space<vmem>>, vector<384x512xbf16>
    %cst_11 = arith.constant dense<0.000000e+00> : vector<8x512xf32>
    %15 = tpu.matmul %1, %14, %cst_11 {dimension_numbers = #tpu.dot_dimension_numbers<[1], [0], [0], [1], [0, 0, 1, 1], [], []>} : vector<8x384xbf16>, vector<384x512xbf16>, vector<8x512xf32> -> vector<8x512xf32>
    %c0_12 = arith.constant 0 : index
    %c512_13 = arith.constant 512 : index
    %16 = vector.load %arg3[%c0_12, %c512_13] : memref<1x1536xf32, #tpu.memory_space<vmem>>, vector<1x512xf32>
    %17 = vector.broadcast %16 : vector<1x512xf32> to vector<8x512xf32>
    %18 = arith.addf %15, %17 : vector<8x512xf32>
    %cst_14 = arith.constant 0.000000e+00 : f32
    %19 = vector.broadcast %cst_14 : f32 to vector<8x512xf32>
    %20 = arith.maximumf %18, %19 : vector<8x512xf32>
    %21 = arith.truncf %20 : vector<8x512xf32> to vector<8x512xbf16>
    %c512_15 = arith.constant 512 : index
    %c0_16 = arith.constant 0 : index
    %22 = vector.load %arg4[%c512_15, %c0_16] : memref<1536x384xbf16, #tpu.memory_space<vmem>>, vector<512x384xbf16>
    %cst_17 = arith.constant dense<0.000000e+00> : vector<8x384xf32>
    %23 = tpu.matmul %21, %22, %cst_17 {dimension_numbers = #tpu.dot_dimension_numbers<[1], [0], [0], [1], [0, 0, 1, 1], [], []>} : vector<8x512xbf16>, vector<512x384xbf16>, vector<8x384xf32> -> vector<8x384xf32>
    %24 = arith.addf %13, %23 : vector<8x384xf32>
    %c0_18 = arith.constant 0 : index
    %c1024 = arith.constant 1024 : index
    %25 = vector.load %arg2[%c0_18, %c1024] : memref<384x1536xbf16, #tpu.memory_space<vmem>>, vector<384x512xbf16>
    %cst_19 = arith.constant dense<0.000000e+00> : vector<8x512xf32>
    %26 = tpu.matmul %1, %25, %cst_19 {dimension_numbers = #tpu.dot_dimension_numbers<[1], [0], [0], [1], [0, 0, 1, 1], [], []>} : vector<8x384xbf16>, vector<384x512xbf16>, vector<8x512xf32> -> vector<8x512xf32>
    %c0_20 = arith.constant 0 : index
    %c1024_21 = arith.constant 1024 : index
    %27 = vector.load %arg3[%c0_20, %c1024_21] : memref<1x1536xf32, #tpu.memory_space<vmem>>, vector<1x512xf32>
    %28 = vector.broadcast %27 : vector<1x512xf32> to vector<8x512xf32>
    %29 = arith.addf %26, %28 : vector<8x512xf32>
    %cst_22 = arith.constant 0.000000e+00 : f32
    %30 = vector.broadcast %cst_22 : f32 to vector<8x512xf32>
    %31 = arith.maximumf %29, %30 : vector<8x512xf32>
    %32 = arith.truncf %31 : vector<8x512xf32> to vector<8x512xbf16>
    %c1024_23 = arith.constant 1024 : index
    %c0_24 = arith.constant 0 : index
    %33 = vector.load %arg4[%c1024_23, %c0_24] : memref<1536x384xbf16, #tpu.memory_space<vmem>>, vector<512x384xbf16>
    %cst_25 = arith.constant dense<0.000000e+00> : vector<8x384xf32>
    %34 = tpu.matmul %32, %33, %cst_25 {dimension_numbers = #tpu.dot_dimension_numbers<[1], [0], [0], [1], [0, 0, 1, 1], [], []>} : vector<8x512xbf16>, vector<512x384xbf16>, vector<8x384xf32> -> vector<8x384xf32>
    %35 = arith.addf %24, %34 : vector<8x384xf32>
    %c0_26 = arith.constant 0 : index
    %c0_27 = arith.constant 0 : index
    %36 = vector.load %arg5[%c0_26, %c0_27] : memref<1x384xf32, #tpu.memory_space<vmem>>, vector<1x384xf32>
    %37 = vector.broadcast %36 : vector<1x384xf32> to vector<8x384xf32>
    %38 = arith.addf %35, %37 : vector<8x384xf32>
    %c0_28 = arith.constant 0 : index
    %c0_29 = arith.constant 0 : index
    %39 = vector.load %arg6[%c0_28, %c0_29] : memref<8x384xf32, #tpu.memory_space<vmem>>, vector<8x384xf32>
    tpu.vector_store %arg6[%c0_28, %c0_29], %38 {strides = array<i32>} : memref<8x384xf32, #tpu.memory_space<vmem>>, vector<8x384xf32>,
    return
  }
  func.func @transform_0(%arg0: i32) -> (i32, i32) {
    %c0_i32 = arith.constant 0 : i32
    %c0_i32_0 = arith.constant 0 : i32
    return %arg0, %c0_i32 : i32, i32
  }
  func.func @transform_1(%arg0: i32) -> (i32, i32) {
    %c0_i32 = arith.constant 0 : i32
    %c0_i32_0 = arith.constant 0 : i32
    %c0_i32_1 = arith.constant 0 : i32
    return %c0_i32, %c0_i32_0 : i32, i32
  }
  func.func @transform_2(%arg0: i32) -> (i32, i32) {
    %c0_i32 = arith.constant 0 : i32
    %c0_i32_0 = arith.constant 0 : i32
    %c0_i32_1 = arith.constant 0 : i32
    return %c0_i32, %c0_i32_0 : i32, i32
  }
  func.func @transform_3(%arg0: i32) -> (i32, i32) {
    %c0_i32 = arith.constant 0 : i32
    %c0_i32_0 = arith.constant 0 : i32
    %c0_i32_1 = arith.constant 0 : i32
    return %c0_i32, %c0_i32_0 : i32, i32
  }
  func.func @transform_4(%arg0: i32) -> (i32, i32) {
    %c0_i32 = arith.constant 0 : i32
    %c0_i32_0 = arith.constant 0 : i32
    %c0_i32_1 = arith.constant 0 : i32
    return %c0_i32, %c0_i32_0 : i32, i32
  }
  func.func @transform_5(%arg0: i32) -> (i32, i32) {
    %c0_i32 = arith.constant 0 : i32
    %c0_i32_0 = arith.constant 0 : i32
    return %arg0, %c0_i32 : i32, i32
  }
}

</mosaic_0001>

<llo_original>
// kernel: tpu_custom_call.1
$region0: #{tpu_custom_call.1}
  #allocation0 [shape = 'u32[]', space=smem, size = 0x4, offset = 0x4, fixed_abs, tag = 'smem constant byte address 0x4 - core index']
  #allocation1 [shape = 'u32[72,128]{1,0:T(1,128)}', space=vmem, size = 0x9000, scoped, tag = 'internal scratch']
  %s0 = inlined_call_operand.hbm [shape: f32[16,384], index: 0, kind: input, shape index: {}]
  %s1 = inlined_call_operand.hbm [shape: bf16[384,1536], index: 1, kind: input, shape index: {}]
  %s2 = inlined_call_operand.hbm [shape: f32[1,1536], index: 2, kind: input, shape index: {}]
  %s3 = inlined_call_operand.hbm [shape: bf16[1536,384], index: 3, kind: input, shape index: {}]
  %s4 = inlined_call_operand.hbm [shape: f32[1,384], index: 4, kind: input, shape index: {}]
  %s5 = inlined_call_operand.hbm [shape: f32[16,384], index: 5, kind: output, shape index: {}]
  %s6 = sld [smem:[#allocation0]]
  $region73: #{tpu_custom_call.1} parent=0
    _
  %s8 = ssub.s32 1, %s6
  %s9 = scalar_select 0, %s8, %s6
  $region1: #{tpu_custom_call.1} parent=0
    #allocation2 [shape = 'u8[24576]{0}', space=vmem, size = 0x6000, scoped, tag = 'input window, operand 0']
    #allocation3 [shape = 's32[2]{0}', space=sflag, size = 0x8, scoped, tag = 'scoped memory for tpu_custom_call.1']
    #allocation4 [shape = 's32[2]{0}', space=sflag, size = 0x8, scoped, tag = 'scoped memory for tpu_custom_call.1']
    #allocation5 [shape = 'u8[1179648]{0}', space=vmem, size = 0x120000, scoped, tag = 'input window, operand 1, single buffered']
    #allocation6 [shape = 's32[1]{0}', space=sflag, size = 0x4, scoped, tag = 'scoped memory for tpu_custom_call.1']
    #allocation7 [shape = 'u8[6144]{0}', space=vmem, size = 0x1800, scoped, tag = 'input window, operand 2, single buffered']
    #allocation8 [shape = 'u8[1179648]{0}', space=vmem, size = 0x120000, scoped, tag = 'input window, operand 3, single buffered']
    #allocation9 [shape = 's32[1]{0}', space=sflag, size = 0x4, scoped, tag = 'scoped memory for tpu_custom_call.1']
    #allocation10 [shape = 'u8[1536]{0}', space=vmem, size = 0x800, scoped, tag = 'input window, operand 4, single buffered']
    #allocation11 [shape = 'u8[24576]{0}', space=vmem, size = 0x6000, scoped, tag = 'output window, operand 0']
    %10 = vsyncpa [#allocation3], 0
    %s11 = scalar_lea.sflag [#allocation3], 1
    %12 = vsyncpa %s11, 0
    %13 = vsyncpa [#allocation6], 0
    %14 = vsyncpa [#allocation9], 0
    %15 = vsyncpa [#allocation4], 0
    %s16 = scalar_lea.sflag [#allocation4], 1
    %17 = vsyncpa %s16, 0
    loop: start=0, step=1, limit=4
    $region2: #{tpu_custom_call.1} parent=1 // loop_pre_header
      _
    $region3: #{tpu_custom_call.1} parent=1 // loop_header
      %s19 = sphi 0, %s23
      %p20 = scmp.ge.s32.totalorder %s19, 4
      %s29 = sphi 0, %s31
      %s32 = sphi 0, %s29
      %s33 = sphi 0, %s32
      %s49 = sphi 0, %s33
      %s53 = sphi 0, %s53
      %s55 = sphi 0, %s53
      %s56 = sphi 0, %s55
      %s70 = sphi 0, %s56
      %s74 = sphi 0, %s74
      %s76 = sphi 0, %s74
      %s77 = sphi 0, %s76
      %s91 = sphi 0, %s77
      %s95 = sphi 0, %s95
      %s97 = sphi 0, %s95
      %s98 = sphi 0, %s97
      %s112 = sphi 0, %s98
      %s116 = sphi 0, %s116
      %s118 = sphi 0, %s116
      %s119 = sphi 0, %s118
      %s133 = sphi 0, %s119
      %s139 = sphi 0, %s141
      %s142 = sphi 0, %s139
      %s143 = sphi 0, %s142
      %s159 = sphi 0, %s143
    $region4: #{tpu_custom_call.1} parent=1 // loop_header_branch
      %22 = sbr.rel (%p20) target = $region8
    $region5: #{tpu_custom_call.1} parent=1 // loop_body
      %s24 = ssub.s32 %s19, 1
      %s25 = ssub.s32 %s19, 2
      %s26 = sadd.s32 %s19, 1
      %s27 = ssub.s32 %s19, %s26
      %p28 = scmp.eq.s32.totalorder %s27, 0
      %s30 = sadd.s32 %s29, 1
      %s31 = scalar_select %p28, %s29, %s30
      %p34 = pneg %p28
      %p35 = scmp.eq.s32.totalorder %s19, 1
      %p36 = por %p34, %p35
      %p37 = scmp.ne.s32.totalorder %s29, %s32
      %p38 = scmp.eq.s32.totalorder %s19, 0
      %p39 = por %p37, %p38
      %p40 = scmp.ne.s32.totalorder %s29, %s32
      %p41 = scmp.eq.s32.totalorder %s24, 1
      %p42 = por %p40, %p41
      %p43 = scmp.ne.s32.totalorder %s32, %s33
      %p44 = scmp.eq.s32.totalorder %s24, 0
      %p45 = por %p43, %p44
      %p46 = scmp.ne.s32.totalorder %s32, %s33
      %p47 = scmp.eq.s32.totalorder %s25, 1
      %p48 = por %p46, %p47
      %p50 = scmp.ne.s32.totalorder %s33, %s49
      %p51 = scmp.eq.s32.totalorder %s25, 0
      %p52 = por %p50, %p51
      %s54 = sadd.s32 %s53, 1
      %p57 = scmp.eq.s32.totalorder %s19, 1
      %p58 = scmp.ne.s32.totalorder %s53, %s55
      %p59 = scmp.eq.s32.totalorder %s19, 0
      %p60 = por %p58, %p59
      %p61 = scmp.ne.s32.totalorder %s53, %s55
      %p62 = scmp.eq.s32.totalorder %s24, 1
      %p63 = por %p61, %p62
      %p64 = scmp.ne.s32.totalorder %s55, %s56
      %p65 = scmp.eq.s32.totalorder %s24, 0
      %p66 = por %p64, %p65
      %p67 = scmp.ne.s32.totalorder %s55, %s56
      %p68 = scmp.eq.s32.totalorder %s25, 1
      %p69 = por %p67, %p68
      %p71 = scmp.ne.s32.totalorder %s56, %s70
      %p72 = scmp.eq.s32.totalorder %s25, 0
      %p73 = por %p71, %p72
      %s75 = sadd.s32 %s74, 1
      %p78 = scmp.eq.s32.totalorder %s19, 1
      %p79 = scmp.ne.s32.totalorder %s74, %s76
      %p80 = scmp.eq.s32.totalorder %s19, 0
      %p81 = por %p79, %p80
      %p82 = scmp.ne.s32.totalorder %s74, %s76
      %p83 = scmp.eq.s32.totalorder %s24, 1
      %p84 = por %p82, %p83
      %p85 = scmp.ne.s32.totalorder %s76, %s77
      %p86 = scmp.eq.s32.totalorder %s24, 0
      %p87 = por %p85, %p86
      %p88 = scmp.ne.s32.totalorder %s76, %s77
      %p89 = scmp.eq.s32.totalorder %s25, 1
      %p90 = por %p88, %p89
      %p92 = scmp.ne.s32.totalorder %s77, %s91
      %p93 = scmp.eq.s32.totalorder %s25, 0
      %p94 = por %p92, %p93
      %s96 = sadd.s32 %s95, 1
      %p99 = scmp.eq.s32.totalorder %s19, 1
      %p100 = scmp.ne.s32.totalorder %s95, %s97
      %p101 = scmp.eq.s32.totalorder %s19, 0
      %p102 = por %p100, %p101
      %p103 = scmp.ne.s32.totalorder %s95, %s97
      %p104 = scmp.eq.s32.totalorder %s24, 1
      %p105 = por %p103, %p104
      %p106 = scmp.ne.s32.totalorder %s97, %s98
      %p107 = scmp.eq.s32.totalorder %s24, 0
      %p108 = por %p106, %p107
      %p109 = scmp.ne.s32.totalorder %s97, %s98
      %p110 = scmp.eq.s32.totalorder %s25, 1
      %p111 = por %p109, %p110
      %p113 = scmp.ne.s32.totalorder %s98, %s112
      %p114 = scmp.eq.s32.totalorder %s25, 0
      %p115 = por %p113, %p114
      %s117 = sadd.s32 %s116, 1
      %p120 = scmp.eq.s32.totalorder %s19, 1
      %p121 = scmp.ne.s32.totalorder %s116, %s118
      %p122 = scmp.eq.s32.totalorder %s19, 0
      %p123 = por %p121, %p122
      %p124 = scmp.ne.s32.totalorder %s116, %s118
      %p125 = scmp.eq.s32.totalorder %s24, 1
      %p126 = por %p124, %p125
      %p127 = scmp.ne.s32.totalorder %s118, %s119
      %p128 = scmp.eq.s32.totalorder %s24, 0
      %p129 = por %p127, %p128
      %p130 = scmp.ne.s32.totalorder %s118, %s119
      %p131 = scmp.eq.s32.totalorder %s25, 1
      %p132 = por %p130, %p131
      %p134 = scmp.ne.s32.totalorder %s119, %s133
      %p135 = scmp.eq.s32.totalorder %s25, 0
      %p136 = por %p134, %p135
      %s137 = ssub.s32 %s19, %s26
      %p138 = scmp.eq.s32.totalorder %s137, 0
      %s140 = sadd.s32 %s139, 1
      %s141 = scalar_select %p138, %s139, %s140
      %p144 = pneg %p138
      %p145 = scmp.eq.s32.totalorder %s19, 1
      %p146 = por %p144, %p145
      %p147 = scmp.ne.s32.totalorder %s139, %s142
      %p148 = scmp.eq.s32.totalorder %s19, 0
      %p149 = por %p147, %p148
      %p150 = scmp.ne.s32.totalorder %s139, %s142
      %p151 = scmp.eq.s32.totalorder %s24, 1
      %p152 = por %p150, %p151
      %p153 = scmp.ne.s32.totalorder %s142, %s143
      %p154 = scmp.eq.s32.totalorder %s24, 0
      %p155 = por %p153, %p154
      %p156 = scmp.ne.s32.totalorder %s142, %s143
      %p157 = scmp.eq.s32.totalorder %s25, 1
      %p158 = por %p156, %p157
      %p160 = scmp.ne.s32.totalorder %s143, %s159
      %p161 = scmp.eq.s32.totalorder %s25, 0
      %p162 = por %p160, %p161
      %p163 = scmp.le.s32.totalorder 1, %s19
      %p164 = scmp.lt.s32.totalorder %s19, 3
      %p165 = pnand %p163, %p164
      %p166 = pneg %p165
      // Predicated region
      $region9: #{tpu_custom_call.1} parent=5 // pred_check
        _
      $region10: #{tpu_custom_call.1} parent=5 // pred_check_branch
        %168 = sbr.rel (%p165) target = $region12
      $region11: #{tpu_custom_call.1} parent=5 // pred_region
        %s169 = ssub.s32 %s19, 1
        // Predicated region
        $region13: #{tpu_custom_call.1} parent=11 // pred_check
          %p170 = pneg %p66
        $region14: #{tpu_custom_call.1} parent=11 // pred_check_branch
          %172 = sbr.rel (%p170) target = $region16
        $region15: #{tpu_custom_call.1} parent=11 // pred_region
          %174 = vsyncadd [#allocation6], 0
          %s175 = sshll.u32 %s1, 4
          %s176 = int_to_ptr.hbm [resolvable:$true] %s175
          %s177 = sshll.u32 [#allocation5], 4
          %s178 = int_to_ptr.vmem [resolvable:$true] %s177
          %183 = dma.hbm_to_vmem [thread:$0]  %s176, 36864, %s178, [#allocation6], 768, 768, 48
        $region16: #{tpu_custom_call.1} parent=11 // pred_fallthru
          _
        // Predicated region
        $region17: #{tpu_custom_call.1} parent=11 // pred_check
          %p184 = pneg %p87
        $region18: #{tpu_custom_call.1} parent=11 // pred_check_branch
          %186 = sbr.rel (%p184) target = $region20
        $region19: #{tpu_custom_call.1} parent=11 // pred_region
          %188 = vsyncadd [#allocation6], 0
          %s190 = sshll.u32 %s2, 4
          %s191 = int_to_ptr.hbm [resolvable:$true] %s190
          %s192 = sshll.u32 [#allocation7], 4
          %s193 = int_to_ptr.vmem [resolvable:$true] %s192
          %195 = dma.hbm_to_vmem [thread:$0]  %s191, 192, %s193, [#allocation6]
        $region20: #{tpu_custom_call.1} parent=11 // pred_fallthru
          _
        // Predicated region
        $region21: #{tpu_custom_call.1} parent=11 // pred_check
          %p196 = pneg %p108
        $region22: #{tpu_custom_call.1} parent=11 // pred_check_branch
          %198 = sbr.rel (%p196) target = $region24
        $region23: #{tpu_custom_call.1} parent=11 // pred_region
          %200 = vsyncadd [#allocation9], 0
          %s201 = sshll.u32 %s3, 4
          %s202 = int_to_ptr.hbm [resolvable:$true] %s201
          %s203 = sshll.u32 [#allocation8], 4
          %s204 = int_to_ptr.vmem [resolvable:$true] %s203
          %209 = dma.hbm_to_vmem [thread:$0]  %s202, 36864, %s204, [#allocation9], 192, 192, 12
        $region24: #{tpu_custom_call.1} parent=11 // pred_fallthru
          _
        // Predicated region
        $region25: #{tpu_custom_call.1} parent=11 // pred_check
          %p210 = pneg %p129
        $region26: #{tpu_custom_call.1} parent=11 // pred_check_branch
          %212 = sbr.rel (%p210) target = $region28
        $region27: #{tpu_custom_call.1} parent=11 // pred_region
          %214 = vsyncadd [#allocation9], 0
          %s216 = sshll.u32 %s4, 4
          %s217 = int_to_ptr.hbm [resolvable:$true] %s216
          %s218 = sshll.u32 [#allocation10], 4
          %s219 = int_to_ptr.vmem [resolvable:$true] %s218
          %221 = dma.hbm_to_vmem [thread:$0]  %s217, 48, %s219, [#allocation9]
        $region28: #{tpu_custom_call.1} parent=11 // pred_fallthru
          _
      $region12: #{tpu_custom_call.1} parent=5 // pred_fallthru
        _
      %p222 = scmp.lt.s32.totalorder %s19, 2
      // Predicated region
      $region29: #{tpu_custom_call.1} parent=5 // pred_check
        %p223 = pneg %p222
      $region30: #{tpu_custom_call.1} parent=5 // pred_check_branch
        %225 = sbr.rel (%p223) target = $region32
      $region31: #{tpu_custom_call.1} parent=5 // pred_region
        // Predicated region
        $region33: #{tpu_custom_call.1} parent=31 // pred_check
          %p226 = pneg %p39
        $region34: #{tpu_custom_call.1} parent=31 // pred_check_branch
          %228 = sbr.rel (%p226) target = $region36
        $region35: #{tpu_custom_call.1} parent=31 // pred_region
          %s229 = sand.u32 %s29, 1
          %s230 = scalar_lea.sflag [#allocation3], %s229
          %s231 = sand.u32 %s29, 1
          %s232 = smul.addr %s231, 24
          %s233 = scalar_lea.vmem [#allocation2], %s232
          %235 = vsyncadd %s230, 0
          %s236 = smul.addr %s19, 3
          %s237 = smul.addr %s236, 8
          %s238 = scalar_lea.hbm %s0, %s237
          %s240 = sshll.u32 %s238, 4
          %s241 = int_to_ptr.hbm [resolvable:$true] %s240
          %s242 = sshll.u32 %s233, 4
          %s243 = int_to_ptr.vmem [resolvable:$true] %s242
          %245 = dma.hbm_to_vmem [thread:$0]  %s241, 384, %s243, %s230
        $region36: #{tpu_custom_call.1} parent=31 // pred_fallthru
          _
      $region32: #{tpu_custom_call.1} parent=5 // pred_fallthru
        _
      %p246 = scmp.le.s32.totalorder 1, %s19
      %p247 = scmp.lt.s32.totalorder %s19, 3
      %p248 = pnand %p246, %p247
      %p249 = pneg %p248
      // Predicated region
      $region37: #{tpu_custom_call.1} parent=5 // pred_check
        _
      $region38: #{tpu_custom_call.1} parent=5 // pred_check_branch
        %251 = sbr.rel (%p248) target = $region40
      $region39: #{tpu_custom_call.1} parent=5 // pred_region
        %s252 = ssub.s32 %s19, 1
        %s253 = sand.u32 %s32, 1
        %s254 = scalar_lea.sflag [#allocation3], %s253
        %s255 = sand.u32 %s32, 1
        %s256 = smul.addr %s255, 24
        %s257 = scalar_lea.vmem [#allocation2], %s256
        // Predicated region
        $region41: #{tpu_custom_call.1} parent=39 // pred_check
          %p258 = pneg %p45
        $region42: #{tpu_custom_call.1} parent=39 // pred_check_branch
          %260 = sbr.rel (%p258) target = $region44
        $region43: #{tpu_custom_call.1} parent=39 // pred_region
          %262 = dma.done %s254, 384
        $region44: #{tpu_custom_call.1} parent=39 // pred_fallthru
          _
        // Predicated region
        $region45: #{tpu_custom_call.1} parent=39 // pred_check
          %p263 = pneg %p66
        $region46: #{tpu_custom_call.1} parent=39 // pred_check_branch
          %265 = sbr.rel (%p263) target = $region48
        $region47: #{tpu_custom_call.1} parent=39 // pred_region
          %267 = dma.done [#allocation6], 36864
        $region48: #{tpu_custom_call.1} parent=39 // pred_fallthru
          _
        // Predicated region
        $region49: #{tpu_custom_call.1} parent=39 // pred_check
          %p268 = pneg %p87
        $region50: #{tpu_custom_call.1} parent=39 // pred_check_branch
          %270 = sbr.rel (%p268) target = $region52
        $region51: #{tpu_custom_call.1} parent=39 // pred_region
          %272 = dma.done [#allocation6], 192
        $region52: #{tpu_custom_call.1} parent=39 // pred_fallthru
          _
        // Predicated region
        $region53: #{tpu_custom_call.1} parent=39 // pred_check
          %p273 = pneg %p108
        $region54: #{tpu_custom_call.1} parent=39 // pred_check_branch
          %275 = sbr.rel (%p273) target = $region56
        $region55: #{tpu_custom_call.1} parent=39 // pred_region
          %277 = dma.done [#allocation9], 36864
        $region56: #{tpu_custom_call.1} parent=39 // pred_fallthru
          _
        // Predicated region
        $region57: #{tpu_custom_call.1} parent=39 // pred_check
          %p278 = pneg %p129
        $region58: #{tpu_custom_call.1} parent=39 // pred_check_branch
          %280 = sbr.rel (%p278) target = $region60
        $region59: #{tpu_custom_call.1} parent=39 // pred_region
          %282 = dma.done [#allocation9], 48
        $region60: #{tpu_custom_call.1} parent=39 // pred_fallthru
          _
        %s283 = sand.u32 %s32, 1
        %s284 = scalar_lea.sflag [#allocation3], %s283
        %s285 = sand.u32 %s32, 1
        %s286 = smul.addr %s285, 24
        %s287 = scalar_lea.vmem [#allocation2], %s286
        %p288 = pneg %p45
        %p289 = pneg %p42
        %p290 = pneg %p66
        %p291 = pneg %p63
        %p292 = pneg %p87
        %p293 = pneg %p84
        %p294 = pneg %p108
        %p295 = pneg %p105
        %p296 = pneg %p129
        %p297 = pneg %p126
        %p298 = pneg %p155
        %p299 = pneg %p152
        %s300 = sand.u32 %s142, 1
        %s301 = scalar_lea.sflag [#allocation4], %s300
        %s302 = sand.u32 %s142, 1
        %s303 = smul.addr %s302, 24
        %s304 = scalar_lea.vmem [#allocation11], %s303
        %v305 = vld [vmem:[%s257] sm:$0xff]
        %v306 = vld [vmem:[%s257 + $0x8] sm:$0xff]
        %v307 = vld [vmem:[%s257 + $0x10] sm:$0xff]
        %v308 = vpack.c.bf16 %v305, %v305
        %v309 = vpack.c.bf16 %v306, %v306
        %v310 = vpack.c.bf16 %v307, %v307
        %v311 = vld [vmem:[#allocation5] sm:$0xff]
        %v312 = vld [vmem:[#allocation5 + $0x8] sm:$0xff]
        %v313 = vld [vmem:[#allocation5 + $0x30] sm:$0xff]
        %v314 = vld [vmem:[#allocation5 + $0x38] sm:$0xff]
        %v315 = vld [vmem:[#allocation5 + $0x60] sm:$0xff]
        %v316 = vld [vmem:[#allocation5 + $0x68] sm:$0xff]
        %v317 = vld [vmem:[#allocation5 + $0x90] sm:$0xff]
        %v318 = vld [vmem:[#allocation5 + $0x98] sm:$0xff]
        %v319 = vld [vmem:[#allocation5 + $0xc0] sm:$0xff]
        %v320 = vld [vmem:[#allocation5 + $0xc8] sm:$0xff]
        %v321 = vld [vmem:[#allocation5 + $0xf0] sm:$0xff]
        %v322 = vld [vmem:[#allocation5 + $0xf8] sm:$0xff]
        %v323 = vld [vmem:[#allocation5 + $0x120] sm:$0xff]
        %v324 = vld [vmem:[#allocation5 + $0x128] sm:$0xff]
        %v325 = vld [vmem:[#allocation5 + $0x150] sm:$0xff]
        %v326 = vld [vmem:[#allocation5 + $0x158] sm:$0xff]
        %v327 = vld [vmem:[#allocation5 + $0x180] sm:$0xff]
        %v328 = vld [vmem:[#allocation5 + $0x188] sm:$0xff]
        %v329 = vld [vmem:[#allocation5 + $0x1b0] sm:$0xff]
        %v330 = vld [vmem:[#allocation5 + $0x1b8] sm:$0xff]
        %v331 = vld [vmem:[#allocation5 + $0x1e0] sm:$0xff]
        %v332 = vld [vmem:[#allocation5 + $0x1e8] sm:$0xff]
        %v333 = vld [vmem:[#allocation5 + $0x210] sm:$0xff]
        %v334 = vld [vmem:[#allocation5 + $0x218] sm:$0xff]
        %v335 = vld [vmem:[#allocation5 + $0x240] sm:$0xff]
        %v336 = vld [vmem:[#allocation5 + $0x248] sm:$0xff]
        %v337 = vld [vmem:[#allocation5 + $0x270] sm:$0xff]
        %v338 = vld [vmem:[#allocation5 + $0x278] sm:$0xff]
        %v339 = vld [vmem:[#allocation5 + $0x2a0] sm:$0xff]
        %v340 = vld [vmem:[#allocation5 + $0x2a8] sm:$0xff]
        %v341 = vld [vmem:[#allocation5 + $0x2d0] sm:$0xff]
        %v342 = vld [vmem:[#allocation5 + $0x2d8] sm:$0xff]
        %v343 = vld [vmem:[#allocation5 + $0x300] sm:$0xff]
        %v344 = vld [vmem:[#allocation5 + $0x308] sm:$0xff]
        %v345 = vld [vmem:[#allocation5 + $0x330] sm:$0xff]
        %v346 = vld [vmem:[#allocation5 + $0x338] sm:$0xff]
        %v347 = vld [vmem:[#allocation5 + $0x360] sm:$0xff]
        %v348 = vld [vmem:[#allocation5 + $0x368] sm:$0xff]
        %v349 = vld [vmem:[#allocation5 + $0x390] sm:$0xff]
        %v350 = vld [vmem:[#allocation5 + $0x398] sm:$0xff]
        %v351 = vld [vmem:[#allocation5 + $0x3c0] sm:$0xff]
        %v352 = vld [vmem:[#allocation5 + $0x3c8] sm:$0xff]
        %v353 = vld [vmem:[#allocation5 + $0x3f0] sm:$0xff]
        %v354 = vld [vmem:[#allocation5 + $0x3f8] sm:$0xff]
        %v355 = vld [vmem:[#allocation5 + $0x420] sm:$0xff]
        %v356 = vld [vmem:[#allocation5 + $0x428] sm:$0xff]
        %v357 = vld [vmem:[#allocation5 + $0x450] sm:$0xff]
        %v358 = vld [vmem:[#allocation5 + $0x458] sm:$0xff]
        %v359 = vld [vmem:[#allocation5 + $0x480] sm:$0xff]
        %v360 = vld [vmem:[#allocation5 + $0x488] sm:$0xff]
        %v361 = vld [vmem:[#allocation5 + $0x4b0] sm:$0xff]
        %v362 = vld [vmem:[#allocation5 + $0x4b8] sm:$0xff]
        %v363 = vld [vmem:[#allocation5 + $0x4e0] sm:$0xff]
        %v364 = vld [vmem:[#allocation5 + $0x4e8] sm:$0xff]
        %v365 = vld [vmem:[#allocation5 + $0x510] sm:$0xff]
        %v366 = vld [vmem:[#allocation5 + $0x518] sm:$0xff]
        %v367 = vld [vmem:[#allocation5 + $0x540] sm:$0xff]
        %v368 = vld [vmem:[#allocation5 + $0x548] sm:$0xff]
        %v369 = vld [vmem:[#allocation5 + $0x570] sm:$0xff]
        %v370 = vld [vmem:[#allocation5 + $0x578] sm:$0xff]
        %v371 = vld [vmem:[#allocation5 + $0x5a0] sm:$0xff]
        %v372 = vld [vmem:[#allocation5 + $0x5a8] sm:$0xff]
        %v373 = vld [vmem:[#allocation5 + $0x5d0] sm:$0xff]
        %v374 = vld [vmem:[#allocation5 + $0x5d8] sm:$0xff]
        %v375 = vld [vmem:[#allocation5 + $0x600] sm:$0xff]
        %v376 = vld [vmem:[#allocation5 + $0x608] sm:$0xff]
        %v377 = vld [vmem:[#allocation5 + $0x630] sm:$0xff]
        %v378 = vld [vmem:[#allocation5 + $0x638] sm:$0xff]
        %v379 = vld [vmem:[#allocation5 + $0x660] sm:$0xff]
        %v380 = vld [vmem:[#allocation5 + $0x668] sm:$0xff]
        %v381 = vld [vmem:[#allocation5 + $0x690] sm:$0xff]
        %v382 = vld [vmem:[#allocation5 + $0x698] sm:$0xff]
        %v383 = vld [vmem:[#allocation5 + $0x6c0] sm:$0xff]
        %v384 = vld [vmem:[#allocation5 + $0x6c8] sm:$0xff]
        %v385 = vld [vmem:[#allocation5 + $0x6f0] sm:$0xff]
        %v386 = vld [vmem:[#allocation5 + $0x6f8] sm:$0xff]
        %v387 = vld [vmem:[#allocation5 + $0x720] sm:$0xff]
        %v388 = vld [vmem:[#allocation5 + $0x728] sm:$0xff]
        %v389 = vld [vmem:[#allocation5 + $0x750] sm:$0xff]
        %v390 = vld [vmem:[#allocation5 + $0x758] sm:$0xff]
        %v391 = vld [vmem:[#allocation5 + $0x780] sm:$0xff]
        %v392 = vld [vmem:[#allocation5 + $0x788] sm:$0xff]
        %v393 = vld [vmem:[#allocation5 + $0x7b0] sm:$0xff]
        %v394 = vld [vmem:[#allocation5 + $0x7b8] sm:$0xff]
        %v395 = vld [vmem:[#allocation5 + $0x7e0] sm:$0xff]
        %v396 = vld [vmem:[#allocation5 + $0x7e8] sm:$0xff]
        %v397 = vld [vmem:[#allocation5 + $0x810] sm:$0xff]
        %v398 = vld [vmem:[#allocation5 + $0x818] sm:$0xff]
        %v399 = vld [vmem:[#allocation5 + $0x840] sm:$0xff]
        %v400 = vld [vmem:[#allocation5 + $0x848] sm:$0xff]
        %v401 = vld [vmem:[#allocation5 + $0x870] sm:$0xff]
        %v402 = vld [vmem:[#allocation5 + $0x878] sm:$0xff]
        %v403 = vld [vmem:[#allocation5 + $0x8a0] sm:$0xff]
        %v404 = vld [vmem:[#allocation5 + $0x8a8] sm:$0xff]
        %v405 = vld [vmem:[#allocation5 + $0x8d0] sm:$0xff]
        %v406 = vld [vmem:[#allocation5 + $0x8d8] sm:$0xff]
        %v407 = vld [vmem:[#allocation7] sm:$0xf]
        %v409 = vperm.slane %v407, 0
        %v410 = vperm.slane %v407, 1
        %v411 = vperm.slane %v407, 2
        %v412 = vperm.slane %v407, 3
        %v513 = vunpack.c.l.b16 %v311
        %v514 = vunpack.c.h.b16 %v311
        %v515 = vunpack.c.l.b16 %v312
        %v516 = vunpack.c.h.b16 %v312
        %v517 = vunpack.c.l.b16 %v313
        %v518 = vunpack.c.h.b16 %v313
        %v519 = vunpack.c.l.b16 %v314
        %v520 = vunpack.c.h.b16 %v314
        %v521 = vunpack.c.l.b16 %v315
        %v522 = vunpack.c.h.b16 %v315
        %v523 = vunpack.c.l.b16 %v316
        %v524 = vunpack.c.h.b16 %v316
        %v525 = vunpack.c.l.b16 %v317
        %v526 = vunpack.c.h.b16 %v317
        %v527 = vunpack.c.l.b16 %v318
        %v528 = vunpack.c.h.b16 %v318
        %v529 = vunpack.c.l.b16 %v319
        %v530 = vunpack.c.h.b16 %v319
        %v531 = vunpack.c.l.b16 %v320
        %v532 = vunpack.c.h.b16 %v320
        %v533 = vunpack.c.l.b16 %v321
        %v534 = vunpack.c.h.b16 %v321
        %v535 = vunpack.c.l.b16 %v322
        %v536 = vunpack.c.h.b16 %v322
        %v537 = vunpack.c.l.b16 %v323
        %v538 = vunpack.c.h.b16 %v323
        %v539 = vunpack.c.l.b16 %v324
        %v540 = vunpack.c.h.b16 %v324
        %v541 = vunpack.c.l.b16 %v325
        %v542 = vunpack.c.h.b16 %v325
        %v543 = vunpack.c.l.b16 %v326
        %v544 = vunpack.c.h.b16 %v326
        %v545 = vunpack.c.l.b16 %v327
        %v546 = vunpack.c.h.b16 %v327
        %v547 = vunpack.c.l.b16 %v328
        %v548 = vunpack.c.h.b16 %v328
        %v549 = vunpack.c.l.b16 %v329
        %v550 = vunpack.c.h.b16 %v329
        %v551 = vunpack.c.l.b16 %v330
        %v552 = vunpack.c.h.b16 %v330
        %v553 = vunpack.c.l.b16 %v331
        %v554 = vunpack.c.h.b16 %v331
        %v555 = vunpack.c.l.b16 %v332
        %v556 = vunpack.c.h.b16 %v332
        %v557 = vunpack.c.l.b16 %v333
        %v558 = vunpack.c.h.b16 %v333
        %v559 = vunpack.c.l.b16 %v334
        %v560 = vunpack.c.h.b16 %v334
        %v561 = vunpack.c.l.b16 %v335
        %v562 = vunpack.c.h.b16 %v335
        %v563 = vunpack.c.l.b16 %v336
        %v564 = vunpack.c.h.b16 %v336
        %v565 = vunpack.c.l.b16 %v337
        %v566 = vunpack.c.h.b16 %v337
        %v567 = vunpack.c.l.b16 %v338
        %v568 = vunpack.c.h.b16 %v338
        %v569 = vunpack.c.l.b16 %v339
        %v570 = vunpack.c.h.b16 %v339
        %v571 = vunpack.c.l.b16 %v340
        %v572 = vunpack.c.h.b16 %v340
        %v573 = vunpack.c.l.b16 %v341
        %v574 = vunpack.c.h.b16 %v341
        %v575 = vunpack.c.l.b16 %v342
        %v576 = vunpack.c.h.b16 %v342
        %v577 = vunpack.c.l.b16 %v343
        %v578 = vunpack.c.h.b16 %v343
        %v579 = vunpack.c.l.b16 %v344
        %v580 = vunpack.c.h.b16 %v344
        %v581 = vunpack.c.l.b16 %v345
        %v582 = vunpack.c.h.b16 %v345
        %v583 = vunpack.c.l.b16 %v346
        %v584 = vunpack.c.h.b16 %v346
        %v585 = vunpack.c.l.b16 %v347
        %v586 = vunpack.c.h.b16 %v347
        %v587 = vunpack.c.l.b16 %v348
        %v588 = vunpack.c.h.b16 %v348
        %v589 = vunpack.c.l.b16 %v349
        %v590 = vunpack.c.h.b16 %v349
        %v591 = vunpack.c.l.b16 %v350
        %v592 = vunpack.c.h.b16 %v350
        %v593 = vunpack.c.l.b16 %v351
        %v594 = vunpack.c.h.b16 %v351
        %v595 = vunpack.c.l.b16 %v352
        %v596 = vunpack.c.h.b16 %v352
        %v597 = vunpack.c.l.b16 %v353
        %v598 = vunpack.c.h.b16 %v353
        %v599 = vunpack.c.l.b16 %v354
        %v600 = vunpack.c.h.b16 %v354
        %v601 = vunpack.c.l.b16 %v355
        %v602 = vunpack.c.h.b16 %v355
        %v603 = vunpack.c.l.b16 %v356
        %v604 = vunpack.c.h.b16 %v356
        %v605 = vunpack.c.l.b16 %v357
        %v606 = vunpack.c.h.b16 %v357
        %v607 = vunpack.c.l.b16 %v358
        %v608 = vunpack.c.h.b16 %v358
        %v609 = vunpack.c.l.b16 %v359
        %v610 = vunpack.c.h.b16 %v359
        %v611 = vunpack.c.l.b16 %v360
        %v612 = vunpack.c.h.b16 %v360
        %v613 = vunpack.c.l.b16 %v361
        %v614 = vunpack.c.h.b16 %v361
        %v615 = vunpack.c.l.b16 %v362
        %v616 = vunpack.c.h.b16 %v362
        %v617 = vunpack.c.l.b16 %v363
        %v618 = vunpack.c.h.b16 %v363
        %v619 = vunpack.c.l.b16 %v364
        %v620 = vunpack.c.h.b16 %v364
        %v621 = vunpack.c.l.b16 %v365
        %v622 = vunpack.c.h.b16 %v365
        %v623 = vunpack.c.l.b16 %v366
        %v624 = vunpack.c.h.b16 %v366
        %v625 = vunpack.c.l.b16 %v367
        %v626 = vunpack.c.h.b16 %v367
        %v627 = vunpack.c.l.b16 %v368
        %v628 = vunpack.c.h.b16 %v368
        %v629 = vunpack.c.l.b16 %v369
        %v630 = vunpack.c.h.b16 %v369
        %v631 = vunpack.c.l.b16 %v370
        %v632 = vunpack.c.h.b16 %v370
        %v633 = vunpack.c.l.b16 %v371
        %v634 = vunpack.c.h.b16 %v371
        %v635 = vunpack.c.l.b16 %v372
        %v636 = vunpack.c.h.b16 %v372
        %v637 = vunpack.c.l.b16 %v373
        %v638 = vunpack.c.h.b16 %v373
        %v639 = vunpack.c.l.b16 %v374
        %v640 = vunpack.c.h.b16 %v374
        %v641 = vunpack.c.l.b16 %v375
        %v642 = vunpack.c.h.b16 %v375
        %v643 = vunpack.c.l.b16 %v376
        %v644 = vunpack.c.h.b16 %v376
        %v645 = vunpack.c.l.b16 %v377
        %v646 = vunpack.c.h.b16 %v377
        %v647 = vunpack.c.l.b16 %v378
        %v648 = vunpack.c.h.b16 %v378
        %v649 = vunpack.c.l.b16 %v379
        %v650 = vunpack.c.h.b16 %v379
        %v651 = vunpack.c.l.b16 %v380
        %v652 = vunpack.c.h.b16 %v380
        %v653 = vunpack.c.l.b16 %v381
        %v654 = vunpack.c.h.b16 %v381
        %v655 = vunpack.c.l.b16 %v382
        %v656 = vunpack.c.h.b16 %v382
        %v657 = vunpack.c.l.b16 %v383
        %v658 = vunpack.c.h.b16 %v383
        %v659 = vunpack.c.l.b16 %v384
        %v660 = vunpack.c.h.b16 %v384
        %v661 = vunpack.c.l.b16 %v385
        %v662 = vunpack.c.h.b16 %v385
        %v663 = vunpack.c.l.b16 %v386
        %v664 = vunpack.c.h.b16 %v386
        %v665 = vunpack.c.l.b16 %v387
        %v666 = vunpack.c.h.b16 %v387
        %v667 = vunpack.c.l.b16 %v388
        %v668 = vunpack.c.h.b16 %v388
        %v669 = vunpack.c.l.b16 %v389
        %v670 = vunpack.c.h.b16 %v389
        %v671 = vunpack.c.l.b16 %v390
        %v672 = vunpack.c.h.b16 %v390
        %v673 = vunpack.c.l.b16 %v391
        %v674 = vunpack.c.h.b16 %v391
        %v675 = vunpack.c.l.b16 %v392
        %v676 = vunpack.c.h.b16 %v392
        %v677 = vunpack.c.l.b16 %v393
        %v678 = vunpack.c.h.b16 %v393
        %v679 = vunpack.c.l.b16 %v394
        %v680 = vunpack.c.h.b16 %v394
        %v681 = vunpack.c.l.b16 %v395
        %v682 = vunpack.c.h.b16 %v395
        %v683 = vunpack.c.l.b16 %v396
        %v684 = vunpack.c.h.b16 %v396
        %v685 = vunpack.c.l.b16 %v397
        %v686 = vunpack.c.h.b16 %v397
        %v687 = vunpack.c.l.b16 %v398
        %v688 = vunpack.c.h.b16 %v398
        %v689 = vunpack.c.l.b16 %v399
        %v690 = vunpack.c.h.b16 %v399
        %v691 = vunpack.c.l.b16 %v400
        %v692 = vunpack.c.h.b16 %v400
        %v693 = vunpack.c.l.b16 %v401
        %v694 = vunpack.c.h.b16 %v401
        %v695 = vunpack.c.l.b16 %v402
        %v696 = vunpack.c.h.b16 %v402
        %v697 = vunpack.c.l.b16 %v403
        %v698 = vunpack.c.h.b16 %v403
        %v699 = vunpack.c.l.b16 %v404
        %v700 = vunpack.c.h.b16 %v404
        %v701 = vunpack.c.l.b16 %v405
        %v702 = vunpack.c.h.b16 %v405
        %v703 = vunpack.c.l.b16 %v406
        %v704 = vunpack.c.h.b16 %v406
        %v705 = vpack.c.b16 %v517, %v513
        %v706 = vpack.c.b16 %v518, %v514
        %v707 = vpack.c.b16 %v519, %v515
        %v708 = vpack.c.b16 %v520, %v516
        %v709 = vpack.c.b16 %v525, %v521
        %v710 = vpack.c.b16 %v526, %v522
        %v711 = vpack.c.b16 %v527, %v523
        %v712 = vpack.c.b16 %v528, %v524
        %v713 = vpack.c.b16 %v533, %v529
        %v714 = vpack.c.b16 %v534, %v530
        %v715 = vpack.c.b16 %v535, %v531
        %v716 = vpack.c.b16 %v536, %v532
        %v717 = vpack.c.b16 %v541, %v537
        %v718 = vpack.c.b16 %v542, %v538
        %v719 = vpack.c.b16 %v543, %v539
        %v720 = vpack.c.b16 %v544, %v540
        %v721 = vpack.c.b16 %v549, %v545
        %v722 = vpack.c.b16 %v550, %v546
        %v723 = vpack.c.b16 %v551, %v547
        %v724 = vpack.c.b16 %v552, %v548
        %v725 = vpack.c.b16 %v557, %v553
        %v726 = vpack.c.b16 %v558, %v554
        %v727 = vpack.c.b16 %v559, %v555
        %v728 = vpack.c.b16 %v560, %v556
        %v729 = vpack.c.b16 %v565, %v561
        %v730 = vpack.c.b16 %v566, %v562
        %v731 = vpack.c.b16 %v567, %v563
        %v732 = vpack.c.b16 %v568, %v564
        %v733 = vpack.c.b16 %v573, %v569
        %v734 = vpack.c.b16 %v574, %v570
        %v735 = vpack.c.b16 %v575, %v571
        %v736 = vpack.c.b16 %v576, %v572
        %v737 = vpack.c.b16 %v581, %v577
        %v738 = vpack.c.b16 %v582, %v578
        %v739 = vpack.c.b16 %v583, %v579
        %v740 = vpack.c.b16 %v584, %v580
        %v741 = vpack.c.b16 %v589, %v585
        %v742 = vpack.c.b16 %v590, %v586
        %v743 = vpack.c.b16 %v591, %v587
        %v744 = vpack.c.b16 %v592, %v588
        %v745 = vpack.c.b16 %v597, %v593
        %v746 = vpack.c.b16 %v598, %v594
        %v747 = vpack.c.b16 %v599, %v595
        %v748 = vpack.c.b16 %v600, %v596
        %v749 = vpack.c.b16 %v605, %v601
        %v750 = vpack.c.b16 %v606, %v602
        %v751 = vpack.c.b16 %v607, %v603
        %v752 = vpack.c.b16 %v608, %v604
        %v753 = vpack.c.b16 %v613, %v609
        %v754 = vpack.c.b16 %v614, %v610
        %v755 = vpack.c.b16 %v615, %v611
        %v756 = vpack.c.b16 %v616, %v612
        %v757 = vpack.c.b16 %v621, %v617
        %v758 = vpack.c.b16 %v622, %v618
        %v759 = vpack.c.b16 %v623, %v619
        %v760 = vpack.c.b16 %v624, %v620
        %v761 = vpack.c.b16 %v629, %v625
        %v762 = vpack.c.b16 %v630, %v626
        %v763 = vpack.c.b16 %v631, %v627
        %v764 = vpack.c.b16 %v632, %v628
        %v765 = vpack.c.b16 %v637, %v633
        %v766 = vpack.c.b16 %v638, %v634
        %v767 = vpack.c.b16 %v639, %v635
        %v768 = vpack.c.b16 %v640, %v636
        %v769 = vpack.c.b16 %v645, %v641
        %v770 = vpack.c.b16 %v646, %v642
        %v771 = vpack.c.b16 %v647, %v643
        %v772 = vpack.c.b16 %v648, %v644
        %v773 = vpack.c.b16 %v653, %v649
        %v774 = vpack.c.b16 %v654, %v650
        %v775 = vpack.c.b16 %v655, %v651
        %v776 = vpack.c.b16 %v656, %v652
        %v777 = vpack.c.b16 %v661, %v657
        %v778 = vpack.c.b16 %v662, %v658
        %v779 = vpack.c.b16 %v663, %v659
        %v780 = vpack.c.b16 %v664, %v660
        %v781 = vpack.c.b16 %v669, %v665
        %v782 = vpack.c.b16 %v670, %v666
        %v783 = vpack.c.b16 %v671, %v667
        %v784 = vpack.c.b16 %v672, %v668
        %v785 = vpack.c.b16 %v677, %v673
        %v786 = vpack.c.b16 %v678, %v674
        %v787 = vpack.c.b16 %v679, %v675
        %v788 = vpack.c.b16 %v680, %v676
        %v789 = vpack.c.b16 %v685, %v681
        %v790 = vpack.c.b16 %v686, %v682
        %v791 = vpack.c.b16 %v687, %v683
        %v792 = vpack.c.b16 %v688, %v684
        %v793 = vpack.c.b16 %v693, %v689
        %v794 = vpack.c.b16 %v694, %v690
        %v795 = vpack.c.b16 %v695, %v691
        %v796 = vpack.c.b16 %v696, %v692
        %v797 = vpack.c.b16 %v701, %v697
        %v798 = vpack.c.b16 %v702, %v698
        %v799 = vpack.c.b16 %v703, %v699
        %v800 = vpack.c.b16 %v704, %v700
        %897 = vmatpush.bf16.msra.mxu0 %v733
        %898 = vmatpush.bf16.msra.mxu0 %v729
        %899 = vmatpush.bf16.msra.mxu0 %v725
        %900 = vmatpush.bf16.msra.mxu0 %v721
        %901 = vmatpush.bf16.msra.mxu0 %v717
        %902 = vmatpush.bf16.msra.mxu0 %v713
        %903 = vmatpush.bf16.msra.mxu0 %v709
        %904 = vmatpush.bf16.msra.mxu0 %v705
        %905 = vmatmul.bf16.gmra.mxu0 %v308
        %v906 = vpop.f32.mrf.mxu0
        %v907 = vadd.f32 %v409, %v906
        %v908 = vpop.f32.mrf.mxu0
        %909 = vdwg.mxu0
        %910 = vmatpush.bf16.msra.mxu0 %v765
        %911 = vmatpush.bf16.msra.mxu0 %v761
        %912 = vmatpush.bf16.msra.mxu0 %v757
        %913 = vmatpush.bf16.msra.mxu0 %v753
        %914 = vmatpush.bf16.msra.mxu0 %v749
        %915 = vmatpush.bf16.msra.mxu0 %v745
        %916 = vmatpush.bf16.msra.mxu0 %v741
        %917 = vmatpush.bf16.msra.mxu0 %v737
        %918 = vmatmul.bf16.gmra.mxu0 %v309
        %v919 = vpop.f32.mrf.mxu0
        %v920 = vadd.f32 %v907, %v919
        %v921 = vpop.f32.mrf.mxu0
        %922 = vdwg.mxu0
        %923 = vmatpush.bf16.msra.mxu0 %v797
        %924 = vmatpush.bf16.msra.mxu0 %v793
        %925 = vmatpush.bf16.msra.mxu0 %v789
        %926 = vmatpush.bf16.msra.mxu0 %v785
        %927 = vmatpush.bf16.msra.mxu0 %v781
        %928 = vmatpush.bf16.msra.mxu0 %v777
        %929 = vmatpush.bf16.msra.mxu0 %v773
        %930 = vmatpush.bf16.msra.mxu0 %v769
        %931 = vmatmul.bf16.gmra.mxu0 %v310
        %v932 = vpop.f32.mrf.mxu0
        %v933 = vadd.f32 %v920, %v932
        %v934 = vpop.f32.mrf.mxu0
        %935 = vdwg.mxu0
        %936 = vmatpush.bf16.msra.mxu0 %v734
        %937 = vmatpush.bf16.msra.mxu0 %v730
        %938 = vmatpush.bf16.msra.mxu0 %v726
        %939 = vmatpush.bf16.msra.mxu0 %v722
        %940 = vmatpush.bf16.msra.mxu0 %v718
        %941 = vmatpush.bf16.msra.mxu0 %v714
        %942 = vmatpush.bf16.msra.mxu0 %v710
        %943 = vmatpush.bf16.msra.mxu0 %v706
        %944 = vmatmul.bf16.gmra.mxu0 %v308
        %v945 = vpop.f32.mrf.mxu0
        %v946 = vadd.f32 %v410, %v945
        %v947 = vpop.f32.mrf.mxu0
        %948 = vdwg.mxu0
        %949 = vmatpush.bf16.msra.mxu0 %v766
        %950 = vmatpush.bf16.msra.mxu0 %v762
        %951 = vmatpush.bf16.msra.mxu0 %v758
        %952 = vmatpush.bf16.msra.mxu0 %v754
        %953 = vmatpush.bf16.msra.mxu0 %v750
        %954 = vmatpush.bf16.msra.mxu0 %v746
        %955 = vmatpush.bf16.msra.mxu0 %v742
        %956 = vmatpush.bf16.msra.mxu0 %v738
        %957 = vmatmul.bf16.gmra.mxu0 %v309
        %v958 = vpop.f32.mrf.mxu0
        %v959 = vadd.f32 %v946, %v958
        %v960 = vpop.f32.mrf.mxu0
        %961 = vdwg.mxu0
        %962 = vmatpush.bf16.msra.mxu0 %v798
        %963 = vmatpush.bf16.msra.mxu0 %v794
        %964 = vmatpush.bf16.msra.mxu0 %v790
        %965 = vmatpush.bf16.msra.mxu0 %v786
        %966 = vmatpush.bf16.msra.mxu0 %v782
        %967 = vmatpush.bf16.msra.mxu0 %v778
        %968 = vmatpush.bf16.msra.mxu0 %v774
        %969 = vmatpush.bf16.msra.mxu0 %v770
        %970 = vmatmul.bf16.gmra.mxu0 %v310
        %v971 = vpop.f32.mrf.mxu0
        %v972 = vadd.f32 %v959, %v971
        %v973 = vpop.f32.mrf.mxu0
        %974 = vdwg.mxu0
        %975 = vmatpush.bf16.msra.mxu0 %v735
        %976 = vmatpush.bf16.msra.mxu0 %v731
        %977 = vmatpush.bf16.msra.mxu0 %v727
        %978 = vmatpush.bf16.msra.mxu0 %v723
        %979 = vmatpush.bf16.msra.mxu0 %v719
        %980 = vmatpush.bf16.msra.mxu0 %v715
        %981 = vmatpush.bf16.msra.mxu0 %v711
        %982 = vmatpush.bf16.msra.mxu0 %v707
        %983 = vmatmul.bf16.gmra.mxu0 %v308
        %v984 = vpop.f32.mrf.mxu0
        %v985 = vadd.f32 %v411, %v984
        %v986 = vpop.f32.mrf.mxu0
        %987 = vdwg.mxu0
        %988 = vmatpush.bf16.msra.mxu0 %v767
        %989 = vmatpush.bf16.msra.mxu0 %v763
        %990 = vmatpush.bf16.msra.mxu0 %v759
        %991 = vmatpush.bf16.msra.mxu0 %v755
        %992 = vmatpush.bf16.msra.mxu0 %v751
        %993 = vmatpush.bf16.msra.mxu0 %v747
        %994 = vmatpush.bf16.msra.mxu0 %v743
        %995 = vmatpush.bf16.msra.mxu0 %v739
        %996 = vmatmul.bf16.gmra.mxu0 %v309
        %v997 = vpop.f32.mrf.mxu0
        %v998 = vadd.f32 %v985, %v997
        %v999 = vpop.f32.mrf.mxu0
        %1000 = vdwg.mxu0
        %1001 = vmatpush.bf16.msra.mxu0 %v799
        %1002 = vmatpush.bf16.msra.mxu0 %v795
        %1003 = vmatpush.bf16.msra.mxu0 %v791
        %1004 = vmatpush.bf16.msra.mxu0 %v787
        %1005 = vmatpush.bf16.msra.mxu0 %v783
        %1006 = vmatpush.bf16.msra.mxu0 %v779
        %1007 = vmatpush.bf16.msra.mxu0 %v775
        %1008 = vmatpush.bf16.msra.mxu0 %v771
        %1009 = vmatmul.bf16.gmra.mxu0 %v310
        %v1010 = vpop.f32.mrf.mxu0
        %v1011 = vadd.f32 %v998, %v1010
        %v1012 = vpop.f32.mrf.mxu0
        %1013 = vdwg.mxu0
        %1014 = vmatpush.bf16.msra.mxu0 %v736
        %1015 = vmatpush.bf16.msra.mxu0 %v732
        %1016 = vmatpush.bf16.msra.mxu0 %v728
        %1017 = vmatpush.bf16.msra.mxu0 %v724
        %1018 = vmatpush.bf16.msra.mxu0 %v720
        %1019 = vmatpush.bf16.msra.mxu0 %v716
        %1020 = vmatpush.bf16.msra.mxu0 %v712
        %1021 = vmatpush.bf16.msra.mxu0 %v708
        %1022 = vmatmul.bf16.gmra.mxu0 %v308
        %v1023 = vpop.f32.mrf.mxu0
        %v1024 = vadd.f32 %v412, %v1023
        %v1025 = vpop.f32.mrf.mxu0
        %1026 = vdwg.mxu0
        %1027 = vmatpush.bf16.msra.mxu0 %v768
        %1028 = vmatpush.bf16.msra.mxu0 %v764
        %1029 = vmatpush.bf16.msra.mxu0 %v760
        %1030 = vmatpush.bf16.msra.mxu0 %v756
        %1031 = vmatpush.bf16.msra.mxu0 %v752
        %1032 = vmatpush.bf16.msra.mxu0 %v748
        %1033 = vmatpush.bf16.msra.mxu0 %v744
        %1034 = vmatpush.bf16.msra.mxu0 %v740
        %1035 = vmatmul.bf16.gmra.mxu0 %v309
        %v1036 = vpop.f32.mrf.mxu0
        %v1037 = vadd.f32 %v1024, %v1036
        %v1038 = vpop.f32.mrf.mxu0
        %1039 = vdwg.mxu0
        %1040 = vmatpush.bf16.msra.mxu0 %v800
        %1041 = vmatpush.bf16.msra.mxu0 %v796
        %1042 = vmatpush.bf16.msra.mxu0 %v792
        %1043 = vmatpush.bf16.msra.mxu0 %v788
        %1044 = vmatpush.bf16.msra.mxu0 %v784
        %1045 = vmatpush.bf16.msra.mxu0 %v780
        %1046 = vmatpush.bf16.msra.mxu0 %v776
        %1047 = vmatpush.bf16.msra.mxu0 %v772
        %1048 = vmatmul.bf16.gmra.mxu0 %v310
        %v1049 = vpop.f32.mrf.mxu0
        %v1050 = vadd.f32 %v1037, %v1049
        %v1051 = vpop.f32.mrf.mxu0
        %1052 = vdwg.mxu0
        %v1053 = vmax.f32 %v933, 0.0
        %v1054 = vmax.f32 %v972, 0.0
        %v1055 = vmax.f32 %v1011, 0.0
        %v1056 = vmax.f32 %v1050, 0.0
        %v1057 = vpack.c.bf16 %v1053, %v1053
        %v1058 = vpack.c.bf16 %v1054, %v1054
        %v1059 = vpack.c.bf16 %v1055, %v1055
        %v1060 = vpack.c.bf16 %v1056, %v1056
        %v1061 = vld [vmem:[#allocation8] sm:$0xff]
        %v1062 = vld [vmem:[#allocation8 + $0x8] sm:$0xf]
        %v1063 = vld [vmem:[#allocation8 + $0xc] sm:$0xff]
        %v1064 = vld [vmem:[#allocation8 + $0x14] sm:$0xf]
        %v1065 = vld [vmem:[#allocation8 + $0x18] sm:$0xff]
        %v1066 = vld [vmem:[#allocation8 + $0x20] sm:$0xf]
        %v1067 = vld [vmem:[#allocation8 + $0x24] sm:$0xff]
        %v1068 = vld [vmem:[#allocation8 + $0x2c] sm:$0xf]
        %v1069 = vld [vmem:[#allocation8 + $0x30] sm:$0xff]
        %v1070 = vld [vmem:[#allocation8 + $0x38] sm:$0xf]
        %v1071 = vld [vmem:[#allocation8 + $0x3c] sm:$0xff]
        %v1072 = vld [vmem:[#allocation8 + $0x44] sm:$0xf]
        %v1073 = vld [vmem:[#allocation8 + $0x48] sm:$0xff]
        %v1074 = vld [vmem:[#allocation8 + $0x50] sm:$0xf]
        %v1075 = vld [vmem:[#allocation8 + $0x54] sm:$0xff]
        %v1076 = vld [vmem:[#allocation8 + $0x5c] sm:$0xf]
        %v1077 = vld [vmem:[#allocation8 + $0x60] sm:$0xff]
        %v1078 = vld [vmem:[#allocation8 + $0x68] sm:$0xf]
        %v1079 = vld [vmem:[#allocation8 + $0x6c] sm:$0xff]
        %v1080 = vld [vmem:[#allocation8 + $0x74] sm:$0xf]
        %v1081 = vld [vmem:[#allocation8 + $0x78] sm:$0xff]
        %v1082 = vld [vmem:[#allocation8 + $0x80] sm:$0xf]
        %v1083 = vld [vmem:[#allocation8 + $0x84] sm:$0xff]
        %v1084 = vld [vmem:[#allocation8 + $0x8c] sm:$0xf]
        %v1085 = vld [vmem:[#allocation8 + $0x90] sm:$0xff]
        %v1086 = vld [vmem:[#allocation8 + $0x98] sm:$0xf]
        %v1087 = vld [vmem:[#allocation8 + $0x9c] sm:$0xff]
        %v1088 = vld [vmem:[#allocation8 + $0xa4] sm:$0xf]
        %v1089 = vld [vmem:[#allocation8 + $0xa8] sm:$0xff]
        %v1090 = vld [vmem:[#allocation8 + $0xb0] sm:$0xf]
        %v1091 = vld [vmem:[#allocation8 + $0xb4] sm:$0xff]
        %v1092 = vld [vmem:[#allocation8 + $0xbc] sm:$0xf]
        %v1093 = vld [vmem:[#allocation8 + $0xc0] sm:$0xff]
        %v1094 = vld [vmem:[#allocation8 + $0xc8] sm:$0xf]
        %v1095 = vld [vmem:[#allocation8 + $0xcc] sm:$0xff]
        %v1096 = vld [vmem:[#allocation8 + $0xd4] sm:$0xf]
        %v1097 = vld [vmem:[#allocation8 + $0xd8] sm:$0xff]
        %v1098 = vld [vmem:[#allocation8 + $0xe0] sm:$0xf]
        %v1099 = vld [vmem:[#allocation8 + $0xe4] sm:$0xff]
        %v1100 = vld [vmem:[#allocation8 + $0xec] sm:$0xf]
        %v1101 = vld [vmem:[#allocation8 + $0xf0] sm:$0xff]
        %v1102 = vld [vmem:[#allocation8 + $0xf8] sm:$0xf]
        %v1103 = vld [vmem:[#allocation8 + $0xfc] sm:$0xff]
        %v1104 = vld [vmem:[#allocation8 + $0x104] sm:$0xf]
        %v1105 = vld [vmem:[#allocation8 + $0x108] sm:$0xff]
        %v1106 = vld [vmem:[#allocation8 + $0x110] sm:$0xf]
        %v1107 = vld [vmem:[#allocation8 + $0x114] sm:$0xff]
        %v1108 = vld [vmem:[#allocation8 + $0x11c] sm:$0xf]
        %v1109 = vld [vmem:[#allocation8 + $0x120] sm:$0xff]
        %v1110 = vld [vmem:[#allocation8 + $0x128] sm:$0xf]
        %v1111 = vld [vmem:[#allocation8 + $0x12c] sm:$0xff]
        %v1112 = vld [vmem:[#allocation8 + $0x134] sm:$0xf]
        %v1113 = vld [vmem:[#allocation8 + $0x138] sm:$0xff]
        %v1114 = vld [vmem:[#allocation8 + $0x140] sm:$0xf]
        %v1115 = vld [vmem:[#allocation8 + $0x144] sm:$0xff]
        %v1116 = vld [vmem:[#allocation8 + $0x14c] sm:$0xf]
        %v1117 = vld [vmem:[#allocation8 + $0x150] sm:$0xff]
        %v1118 = vld [vmem:[#allocation8 + $0x158] sm:$0xf]
        %v1119 = vld [vmem:[#allocation8 + $0x15c] sm:$0xff]
        %v1120 = vld [vmem:[#allocation8 + $0x164] sm:$0xf]
        %v1121 = vld [vmem:[#allocation8 + $0x168] sm:$0xff]
        %v1122 = vld [vmem:[#allocation8 + $0x170] sm:$0xf]
        %v1123 = vld [vmem:[#allocation8 + $0x174] sm:$0xff]
        %v1124 = vld [vmem:[#allocation8 + $0x17c] sm:$0xf]
        %v1125 = vld [vmem:[#allocation8 + $0x180] sm:$0xff]
        %v1126 = vld [vmem:[#allocation8 + $0x188] sm:$0xf]
        %v1127 = vld [vmem:[#allocation8 + $0x18c] sm:$0xff]
        %v1128 = vld [vmem:[#allocation8 + $0x194] sm:$0xf]
        %v1129 = vld [vmem:[#allocation8 + $0x198] sm:$0xff]
        %v1130 = vld [vmem:[#allocation8 + $0x1a0] sm:$0xf]
        %v1131 = vld [vmem:[#allocation8 + $0x1a4] sm:$0xff]
        %v1132 = vld [vmem:[#allocation8 + $0x1ac] sm:$0xf]
        %v1133 = vld [vmem:[#allocation8 + $0x1b0] sm:$0xff]
        %v1134 = vld [vmem:[#allocation8 + $0x1b8] sm:$0xf]
        %v1135 = vld [vmem:[#allocation8 + $0x1bc] sm:$0xff]
        %v1136 = vld [vmem:[#allocation8 + $0x1c4] sm:$0xf]
        %v1137 = vld [vmem:[#allocation8 + $0x1c8] sm:$0xff]
        %v1138 = vld [vmem:[#allocation8 + $0x1d0] sm:$0xf]
        %v1139 = vld [vmem:[#allocation8 + $0x1d4] sm:$0xff]
        %v1140 = vld [vmem:[#allocation8 + $0x1dc] sm:$0xf]
        %v1141 = vld [vmem:[#allocation8 + $0x1e0] sm:$0xff]
        %v1142 = vld [vmem:[#allocation8 + $0x1e8] sm:$0xf]
        %v1143 = vld [vmem:[#allocation8 + $0x1ec] sm:$0xff]
        %v1144 = vld [vmem:[#allocation8 + $0x1f4] sm:$0xf]
        %v1145 = vld [vmem:[#allocation8 + $0x1f8] sm:$0xff]
        %v1146 = vld [vmem:[#allocation8 + $0x200] sm:$0xf]
        %v1147 = vld [vmem:[#allocation8 + $0x204] sm:$0xff]
        %v1148 = vld [vmem:[#allocation8 + $0x20c] sm:$0xf]
        %v1149 = vld [vmem:[#allocation8 + $0x210] sm:$0xff]
        %v1150 = vld [vmem:[#allocation8 + $0x218] sm:$0xf]
        %v1151 = vld [vmem:[#allocation8 + $0x21c] sm:$0xff]
        %v1152 = vld [vmem:[#allocation8 + $0x224] sm:$0xf]
        %v1153 = vld [vmem:[#allocation8 + $0x228] sm:$0xff]
        %v1154 = vld [vmem:[#allocation8 + $0x230] sm:$0xf]
        %v1155 = vld [vmem:[#allocation8 + $0x234] sm:$0xff]
        %v1156 = vld [vmem:[#allocation8 + $0x23c] sm:$0xf]
        %v1157 = vld [vmem:[#allocation8 + $0x240] sm:$0xff]
        %v1158 = vld [vmem:[#allocation8 + $0x248] sm:$0xf]
        %v1159 = vld [vmem:[#allocation8 + $0x24c] sm:$0xff]
        %v1160 = vld [vmem:[#allocation8 + $0x254] sm:$0xf]
        %v1161 = vld [vmem:[#allocation8 + $0x258] sm:$0xff]
        %v1162 = vld [vmem:[#allocation8 + $0x260] sm:$0xf]
        %v1163 = vld [vmem:[#allocation8 + $0x264] sm:$0xff]
        %v1164 = vld [vmem:[#allocation8 + $0x26c] sm:$0xf]
        %v1165 = vld [vmem:[#allocation8 + $0x270] sm:$0xff]
        %v1166 = vld [vmem:[#allocation8 + $0x278] sm:$0xf]
        %v1167 = vld [vmem:[#allocation8 + $0x27c] sm:$0xff]
        %v1168 = vld [vmem:[#allocation8 + $0x284] sm:$0xf]
        %v1169 = vld [vmem:[#allocation8 + $0x288] sm:$0xff]
        %v1170 = vld [vmem:[#allocation8 + $0x290] sm:$0xf]
        %v1171 = vld [vmem:[#allocation8 + $0x294] sm:$0xff]
        %v1172 = vld [vmem:[#allocation8 + $0x29c] sm:$0xf]
        %v1173 = vld [vmem:[#allocation8 + $0x2a0] sm:$0xff]
        %v1174 = vld [vmem:[#allocation8 + $0x2a8] sm:$0xf]
        %v1175 = vld [vmem:[#allocation8 + $0x2ac] sm:$0xff]
        %v1176 = vld [vmem:[#allocation8 + $0x2b4] sm:$0xf]
        %v1177 = vld [vmem:[#allocation8 + $0x2b8] sm:$0xff]
        %v1178 = vld [vmem:[#allocation8 + $0x2c0] sm:$0xf]
        %v1179 = vld [vmem:[#allocation8 + $0x2c4] sm:$0xff]
        %v1180 = vld [vmem:[#allocation8 + $0x2cc] sm:$0xf]
        %v1181 = vld [vmem:[#allocation8 + $0x2d0] sm:$0xff]
        %v1182 = vld [vmem:[#allocation8 + $0x2d8] sm:$0xf]
        %v1183 = vld [vmem:[#allocation8 + $0x2dc] sm:$0xff]
        %v1184 = vld [vmem:[#allocation8 + $0x2e4] sm:$0xf]
        %v1185 = vld [vmem:[#allocation8 + $0x2e8] sm:$0xff]
        %v1186 = vld [vmem:[#allocation8 + $0x2f0] sm:$0xf]
        %v1187 = vld [vmem:[#allocation8 + $0x2f4] sm:$0xff]
        %v1188 = vld [vmem:[#allocation8 + $0x2fc] sm:$0xf]
        %v1189 = vld [vmem:[#allocation5 + $0x10] sm:$0xff]
        %v1190 = vld [vmem:[#allocation5 + $0x18] sm:$0xff]
        %v1191 = vld [vmem:[#allocation5 + $0x40] sm:$0xff]
        %v1192 = vld [vmem:[#allocation5 + $0x48] sm:$0xff]
        %v1193 = vld [vmem:[#allocation5 + $0x70] sm:$0xff]
        %v1194 = vld [vmem:[#allocation5 + $0x78] sm:$0xff]
        %v1195 = vld [vmem:[#allocation5 + $0xa0] sm:$0xff]
        %v1196 = vld [vmem:[#allocation5 + $0xa8] sm:$0xff]
        %v1197 = vld [vmem:[#allocation5 + $0xd0] sm:$0xff]
        %v1198 = vld [vmem:[#allocation5 + $0xd8] sm:$0xff]
        %v1199 = vld [vmem:[#allocation5 + $0x100] sm:$0xff]
        %v1200 = vld [vmem:[#allocation5 + $0x108] sm:$0xff]
        %v1201 = vld [vmem:[#allocation5 + $0x130] sm:$0xff]
        %v1202 = vld [vmem:[#allocation5 + $0x138] sm:$0xff]
        %v1203 = vld [vmem:[#allocation5 + $0x160] sm:$0xff]
        %v1204 = vld [vmem:[#allocation5 + $0x168] sm:$0xff]
        %v1205 = vld [vmem:[#allocation5 + $0x190] sm:$0xff]
        %v1206 = vld [vmem:[#allocation5 + $0x198] sm:$0xff]
        %v1207 = vld [vmem:[#allocation5 + $0x1c0] sm:$0xff]
        %v1208 = vld [vmem:[#allocation5 + $0x1c8] sm:$0xff]
        %v1209 = vld [vmem:[#allocation5 + $0x1f0] sm:$0xff]
        %v1210 = vld [vmem:[#allocation5 + $0x1f8] sm:$0xff]
        %v1211 = vld [vmem:[#allocation5 + $0x220] sm:$0xff]
        %v1212 = vld [vmem:[#allocation5 + $0x228] sm:$0xff]
        %v1213 = vld [vmem:[#allocation5 + $0x250] sm:$0xff]
        %v1214 = vld [vmem:[#allocation5 + $0x258] sm:$0xff]
        %v1215 = vld [vmem:[#allocation5 + $0x280] sm:$0xff]
        %v1216 = vld [vmem:[#allocation5 + $0x288] sm:$0xff]
        %v1217 = vld [vmem:[#allocation5 + $0x2b0] sm:$0xff]
        %v1218 = vld [vmem:[#allocation5 + $0x2b8] sm:$0xff]
        %v1219 = vld [vmem:[#allocation5 + $0x2e0] sm:$0xff]
        %v1220 = vld [vmem:[#allocation5 + $0x2e8] sm:$0xff]
        %v1221 = vld [vmem:[#allocation5 + $0x310] sm:$0xff]
        %v1222 = vld [vmem:[#allocation5 + $0x318] sm:$0xff]
        %v1223 = vld [vmem:[#allocation5 + $0x340] sm:$0xff]
        %v1224 = vld [vmem:[#allocation5 + $0x348] sm:$0xff]
        %v1225 = vld [vmem:[#allocation5 + $0x370] sm:$0xff]
        %v1226 = vld [vmem:[#allocation5 + $0x378] sm:$0xff]
        %v1227 = vld [vmem:[#allocation5 + $0x3a0] sm:$0xff]
        %v1228 = vld [vmem:[#allocation5 + $0x3a8] sm:$0xff]
        %v1229 = vld [vmem:[#allocation5 + $0x3d0] sm:$0xff]
        %v1230 = vld [vmem:[#allocation5 + $0x3d8] sm:$0xff]
        %v1231 = vld [vmem:[#allocation5 + $0x400] sm:$0xff]
        %v1232 = vld [vmem:[#allocation5 + $0x408] sm:$0xff]
        %v1233 = vld [vmem:[#allocation5 + $0x430] sm:$0xff]
        %v1234 = vld [vmem:[#allocation5 + $0x438] sm:$0xff]
        %v1235 = vld [vmem:[#allocation5 + $0x460] sm:$0xff]
        %v1236 = vld [vmem:[#allocation5 + $0x468] sm:$0xff]
        %v1237 = vld [vmem:[#allocation5 + $0x490] sm:$0xff]
        %v1238 = vld [vmem:[#allocation5 + $0x498] sm:$0xff]
        %v1239 = vld [vmem:[#allocation5 + $0x4c0] sm:$0xff]
        %v1240 = vld [vmem:[#allocation5 + $0x4c8] sm:$0xff]
        %v1241 = vld [vmem:[#allocation5 + $0x4f0] sm:$0xff]
        %v1242 = vld [vmem:[#allocation5 + $0x4f8] sm:$0xff]
        %v1243 = vld [vmem:[#allocation5 + $0x520] sm:$0xff]
        %v1244 = vld [vmem:[#allocation5 + $0x528] sm:$0xff]
        %v1245 = vld [vmem:[#allocation5 + $0x550] sm:$0xff]
        %v1246 = vld [vmem:[#allocation5 + $0x558] sm:$0xff]
        %v1247 = vld [vmem:[#allocation5 + $0x580] sm:$0xff]
        %v1248 = vld [vmem:[#allocation5 + $0x588] sm:$0xff]
        %v1249 = vld [vmem:[#allocation5 + $0x5b0] sm:$0xff]
        %v1250 = vld [vmem:[#allocation5 + $0x5b8] sm:$0xff]
        %v1251 = vld [vmem:[#allocation5 + $0x5e0] sm:$0xff]
        %v1252 = vld [vmem:[#allocation5 + $0x5e8] sm:$0xff]
        %v1253 = vld [vmem:[#allocation5 + $0x610] sm:$0xff]
        %v1254 = vld [vmem:[#allocation5 + $0x618] sm:$0xff]
        %v1255 = vld [vmem:[#allocation5 + $0x640] sm:$0xff]
        %v1256 = vld [vmem:[#allocation5 + $0x648] sm:$0xff]
        %v1257 = vld [vmem:[#allocation5 + $0x670] sm:$0xff]
        %v1258 = vld [vmem:[#allocation5 + $0x678] sm:$0xff]
        %v1259 = vld [vmem:[#allocation5 + $0x6a0] sm:$0xff]
        %v1260 = vld [vmem:[#allocation5 + $0x6a8] sm:$0xff]
        %v1261 = vld [vmem:[#allocation5 + $0x6d0] sm:$0xff]
        %v1262 = vld [vmem:[#allocation5 + $0x6d8] sm:$0xff]
        %v1263 = vld [vmem:[#allocation5 + $0x700] sm:$0xff]
        %v1264 = vld [vmem:[#allocation5 + $0x708] sm:$0xff]
        %v1265 = vld [vmem:[#allocation5 + $0x730] sm:$0xff]
        %v1266 = vld [vmem:[#allocation5 + $0x738] sm:$0xff]
        %v1267 = vld [vmem:[#allocation5 + $0x760] sm:$0xff]
        %v1268 = vld [vmem:[#allocation5 + $0x768] sm:$0xff]
        %v1269 = vld [vmem:[#allocation5 + $0x790] sm:$0xff]
        %v1270 = vld [vmem:[#allocation5 + $0x798] sm:$0xff]
        %v1271 = vld [vmem:[#allocation5 + $0x7c0] sm:$0xff]
        %v1272 = vld [vmem:[#allocation5 + $0x7c8] sm:$0xff]
        %v1273 = vld [vmem:[#allocation5 + $0x7f0] sm:$0xff]
        %v1274 = vld [vmem:[#allocation5 + $0x7f8] sm:$0xff]
        %v1275 = vld [vmem:[#allocation5 + $0x820] sm:$0xff]
        %v1276 = vld [vmem:[#allocation5 + $0x828] sm:$0xff]
        %v1277 = vld [vmem:[#allocation5 + $0x850] sm:$0xff]
        %v1278 = vld [vmem:[#allocation5 + $0x858] sm:$0xff]
        %v1279 = vld [vmem:[#allocation5 + $0x880] sm:$0xff]
        %v1280 = vld [vmem:[#allocation5 + $0x888] sm:$0xff]
        %v1281 = vld [vmem:[#allocation5 + $0x8b0] sm:$0xff]
        %v1282 = vld [vmem:[#allocation5 + $0x8b8] sm:$0xff]
        %v1283 = vld [vmem:[#allocation5 + $0x8e0] sm:$0xff]
        %v1284 = vld [vmem:[#allocation5 + $0x8e8] sm:$0xff]
        %v1285 = vld [vmem:[#allocation7 + $0x4] sm:$0xf]
        %v1287 = vperm.slane %v1285, 0
        %v1288 = vperm.slane %v1285, 1
        %v1289 = vperm.slane %v1285, 2
        %v1290 = vperm.slane %v1285, 3
        %v1391 = vunpack.c.l.b16 %v1189
        %v1392 = vunpack.c.h.b16 %v1189
        %v1393 = vunpack.c.l.b16 %v1190
        %v1394 = vunpack.c.h.b16 %v1190
        %v1395 = vunpack.c.l.b16 %v1191
        %v1396 = vunpack.c.h.b16 %v1191
        %v1397 = vunpack.c.l.b16 %v1192
        %v1398 = vunpack.c.h.b16 %v1192
        %v1399 = vunpack.c.l.b16 %v1193
        %v1400 = vunpack.c.h.b16 %v1193
        %v1401 = vunpack.c.l.b16 %v1194
        %v1402 = vunpack.c.h.b16 %v1194
        %v1403 = vunpack.c.l.b16 %v1195
        %v1404 = vunpack.c.h.b16 %v1195
        %v1405 = vunpack.c.l.b16 %v1196
        %v1406 = vunpack.c.h.b16 %v1196
        %v1407 = vunpack.c.l.b16 %v1197
        %v1408 = vunpack.c.h.b16 %v1197
        %v1409 = vunpack.c.l.b16 %v1198
        %v1410 = vunpack.c.h.b16 %v1198
        %v1411 = vunpack.c.l.b16 %v1199
        %v1412 = vunpack.c.h.b16 %v1199
        %v1413 = vunpack.c.l.b16 %v1200
        %v1414 = vunpack.c.h.b16 %v1200
        %v1415 = vunpack.c.l.b16 %v1201
        %v1416 = vunpack.c.h.b16 %v1201
        %v1417 = vunpack.c.l.b16 %v1202
        %v1418 = vunpack.c.h.b16 %v1202
        %v1419 = vunpack.c.l.b16 %v1203
        %v1420 = vunpack.c.h.b16 %v1203
        %v1421 = vunpack.c.l.b16 %v1204
        %v1422 = vunpack.c.h.b16 %v1204
        %v1423 = vunpack.c.l.b16 %v1205
        %v1424 = vunpack.c.h.b16 %v1205
        %v1425 = vunpack.c.l.b16 %v1206
        %v1426 = vunpack.c.h.b16 %v1206
        %v1427 = vunpack.c.l.b16 %v1207
        %v1428 = vunpack.c.h.b16 %v1207
        %v1429 = vunpack.c.l.b16 %v1208
        %v1430 = vunpack.c.h.b16 %v1208
        %v1431 = vunpack.c.l.b16 %v1209
        %v1432 = vunpack.c.h.b16 %v1209
        %v1433 = vunpack.c.l.b16 %v1210
        %v1434 = vunpack.c.h.b16 %v1210
        %v1435 = vunpack.c.l.b16 %v1211
        %v1436 = vunpack.c.h.b16 %v1211
        %v1437 = vunpack.c.l.b16 %v1212
        %v1438 = vunpack.c.h.b16 %v1212
        %v1439 = vunpack.c.l.b16 %v1213
        %v1440 = vunpack.c.h.b16 %v1213
        %v1441 = vunpack.c.l.b16 %v1214
        %v1442 = vunpack.c.h.b16 %v1214
        %v1443 = vunpack.c.l.b16 %v1215
        %v1444 = vunpack.c.h.b16 %v1215
        %v1445 = vunpack.c.l.b16 %v1216
        %v1446 = vunpack.c.h.b16 %v1216
        %v1447 = vunpack.c.l.b16 %v1217
        %v1448 = vunpack.c.h.b16 %v1217
        %v1449 = vunpack.c.l.b16 %v1218
        %v1450 = vunpack.c.h.b16 %v1218
        %v1451 = vunpack.c.l.b16 %v1219
        %v1452 = vunpack.c.h.b16 %v1219
        %v1453 = vunpack.c.l.b16 %v1220
        %v1454 = vunpack.c.h.b16 %v1220
        %v1455 = vunpack.c.l.b16 %v1221
        %v1456 = vunpack.c.h.b16 %v1221
        %v1457 = vunpack.c.l.b16 %v1222
        %v1458 = vunpack.c.h.b16 %v1222
        %v1459 = vunpack.c.l.b16 %v1223
        %v1460 = vunpack.c.h.b16 %v1223
        %v1461 = vunpack.c.l.b16 %v1224
        %v1462 = vunpack.c.h.b16 %v1224
        %v1463 = vunpack.c.l.b16 %v1225
        %v1464 = vunpack.c.h.b16 %v1225
        %v1465 = vunpack.c.l.b16 %v1226
        %v1466 = vunpack.c.h.b16 %v1226
        %v1467 = vunpack.c.l.b16 %v1227
        %v1468 = vunpack.c.h.b16 %v1227
        %v1469 = vunpack.c.l.b16 %v1228
        %v1470 = vunpack.c.h.b16 %v1228
        %v1471 = vunpack.c.l.b16 %v1229
        %v1472 = vunpack.c.h.b16 %v1229
        %v1473 = vunpack.c.l.b16 %v1230
        %v1474 = vunpack.c.h.b16 %v1230
        %v1475 = vunpack.c.l.b16 %v1231
        %v1476 = vunpack.c.h.b16 %v1231
        %v1477 = vunpack.c.l.b16 %v1232
        %v1478 = vunpack.c.h.b16 %v1232
        %v1479 = vunpack.c.l.b16 %v1233
        %v1480 = vunpack.c.h.b16 %v1233
        %v1481 = vunpack.c.l.b16 %v1234
        %v1482 = vunpack.c.h.b16 %v1234
        %v1483 = vunpack.c.l.b16 %v1235
        %v1484 = vunpack.c.h.b16 %v1235
        %v1485 = vunpack.c.l.b16 %v1236
        %v1486 = vunpack.c.h.b16 %v1236
        %v1487 = vunpack.c.l.b16 %v1237
        %v1488 = vunpack.c.h.b16 %v1237
        %v1489 = vunpack.c.l.b16 %v1238
        %v1490 = vunpack.c.h.b16 %v1238
        %v1491 = vunpack.c.l.b16 %v1239
        %v1492 = vunpack.c.h.b16 %v1239
        %v1493 = vunpack.c.l.b16 %v1240
        %v1494 = vunpack.c.h.b16 %v1240
        %v1495 = vunpack.c.l.b16 %v1241
        %v1496 = vunpack.c.h.b16 %v1241
        %v1497 = vunpack.c.l.b16 %v1242
        %v1498 = vunpack.c.h.b16 %v1242
        %v1499 = vunpack.c.l.b16 %v1243
        %v1500 = vunpack.c.h.b16 %v1243
        %v1501 = vunpack.c.l.b16 %v1244
        %v1502 = vunpack.c.h.b16 %v1244
        %v1503 = vunpack.c.l.b16 %v1245
        %v1504 = vunpack.c.h.b16 %v1245
        %v1505 = vunpack.c.l.b16 %v1246
        %v1506 = vunpack.c.h.b16 %v1246
        %v1507 = vunpack.c.l.b16 %v1247
        %v1508 = vunpack.c.h.b16 %v1247
        %v1509 = vunpack.c.l.b16 %v1248
        %v1510 = vunpack.c.h.b16 %v1248
        %v1511 = vunpack.c.l.b16 %v1249
        %v1512 = vunpack.c.h.b16 %v1249
        %v1513 = vunpack.c.l.b16 %v1250
        %v1514 = vunpack.c.h.b16 %v1250
        %v1515 = vunpack.c.l.b16 %v1251
        %v1516 = vunpack.c.h.b16 %v1251
        %v1517 = vunpack.c.l.b16 %v1252
        %v1518 = vunpack.c.h.b16 %v1252
        %v1519 = vunpack.c.l.b16 %v1253
        %v1520 = vunpack.c.h.b16 %v1253
        %v1521 = vunpack.c.l.b16 %v1254
        %v1522 = vunpack.c.h.b16 %v1254
        %v1523 = vunpack.c.l.b16 %v1255
        %v1524 = vunpack.c.h.b16 %v1255
        %v1525 = vunpack.c.l.b16 %v1256
        %v1526 = vunpack.c.h.b16 %v1256
        %v1527 = vunpack.c.l.b16 %v1257
        %v1528 = vunpack.c.h.b16 %v1257
        %v1529 = vunpack.c.l.b16 %v1258
        %v1530 = vunpack.c.h.b16 %v1258
        %v1531 = vunpack.c.l.b16 %v1259
        %v1532 = vunpack.c.h.b16 %v1259
        %v1533 = vunpack.c.l.b16 %v1260
        %v1534 = vunpack.c.h.b16 %v1260
        %v1535 = vunpack.c.l.b16 %v1261
        %v1536 = vunpack.c.h.b16 %v1261
        %v1537 = vunpack.c.l.b16 %v1262
        %v1538 = vunpack.c.h.b16 %v1262
        %v1539 = vunpack.c.l.b16 %v1263
        %v1540 = vunpack.c.h.b16 %v1263
        %v1541 = vunpack.c.l.b16 %v1264
        %v1542 = vunpack.c.h.b16 %v1264
        %v1543 = vunpack.c.l.b16 %v1265
        %v1544 = vunpack.c.h.b16 %v1265
        %v1545 = vunpack.c.l.b16 %v1266
        %v1546 = vunpack.c.h.b16 %v1266
        %v1547 = vunpack.c.l.b16 %v1267
        %v1548 = vunpack.c.h.b16 %v1267
        %v1549 = vunpack.c.l.b16 %v1268
        %v1550 = vunpack.c.h.b16 %v1268
        %v1551 = vunpack.c.l.b16 %v1269
        %v1552 = vunpack.c.h.b16 %v1269
        %v1553 = vunpack.c.l.b16 %v1270
        %v1554 = vunpack.c.h.b16 %v1270
        %v1555 = vunpack.c.l.b16 %v1271
        %v1556 = vunpack.c.h.b16 %v1271
        %v1557 = vunpack.c.l.b16 %v1272
        %v1558 = vunpack.c.h.b16 %v1272
        %v1559 = vunpack.c.l.b16 %v1273
        %v1560 = vunpack.c.h.b16 %v1273
        %v1561 = vunpack.c.l.b16 %v1274
        %v1562 = vunpack.c.h.b16 %v1274
        %v1563 = vunpack.c.l.b16 %v1275
        %v1564 = vunpack.c.h.b16 %v1275
        %v1565 = vunpack.c.l.b16 %v1276
        %v1566 = vunpack.c.h.b16 %v1276
        %v1567 = vunpack.c.l.b16 %v1277
        %v1568 = vunpack.c.h.b16 %v1277
        %v1569 = vunpack.c.l.b16 %v1278
        %v1570 = vunpack.c.h.b16 %v1278
        %v1571 = vunpack.c.l.b16 %v1279
        %v1572 = vunpack.c.h.b16 %v1279
        %v1573 = vunpack.c.l.b16 %v1280
        %v1574 = vunpack.c.h.b16 %v1280
        %v1575 = vunpack.c.l.b16 %v1281
        %v1576 = vunpack.c.h.b16 %v1281
        %v1577 = vunpack.c.l.b16 %v1282
        %v1578 = vunpack.c.h.b16 %v1282
        %v1579 = vunpack.c.l.b16 %v1283
        %v1580 = vunpack.c.h.b16 %v1283
        %v1581 = vunpack.c.l.b16 %v1284
        %v1582 = vunpack.c.h.b16 %v1284
        %v1583 = vpack.c.b16 %v1395, %v1391
        %v1584 = vpack.c.b16 %v1396, %v1392
        %v1585 = vpack.c.b16 %v1397, %v1393
        %v1586 = vpack.c.b16 %v1398, %v1394
        %v1587 = vpack.c.b16 %v1403, %v1399
        %v1588 = vpack.c.b16 %v1404, %v1400
        %v1589 = vpack.c.b16 %v1405, %v1401
        %v1590 = vpack.c.b16 %v1406, %v1402
        %v1591 = vpack.c.b16 %v1411, %v1407
        %v1592 = vpack.c.b16 %v1412, %v1408
        %v1593 = vpack.c.b16 %v1413, %v1409
        %v1594 = vpack.c.b16 %v1414, %v1410
        %v1595 = vpack.c.b16 %v1419, %v1415
        %v1596 = vpack.c.b16 %v1420, %v1416
        %v1597 = vpack.c.b16 %v1421, %v1417
        %v1598 = vpack.c.b16 %v1422, %v1418
        %v1599 = vpack.c.b16 %v1427, %v1423
        %v1600 = vpack.c.b16 %v1428, %v1424
        %v1601 = vpack.c.b16 %v1429, %v1425
        %v1602 = vpack.c.b16 %v1430, %v1426
        %v1603 = vpack.c.b16 %v1435, %v1431
        %v1604 = vpack.c.b16 %v1436, %v1432
        %v1605 = vpack.c.b16 %v1437, %v1433
        %v1606 = vpack.c.b16 %v1438, %v1434
        %v1607 = vpack.c.b16 %v1443, %v1439
        %v1608 = vpack.c.b16 %v1444, %v1440
        %v1609 = vpack.c.b16 %v1445, %v1441
        %v1610 = vpack.c.b16 %v1446, %v1442
        %v1611 = vpack.c.b16 %v1451, %v1447
        %v1612 = vpack.c.b16 %v1452, %v1448
        %v1613 = vpack.c.b16 %v1453, %v1449
        %v1614 = vpack.c.b16 %v1454, %v1450
        %v1615 = vpack.c.b16 %v1459, %v1455
        %v1616 = vpack.c.b16 %v1460, %v1456
        %v1617 = vpack.c.b16 %v1461, %v1457
        %v1618 = vpack.c.b16 %v1462, %v1458
        %v1619 = vpack.c.b16 %v1467, %v1463
        %v1620 = vpack.c.b16 %v1468, %v1464
        %v1621 = vpack.c.b16 %v1469, %v1465
        %v1622 = vpack.c.b16 %v1470, %v1466
        %v1623 = vpack.c.b16 %v1475, %v1471
        %v1624 = vpack.c.b16 %v1476, %v1472
        %v1625 = vpack.c.b16 %v1477, %v1473
        %v1626 = vpack.c.b16 %v1478, %v1474
        %v1627 = vpack.c.b16 %v1483, %v1479
        %v1628 = vpack.c.b16 %v1484, %v1480
        %v1629 = vpack.c.b16 %v1485, %v1481
        %v1630 = vpack.c.b16 %v1486, %v1482
        %v1631 = vpack.c.b16 %v1491, %v1487
        %v1632 = vpack.c.b16 %v1492, %v1488
        %v1633 = vpack.c.b16 %v1493, %v1489
        %v1634 = vpack.c.b16 %v1494, %v1490
        %v1635 = vpack.c.b16 %v1499, %v1495
        %v1636 = vpack.c.b16 %v1500, %v1496
        %v1637 = vpack.c.b16 %v1501, %v1497
        %v1638 = vpack.c.b16 %v1502, %v1498
        %v1639 = vpack.c.b16 %v1507, %v1503
        %v1640 = vpack.c.b16 %v1508, %v1504
        %v1641 = vpack.c.b16 %v1509, %v1505
        %v1642 = vpack.c.b16 %v1510, %v1506
        %v1643 = vpack.c.b16 %v1515, %v1511
        %v1644 = vpack.c.b16 %v1516, %v1512
        %v1645 = vpack.c.b16 %v1517, %v1513
        %v1646 = vpack.c.b16 %v1518, %v1514
        %v1647 = vpack.c.b16 %v1523, %v1519
        %v1648 = vpack.c.b16 %v1524, %v1520
        %v1649 = vpack.c.b16 %v1525, %v1521
        %v1650 = vpack.c.b16 %v1526, %v1522
        %v1651 = vpack.c.b16 %v1531, %v1527
        %v1652 = vpack.c.b16 %v1532, %v1528
        %v1653 = vpack.c.b16 %v1533, %v1529
        %v1654 = vpack.c.b16 %v1534, %v1530
        %v1655 = vpack.c.b16 %v1539, %v1535
        %v1656 = vpack.c.b16 %v1540, %v1536
        %v1657 = vpack.c.b16 %v1541, %v1537
        %v1658 = vpack.c.b16 %v1542, %v1538
        %v1659 = vpack.c.b16 %v1547, %v1543
        %v1660 = vpack.c.b16 %v1548, %v1544
        %v1661 = vpack.c.b16 %v1549, %v1545
        %v1662 = vpack.c.b16 %v1550, %v1546
        %v1663 = vpack.c.b16 %v1555, %v1551
        %v1664 = vpack.c.b16 %v1556, %v1552
        %v1665 = vpack.c.b16 %v1557, %v1553
        %v1666 = vpack.c.b16 %v1558, %v1554
        %v1667 = vpack.c.b16 %v1563, %v1559
        %v1668 = vpack.c.b16 %v1564, %v1560
        %v1669 = vpack.c.b16 %v1565, %v1561
        %v1670 = vpack.c.b16 %v1566, %v1562
        %v1671 = vpack.c.b16 %v1571, %v1567
        %v1672 = vpack.c.b16 %v1572, %v1568
        %v1673 = vpack.c.b16 %v1573, %v1569
        %v1674 = vpack.c.b16 %v1574, %v1570
        %v1675 = vpack.c.b16 %v1579, %v1575
        %v1676 = vpack.c.b16 %v1580, %v1576
        %v1677 = vpack.c.b16 %v1581, %v1577
        %v1678 = vpack.c.b16 %v1582, %v1578
        %1775 = vmatpush.bf16.msra.mxu0 %v1611
        %1776 = vmatpush.bf16.msra.mxu0 %v1607
        %1777 = vmatpush.bf16.msra.mxu0 %v1603
        %1778 = vmatpush.bf16.msra.mxu0 %v1599
        %1779 = vmatpush.bf16.msra.mxu0 %v1595
        %1780 = vmatpush.bf16.msra.mxu0 %v1591
        %1781 = vmatpush.bf16.msra.mxu0 %v1587
        %1782 = vmatpush.bf16.msra.mxu0 %v1583
        %1783 = vmatmul.bf16.gmra.mxu0 %v308
        %v1784 = vpop.f32.mrf.mxu0
        %v1785 = vadd.f32 %v1287, %v1784
        %v1786 = vpop.f32.mrf.mxu0
        %1787 = vdwg.mxu0
        %1788 = vmatpush.bf16.msra.mxu0 %v1643
        %1789 = vmatpush.bf16.msra.mxu0 %v1639
        %1790 = vmatpush.bf16.msra.mxu0 %v1635
        %1791 = vmatpush.bf16.msra.mxu0 %v1631
        %1792 = vmatpush.bf16.msra.mxu0 %v1627
        %1793 = vmatpush.bf16.msra.mxu0 %v1623
        %1794 = vmatpush.bf16.msra.mxu0 %v1619
        %1795 = vmatpush.bf16.msra.mxu0 %v1615
        %1796 = vmatmul.bf16.gmra.mxu0 %v309
        %v1797 = vpop.f32.mrf.mxu0
        %v1798 = vadd.f32 %v1785, %v1797
        %v1799 = vpop.f32.mrf.mxu0
        %1800 = vdwg.mxu0
        %1801 = vmatpush.bf16.msra.mxu0 %v1675
        %1802 = vmatpush.bf16.msra.mxu0 %v1671
        %1803 = vmatpush.bf16.msra.mxu0 %v1667
        %1804 = vmatpush.bf16.msra.mxu0 %v1663
        %1805 = vmatpush.bf16.msra.mxu0 %v1659
        %1806 = vmatpush.bf16.msra.mxu0 %v1655
        %1807 = vmatpush.bf16.msra.mxu0 %v1651
        %1808 = vmatpush.bf16.msra.mxu0 %v1647
        %1809 = vmatmul.bf16.gmra.mxu0 %v310
        %v1810 = vpop.f32.mrf.mxu0
        %v1811 = vadd.f32 %v1798, %v1810
        %v1812 = vpop.f32.mrf.mxu0
        %1813 = vdwg.mxu0
        %1814 = vmatpush.bf16.msra.mxu0 %v1612
        %1815 = vmatpush.bf16.msra.mxu0 %v1608
        %1816 = vmatpush.bf16.msra.mxu0 %v1604
        %1817 = vmatpush.bf16.msra.mxu0 %v1600
        %1818 = vmatpush.bf16.msra.mxu0 %v1596
        %1819 = vmatpush.bf16.msra.mxu0 %v1592
        %1820 = vmatpush.bf16.msra.mxu0 %v1588
        %1821 = vmatpush.bf16.msra.mxu0 %v1584
        %1822 = vmatmul.bf16.gmra.mxu0 %v308
        %v1823 = vpop.f32.mrf.mxu0
        %v1824 = vadd.f32 %v1288, %v1823
        %v1825 = vpop.f32.mrf.mxu0
        %1826 = vdwg.mxu0
        %1827 = vmatpush.bf16.msra.mxu0 %v1644
        %1828 = vmatpush.bf16.msra.mxu0 %v1640
        %1829 = vmatpush.bf16.msra.mxu0 %v1636
        %1830 = vmatpush.bf16.msra.mxu0 %v1632
        %1831 = vmatpush.bf16.msra.mxu0 %v1628
        %1832 = vmatpush.bf16.msra.mxu0 %v1624
        %1833 = vmatpush.bf16.msra.mxu0 %v1620
        %1834 = vmatpush.bf16.msra.mxu0 %v1616
        %1835 = vmatmul.bf16.gmra.mxu0 %v309
        %v1836 = vpop.f32.mrf.mxu0
        %v1837 = vadd.f32 %v1824, %v1836
        %v1838 = vpop.f32.mrf.mxu0
        %1839 = vdwg.mxu0
        %1840 = vmatpush.bf16.msra.mxu0 %v1676
        %1841 = vmatpush.bf16.msra.mxu0 %v1672
        %1842 = vmatpush.bf16.msra.mxu0 %v1668
        %1843 = vmatpush.bf16.msra.mxu0 %v1664
        %1844 = vmatpush.bf16.msra.mxu0 %v1660
        %1845 = vmatpush.bf16.msra.mxu0 %v1656
        %1846 = vmatpush.bf16.msra.mxu0 %v1652
        %1847 = vmatpush.bf16.msra.mxu0 %v1648
        %1848 = vmatmul.bf16.gmra.mxu0 %v310
        %v1849 = vpop.f32.mrf.mxu0
        %v1850 = vadd.f32 %v1837, %v1849
        %v1851 = vpop.f32.mrf.mxu0
        %1852 = vdwg.mxu0
        %1853 = vmatpush.bf16.msra.mxu0 %v1613
        %1854 = vmatpush.bf16.msra.mxu0 %v1609
        %1855 = vmatpush.bf16.msra.mxu0 %v1605
        %1856 = vmatpush.bf16.msra.mxu0 %v1601
        %1857 = vmatpush.bf16.msra.mxu0 %v1597
        %1858 = vmatpush.bf16.msra.mxu0 %v1593
        %1859 = vmatpush.bf16.msra.mxu0 %v1589
        %1860 = vmatpush.bf16.msra.mxu0 %v1585
        %1861 = vmatmul.bf16.gmra.mxu0 %v308
        %v1862 = vpop.f32.mrf.mxu0
        %v1863 = vadd.f32 %v1289, %v1862
        %v1864 = vpop.f32.mrf.mxu0
        %1865 = vdwg.mxu0
        %1866 = vmatpush.bf16.msra.mxu0 %v1645
        %1867 = vmatpush.bf16.msra.mxu0 %v1641
        %1868 = vmatpush.bf16.msra.mxu0 %v1637
        %1869 = vmatpush.bf16.msra.mxu0 %v1633
        %1870 = vmatpush.bf16.msra.mxu0 %v1629
        %1871 = vmatpush.bf16.msra.mxu0 %v1625
        %1872 = vmatpush.bf16.msra.mxu0 %v1621
        %1873 = vmatpush.bf16.msra.mxu0 %v1617
        %1874 = vmatmul.bf16.gmra.mxu0 %v309
        %v1875 = vpop.f32.mrf.mxu0
        %v1876 = vadd.f32 %v1863, %v1875
        %v1877 = vpop.f32.mrf.mxu0
        %1878 = vdwg.mxu0
        %1879 = vmatpush.bf16.msra.mxu0 %v1677
        %1880 = vmatpush.bf16.msra.mxu0 %v1673
        %1881 = vmatpush.bf16.msra.mxu0 %v1669
        %1882 = vmatpush.bf16.msra.mxu0 %v1665
        %1883 = vmatpush.bf16.msra.mxu0 %v1661
        %1884 = vmatpush.bf16.msra.mxu0 %v1657
        %1885 = vmatpush.bf16.msra.mxu0 %v1653
        %1886 = vmatpush.bf16.msra.mxu0 %v1649
        %1887 = vmatmul.bf16.gmra.mxu0 %v310
        %v1888 = vpop.f32.mrf.mxu0
        %v1889 = vadd.f32 %v1876, %v1888
        %v1890 = vpop.f32.mrf.mxu0
        %1891 = vdwg.mxu0
        %1892 = vmatpush.bf16.msra.mxu0 %v1614
        %1893 = vmatpush.bf16.msra.mxu0 %v1610
        %1894 = vmatpush.bf16.msra.mxu0 %v1606
        %1895 = vmatpush.bf16.msra.mxu0 %v1602
        %1896 = vmatpush.bf16.msra.mxu0 %v1598
        %1897 = vmatpush.bf16.msra.mxu0 %v1594
        %1898 = vmatpush.bf16.msra.mxu0 %v1590
        %1899 = vmatpush.bf16.msra.mxu0 %v1586
        %1900 = vmatmul.bf16.gmra.mxu0 %v308
        %v1901 = vpop.f32.mrf.mxu0
        %v1902 = vadd.f32 %v1290, %v1901
        %v1903 = vpop.f32.mrf.mxu0
        %1904 = vdwg.mxu0
        %1905 = vmatpush.bf16.msra.mxu0 %v1646
        %1906 = vmatpush.bf16.msra.mxu0 %v1642
        %1907 = vmatpush.bf16.msra.mxu0 %v1638
        %1908 = vmatpush.bf16.msra.mxu0 %v1634
        %1909 = vmatpush.bf16.msra.mxu0 %v1630
        %1910 = vmatpush.bf16.msra.mxu0 %v1626
        %1911 = vmatpush.bf16.msra.mxu0 %v1622
        %1912 = vmatpush.bf16.msra.mxu0 %v1618
        %1913 = vmatmul.bf16.gmra.mxu0 %v309
        %v1914 = vpop.f32.mrf.mxu0
        %v1915 = vadd.f32 %v1902, %v1914
        %v1916 = vpop.f32.mrf.mxu0
        %1917 = vdwg.mxu0
        %1918 = vmatpush.bf16.msra.mxu0 %v1678
        %1919 = vmatpush.bf16.msra.mxu0 %v1674
        %1920 = vmatpush.bf16.msra.mxu0 %v1670
        %1921 = vmatpush.bf16.msra.mxu0 %v1666
        %1922 = vmatpush.bf16.msra.mxu0 %v1662
        %1923 = vmatpush.bf16.msra.mxu0 %v1658
        %1924 = vmatpush.bf16.msra.mxu0 %v1654
        %1925 = vmatpush.bf16.msra.mxu0 %v1650
        %1926 = vmatmul.bf16.gmra.mxu0 %v310
        %v1927 = vpop.f32.mrf.mxu0
        %v1928 = vadd.f32 %v1915, %v1927
        %v1929 = vpop.f32.mrf.mxu0
        %1930 = vdwg.mxu0
        %v1931 = vmax.f32 %v1811, 0.0
        %v1932 = vmax.f32 %v1850, 0.0
        %v1933 = vmax.f32 %v1889, 0.0
        %v1934 = vmax.f32 %v1928, 0.0
        %v1935 = vpack.c.bf16 %v1931, %v1931
        %v1936 = vpack.c.bf16 %v1932, %v1932
        %v1937 = vpack.c.bf16 %v1933, %v1933
        %v1938 = vpack.c.bf16 %v1934, %v1934
        %v1939 = vld [vmem:[#allocation8 + $0x300] sm:$0xff]
        %v1940 = vld [vmem:[#allocation8 + $0x308] sm:$0xf]
        %v1941 = vld [vmem:[#allocation8 + $0x30c] sm:$0xff]
        %v1942 = vld [vmem:[#allocation8 + $0x314] sm:$0xf]
        %v1943 = vld [vmem:[#allocation8 + $0x318] sm:$0xff]
        %v1944 = vld [vmem:[#allocation8 + $0x320] sm:$0xf]
        %v1945 = vld [vmem:[#allocation8 + $0x324] sm:$0xff]
        %v1946 = vld [vmem:[#allocation8 + $0x32c] sm:$0xf]
        %v1947 = vld [vmem:[#allocation8 + $0x330] sm:$0xff]
        %v1948 = vld [vmem:[#allocation8 + $0x338] sm:$0xf]
        %v1949 = vld [vmem:[#allocation8 + $0x33c] sm:$0xff]
        %v1950 = vld [vmem:[#allocation8 + $0x344] sm:$0xf]
        %v1951 = vld [vmem:[#allocation8 + $0x348] sm:$0xff]
        %v1952 = vld [vmem:[#allocation8 + $0x350] sm:$0xf]
        %v1953 = vld [vmem:[#allocation8 + $0x354] sm:$0xff]
        %v1954 = vld [vmem:[#allocation8 + $0x35c] sm:$0xf]
        %v1955 = vld [vmem:[#allocation8 + $0x360] sm:$0xff]
        %v1956 = vld [vmem:[#allocation8 + $0x368] sm:$0xf]
        %v1957 = vld [vmem:[#allocation8 + $0x36c] sm:$0xff]
        %v1958 = vld [vmem:[#allocation8 + $0x374] sm:$0xf]
        %v1959 = vld [vmem:[#allocation8 + $0x378] sm:$0xff]
        %v1960 = vld [vmem:[#allocation8 + $0x380] sm:$0xf]
        %v1961 = vld [vmem:[#allocation8 + $0x384] sm:$0xff]
        %v1962 = vld [vmem:[#allocation8 + $0x38c] sm:$0xf]
        %v1963 = vld [vmem:[#allocation8 + $0x390] sm:$0xff]
        %v1964 = vld [vmem:[#allocation8 + $0x398] sm:$0xf]
        %v1965 = vld [vmem:[#allocation8 + $0x39c] sm:$0xff]
        %v1966 = vld [vmem:[#allocation8 + $0x3a4] sm:$0xf]
        %v1967 = vld [vmem:[#allocation8 + $0x3a8] sm:$0xff]
        %v1968 = vld [vmem:[#allocation8 + $0x3b0] sm:$0xf]
        %v1969 = vld [vmem:[#allocation8 + $0x3b4] sm:$0xff]
        %v1970 = vld [vmem:[#allocation8 + $0x3bc] sm:$0xf]
        %v1971 = vld [vmem:[#allocation8 + $0x3c0] sm:$0xff]
        %v1972 = vld [vmem:[#allocation8 + $0x3c8] sm:$0xf]
        %v1973 = vld [vmem:[#allocation8 + $0x3cc] sm:$0xff]
        %v1974 = vld [vmem:[#allocation8 + $0x3d4] sm:$0xf]
        %v1975 = vld [vmem:[#allocation8 + $0x3d8] sm:$0xff]
        %v1976 = vld [vmem:[#allocation8 + $0x3e0] sm:$0xf]
        %v1977 = vld [vmem:[#allocation8 + $0x3e4] sm:$0xff]
        %v1978 = vld [vmem:[#allocation8 + $0x3ec] sm:$0xf]
        %v1979 = vld [vmem:[#allocation8 + $0x3f0] sm:$0xff]
        %v1980 = vld [vmem:[#allocation8 + $0x3f8] sm:$0xf]
        %v1981 = vld [vmem:[#allocation8 + $0x3fc] sm:$0xff]
        %v1982 = vld [vmem:[#allocation8 + $0x404] sm:$0xf]
        %v1983 = vld [vmem:[#allocation8 + $0x408] sm:$0xff]
        %v1984 = vld [vmem:[#allocation8 + $0x410] sm:$0xf]
        %v1985 = vld [vmem:[#allocation8 + $0x414] sm:$0xff]
        %v1986 = vld [vmem:[#allocation8 + $0x41c] sm:$0xf]
        %v1987 = vld [vmem:[#allocation8 + $0x420] sm:$0xff]
        %v1988 = vld [vmem:[#allocation8 + $0x428] sm:$0xf]
        %v1989 = vld [vmem:[#allocation8 + $0x42c] sm:$0xff]
        %v1990 = vld [vmem:[#allocation8 + $0x434] sm:$0xf]
        %v1991 = vld [vmem:[#allocation8 + $0x438] sm:$0xff]
        %v1992 = vld [vmem:[#allocation8 + $0x440] sm:$0xf]
        %v1993 = vld [vmem:[#allocation8 + $0x444] sm:$0xff]
        %v1994 = vld [vmem:[#allocation8 + $0x44c] sm:$0xf]
        %v1995 = vld [vmem:[#allocation8 + $0x450] sm:$0xff]
        %v1996 = vld [vmem:[#allocation8 + $0x458] sm:$0xf]
        %v1997 = vld [vmem:[#allocation8 + $0x45c] sm:$0xff]
        %v1998 = vld [vmem:[#allocation8 + $0x464] sm:$0xf]
        %v1999 = vld [vmem:[#allocation8 + $0x468] sm:$0xff]
        %v2000 = vld [vmem:[#allocation8 + $0x470] sm:$0xf]
        %v2001 = vld [vmem:[#allocation8 + $0x474] sm:$0xff]
        %v2002 = vld [vmem:[#allocation8 + $0x47c] sm:$0xf]
        %v2003 = vld [vmem:[#allocation8 + $0x480] sm:$0xff]
        %v2004 = vld [vmem:[#allocation8 + $0x488] sm:$0xf]
        %v2005 = vld [vmem:[#allocation8 + $0x48c] sm:$0xff]
        %v2006 = vld [vmem:[#allocation8 + $0x494] sm:$0xf]
        %v2007 = vld [vmem:[#allocation8 + $0x498] sm:$0xff]
        %v2008 = vld [vmem:[#allocation8 + $0x4a0] sm:$0xf]
        %v2009 = vld [vmem:[#allocation8 + $0x4a4] sm:$0xff]
        %v2010 = vld [vmem:[#allocation8 + $0x4ac] sm:$0xf]
        %v2011 = vld [vmem:[#allocation8 + $0x4b0] sm:$0xff]
        %v2012 = vld [vmem:[#allocation8 + $0x4b8] sm:$0xf]
        %v2013 = vld [vmem:[#allocation8 + $0x4bc] sm:$0xff]
        %v2014 = vld [vmem:[#allocation8 + $0x4c4] sm:$0xf]
        %v2015 = vld [vmem:[#allocation8 + $0x4c8] sm:$0xff]
        %v2016 = vld [vmem:[#allocation8 + $0x4d0] sm:$0xf]
        %v2017 = vld [vmem:[#allocation8 + $0x4d4] sm:$0xff]
        %v2018 = vld [vmem:[#allocation8 + $0x4dc] sm:$0xf]
        %v2019 = vld [vmem:[#allocation8 + $0x4e0] sm:$0xff]
        %v2020 = vld [vmem:[#allocation8 + $0x4e8] sm:$0xf]
        %v2021 = vld [vmem:[#allocation8 + $0x4ec] sm:$0xff]
        %v2022 = vld [vmem:[#allocation8 + $0x4f4] sm:$0xf]
        %v2023 = vld [vmem:[#allocation8 + $0x4f8] sm:$0xff]
        %v2024 = vld [vmem:[#allocation8 + $0x500] sm:$0xf]
        %v2025 = vld [vmem:[#allocation8 + $0x504] sm:$0xff]
        %v2026 = vld [vmem:[#allocation8 + $0x50c] sm:$0xf]
        %v2027 = vld [vmem:[#allocation8 + $0x510] sm:$0xff]
        %v2028 = vld [vmem:[#allocation8 + $0x518] sm:$0xf]
        %v2029 = vld [vmem:[#allocation8 + $0x51c] sm:$0xff]
        %v2030 = vld [vmem:[#allocation8 + $0x524] sm:$0xf]
        %v2031 = vld [vmem:[#allocation8 + $0x528] sm:$0xff]
        %v2032 = vld [vmem:[#allocation8 + $0x530] sm:$0xf]
        %v2033 = vld [vmem:[#allocation8 + $0x534] sm:$0xff]
        %v2034 = vld [vmem:[#allocation8 + $0x53c] sm:$0xf]
        %v2035 = vld [vmem:[#allocation8 + $0x540] sm:$0xff]
        %v2036 = vld [vmem:[#allocation8 + $0x548] sm:$0xf]
        %v2037 = vld [vmem:[#allocation8 + $0x54c] sm:$0xff]
        %v2038 = vld [vmem:[#allocation8 + $0x554] sm:$0xf]
        %v2039 = vld [vmem:[#allocation8 + $0x558] sm:$0xff]
        %v2040 = vld [vmem:[#allocation8 + $0x560] sm:$0xf]
        %v2041 = vld [vmem:[#allocation8 + $0x564] sm:$0xff]
        %v2042 = vld [vmem:[#allocation8 + $0x56c] sm:$0xf]
        %v2043 = vld [vmem:[#allocation8 + $0x570] sm:$0xff]
        %v2044 = vld [vmem:[#allocation8 + $0x578] sm:$0xf]
        %v2045 = vld [vmem:[#allocation8 + $0x57c] sm:$0xff]
        %v2046 = vld [vmem:[#allocation8 + $0x584] sm:$0xf]
        %v2047 = vld [vmem:[#allocation8 + $0x588] sm:$0xff]
        %v2048 = vld [vmem:[#allocation8 + $0x590] sm:$0xf]
        %v2049 = vld [vmem:[#allocation8 + $0x594] sm:$0xff]
        %v2050 = vld [vmem:[#allocation8 + $0x59c] sm:$0xf]
        %v2051 = vld [vmem:[#allocation8 + $0x5a0] sm:$0xff]
        %v2052 = vld [vmem:[#allocation8 + $0x5a8] sm:$0xf]
        %v2053 = vld [vmem:[#allocation8 + $0x5ac] sm:$0xff]
        %v2054 = vld [vmem:[#allocation8 + $0x5b4] sm:$0xf]
        %v2055 = vld [vmem:[#allocation8 + $0x5b8] sm:$0xff]
        %v2056 = vld [vmem:[#allocation8 + $0x5c0] sm:$0xf]
        %v2057 = vld [vmem:[#allocation8 + $0x5c4] sm:$0xff]
        %v2058 = vld [vmem:[#allocation8 + $0x5cc] sm:$0xf]
        %v2059 = vld [vmem:[#allocation8 + $0x5d0] sm:$0xff]
        %v2060 = vld [vmem:[#allocation8 + $0x5d8] sm:$0xf]
        %v2061 = vld [vmem:[#allocation8 + $0x5dc] sm:$0xff]
        %v2062 = vld [vmem:[#allocation8 + $0x5e4] sm:$0xf]
        %v2063 = vld [vmem:[#allocation8 + $0x5e8] sm:$0xff]
        %v2064 = vld [vmem:[#allocation8 + $0x5f0] sm:$0xf]
        %v2065 = vld [vmem:[#allocation8 + $0x5f4] sm:$0xff]
        %v2066 = vld [vmem:[#allocation8 + $0x5fc] sm:$0xf]
        %v2195 = vunpack.c.l.b16 %v1939
        %v2196 = vunpack.c.h.b16 %v1939
        %v2197 = vunpack.c.l.b16 %v1940
        %v2198 = vunpack.c.l.b16 %v1941
        %v2199 = vunpack.c.h.b16 %v1941
        %v2200 = vunpack.c.l.b16 %v1942
        %v2201 = vunpack.c.l.b16 %v1943
        %v2202 = vunpack.c.h.b16 %v1943
        %v2203 = vunpack.c.l.b16 %v1944
        %v2204 = vunpack.c.l.b16 %v1945
        %v2205 = vunpack.c.h.b16 %v1945
        %v2206 = vunpack.c.l.b16 %v1946
        %v2207 = vunpack.c.l.b16 %v1947
        %v2208 = vunpack.c.h.b16 %v1947
        %v2209 = vunpack.c.l.b16 %v1948
        %v2210 = vunpack.c.l.b16 %v1949
        %v2211 = vunpack.c.h.b16 %v1949
        %v2212 = vunpack.c.l.b16 %v1950
        %v2213 = vunpack.c.l.b16 %v1951
        %v2214 = vunpack.c.h.b16 %v1951
        %v2215 = vunpack.c.l.b16 %v1952
        %v2216 = vunpack.c.l.b16 %v1953
        %v2217 = vunpack.c.h.b16 %v1953
        %v2218 = vunpack.c.l.b16 %v1954
        %v2219 = vunpack.c.l.b16 %v1955
        %v2220 = vunpack.c.h.b16 %v1955
        %v2221 = vunpack.c.l.b16 %v1956
        %v2222 = vunpack.c.l.b16 %v1957
        %v2223 = vunpack.c.h.b16 %v1957
        %v2224 = vunpack.c.l.b16 %v1958
        %v2225 = vunpack.c.l.b16 %v1959
        %v2226 = vunpack.c.h.b16 %v1959
        %v2227 = vunpack.c.l.b16 %v1960
        %v2228 = vunpack.c.l.b16 %v1961
        %v2229 = vunpack.c.h.b16 %v1961
        %v2230 = vunpack.c.l.b16 %v1962
        %v2231 = vunpack.c.l.b16 %v1963
        %v2232 = vunpack.c.h.b16 %v1963
        %v2233 = vunpack.c.l.b16 %v1964
        %v2234 = vunpack.c.l.b16 %v1965
        %v2235 = vunpack.c.h.b16 %v1965
        %v2236 = vunpack.c.l.b16 %v1966
        %v2237 = vunpack.c.l.b16 %v1967
        %v2238 = vunpack.c.h.b16 %v1967
        %v2239 = vunpack.c.l.b16 %v1968
        %v2240 = vunpack.c.l.b16 %v1969
        %v2241 = vunpack.c.h.b16 %v1969
        %v2242 = vunpack.c.l.b16 %v1970
        %v2243 = vunpack.c.l.b16 %v1971
        %v2244 = vunpack.c.h.b16 %v1971
        %v2245 = vunpack.c.l.b16 %v1972
        %v2246 = vunpack.c.l.b16 %v1973
        %v2247 = vunpack.c.h.b16 %v1973
        %v2248 = vunpack.c.l.b16 %v1974
        %v2249 = vunpack.c.l.b16 %v1975
        %v2250 = vunpack.c.h.b16 %v1975
        %v2251 = vunpack.c.l.b16 %v1976
        %v2252 = vunpack.c.l.b16 %v1977
        %v2253 = vunpack.c.h.b16 %v1977
        %v2254 = vunpack.c.l.b16 %v1978
        %v2255 = vunpack.c.l.b16 %v1979
        %v2256 = vunpack.c.h.b16 %v1979
        %v2257 = vunpack.c.l.b16 %v1980
        %v2258 = vunpack.c.l.b16 %v1981
        %v2259 = vunpack.c.h.b16 %v1981
        %v2260 = vunpack.c.l.b16 %v1982
        %v2261 = vunpack.c.l.b16 %v1983
        %v2262 = vunpack.c.h.b16 %v1983
        %v2263 = vunpack.c.l.b16 %v1984
        %v2264 = vunpack.c.l.b16 %v1985
        %v2265 = vunpack.c.h.b16 %v1985
        %v2266 = vunpack.c.l.b16 %v1986
        %v2267 = vunpack.c.l.b16 %v1987
        %v2268 = vunpack.c.h.b16 %v1987
        %v2269 = vunpack.c.l.b16 %v1988
        %v2270 = vunpack.c.l.b16 %v1989
        %v2271 = vunpack.c.h.b16 %v1989
        %v2272 = vunpack.c.l.b16 %v1990
        %v2273 = vunpack.c.l.b16 %v1991
        %v2274 = vunpack.c.h.b16 %v1991
        %v2275 = vunpack.c.l.b16 %v1992
        %v2276 = vunpack.c.l.b16 %v1993
        %v2277 = vunpack.c.h.b16 %v1993
        %v2278 = vunpack.c.l.b16 %v1994
        %v2279 = vunpack.c.l.b16 %v1995
        %v2280 = vunpack.c.h.b16 %v1995
        %v2281 = vunpack.c.l.b16 %v1996
        %v2282 = vunpack.c.l.b16 %v1997
        %v2283 = vunpack.c.h.b16 %v1997
        %v2284 = vunpack.c.l.b16 %v1998
        %v2285 = vunpack.c.l.b16 %v1999
        %v2286 = vunpack.c.h.b16 %v1999
        %v2287 = vunpack.c.l.b16 %v2000
        %v2288 = vunpack.c.l.b16 %v2001
        %v2289 = vunpack.c.h.b16 %v2001
        %v2290 = vunpack.c.l.b16 %v2002
        %v2291 = vunpack.c.l.b16 %v2003
        %v2292 = vunpack.c.h.b16 %v2003
        %v2293 = vunpack.c.l.b16 %v2004
        %v2294 = vunpack.c.l.b16 %v2005
        %v2295 = vunpack.c.h.b16 %v2005
        %v2296 = vunpack.c.l.b16 %v2006
        %v2297 = vunpack.c.l.b16 %v2007
        %v2298 = vunpack.c.h.b16 %v2007
        %v2299 = vunpack.c.l.b16 %v2008
        %v2300 = vunpack.c.l.b16 %v2009
        %v2301 = vunpack.c.h.b16 %v2009
        %v2302 = vunpack.c.l.b16 %v2010
        %v2303 = vunpack.c.l.b16 %v2011
        %v2304 = vunpack.c.h.b16 %v2011
        %v2305 = vunpack.c.l.b16 %v2012
        %v2306 = vunpack.c.l.b16 %v2013
        %v2307 = vunpack.c.h.b16 %v2013
        %v2308 = vunpack.c.l.b16 %v2014
        %v2309 = vunpack.c.l.b16 %v2015
        %v2310 = vunpack.c.h.b16 %v2015
        %v2311 = vunpack.c.l.b16 %v2016
        %v2312 = vunpack.c.l.b16 %v2017
        %v2313 = vunpack.c.h.b16 %v2017
        %v2314 = vunpack.c.l.b16 %v2018
        %v2315 = vunpack.c.l.b16 %v2019
        %v2316 = vunpack.c.h.b16 %v2019
        %v2317 = vunpack.c.l.b16 %v2020
        %v2318 = vunpack.c.l.b16 %v2021
        %v2319 = vunpack.c.h.b16 %v2021
        %v2320 = vunpack.c.l.b16 %v2022
        %v2321 = vunpack.c.l.b16 %v2023
        %v2322 = vunpack.c.h.b16 %v2023
        %v2323 = vunpack.c.l.b16 %v2024
        %v2324 = vunpack.c.l.b16 %v2025
        %v2325 = vunpack.c.h.b16 %v2025
        %v2326 = vunpack.c.l.b16 %v2026
        %v2327 = vunpack.c.l.b16 %v2027
        %v2328 = vunpack.c.h.b16 %v2027
        %v2329 = vunpack.c.l.b16 %v2028
        %v2330 = vunpack.c.l.b16 %v2029
        %v2331 = vunpack.c.h.b16 %v2029
        %v2332 = vunpack.c.l.b16 %v2030
        %v2333 = vunpack.c.l.b16 %v2031
        %v2334 = vunpack.c.h.b16 %v2031
        %v2335 = vunpack.c.l.b16 %v2032
        %v2336 = vunpack.c.l.b16 %v2033
        %v2337 = vunpack.c.h.b16 %v2033
        %v2338 = vunpack.c.l.b16 %v2034
        %v2339 = vunpack.c.l.b16 %v2035
        %v2340 = vunpack.c.h.b16 %v2035
        %v2341 = vunpack.c.l.b16 %v2036
        %v2342 = vunpack.c.l.b16 %v2037
        %v2343 = vunpack.c.h.b16 %v2037
        %v2344 = vunpack.c.l.b16 %v2038
        %v2345 = vunpack.c.l.b16 %v2039
        %v2346 = vunpack.c.h.b16 %v2039
        %v2347 = vunpack.c.l.b16 %v2040
        %v2348 = vunpack.c.l.b16 %v2041
        %v2349 = vunpack.c.h.b16 %v2041
        %v2350 = vunpack.c.l.b16 %v2042
        %v2351 = vunpack.c.l.b16 %v2043
        %v2352 = vunpack.c.h.b16 %v2043
        %v2353 = vunpack.c.l.b16 %v2044
        %v2354 = vunpack.c.l.b16 %v2045
        %v2355 = vunpack.c.h.b16 %v2045
        %v2356 = vunpack.c.l.b16 %v2046
        %v2357 = vunpack.c.l.b16 %v2047
        %v2358 = vunpack.c.h.b16 %v2047
        %v2359 = vunpack.c.l.b16 %v2048
        %v2360 = vunpack.c.l.b16 %v2049
        %v2361 = vunpack.c.h.b16 %v2049
        %v2362 = vunpack.c.l.b16 %v2050
        %v2363 = vunpack.c.l.b16 %v2051
        %v2364 = vunpack.c.h.b16 %v2051
        %v2365 = vunpack.c.l.b16 %v2052
        %v2366 = vunpack.c.l.b16 %v2053
        %v2367 = vunpack.c.h.b16 %v2053
        %v2368 = vunpack.c.l.b16 %v2054
        %v2369 = vunpack.c.l.b16 %v2055
        %v2370 = vunpack.c.h.b16 %v2055
        %v2371 = vunpack.c.l.b16 %v2056
        %v2372 = vunpack.c.l.b16 %v2057
        %v2373 = vunpack.c.h.b16 %v2057
        %v2374 = vunpack.c.l.b16 %v2058
        %v2375 = vunpack.c.l.b16 %v2059
        %v2376 = vunpack.c.h.b16 %v2059
        %v2377 = vunpack.c.l.b16 %v2060
        %v2378 = vunpack.c.l.b16 %v2061
        %v2379 = vunpack.c.h.b16 %v2061
        %v2380 = vunpack.c.l.b16 %v2062
        %v2381 = vunpack.c.l.b16 %v2063
        %v2382 = vunpack.c.h.b16 %v2063
        %v2383 = vunpack.c.l.b16 %v2064
        %v2384 = vunpack.c.l.b16 %v2065
        %v2385 = vunpack.c.h.b16 %v2065
        %v2386 = vunpack.c.l.b16 %v2066
        %v2387 = vpack.c.b16 %v2198, %v2195
        %v2388 = vpack.c.b16 %v2199, %v2196
        %v2389 = vpack.c.b16 %v2200, %v2197
        %v2390 = vpack.c.b16 %v2204, %v2201
        %v2391 = vpack.c.b16 %v2205, %v2202
        %v2392 = vpack.c.b16 %v2206, %v2203
        %v2393 = vpack.c.b16 %v2210, %v2207
        %v2394 = vpack.c.b16 %v2211, %v2208
        %v2395 = vpack.c.b16 %v2212, %v2209
        %v2396 = vpack.c.b16 %v2216, %v2213
        %v2397 = vpack.c.b16 %v2217, %v2214
        %v2398 = vpack.c.b16 %v2218, %v2215
        %v2399 = vpack.c.b16 %v2222, %v2219
        %v2400 = vpack.c.b16 %v2223, %v2220
        %v2401 = vpack.c.b16 %v2224, %v2221
        %v2402 = vpack.c.b16 %v2228, %v2225
        %v2403 = vpack.c.b16 %v2229, %v2226
        %v2404 = vpack.c.b16 %v2230, %v2227
        %v2405 = vpack.c.b16 %v2234, %v2231
        %v2406 = vpack.c.b16 %v2235, %v2232
        %v2407 = vpack.c.b16 %v2236, %v2233
        %v2408 = vpack.c.b16 %v2240, %v2237
        %v2409 = vpack.c.b16 %v2241, %v2238
        %v2410 = vpack.c.b16 %v2242, %v2239
        %v2411 = vpack.c.b16 %v2246, %v2243
        %v2412 = vpack.c.b16 %v2247, %v2244
        %v2413 = vpack.c.b16 %v2248, %v2245
        %v2414 = vpack.c.b16 %v2252, %v2249
        %v2415 = vpack.c.b16 %v2253, %v2250
        %v2416 = vpack.c.b16 %v2254, %v2251
        %v2417 = vpack.c.b16 %v2258, %v2255
        %v2418 = vpack.c.b16 %v2259, %v2256
        %v2419 = vpack.c.b16 %v2260, %v2257
        %v2420 = vpack.c.b16 %v2264, %v2261
        %v2421 = vpack.c.b16 %v2265, %v2262
        %v2422 = vpack.c.b16 %v2266, %v2263
        %v2423 = vpack.c.b16 %v2270, %v2267
        %v2424 = vpack.c.b16 %v2271, %v2268
        %v2425 = vpack.c.b16 %v2272, %v2269
        %v2426 = vpack.c.b16 %v2276, %v2273
        %v2427 = vpack.c.b16 %v2277, %v2274
        %v2428 = vpack.c.b16 %v2278, %v2275
        %v2429 = vpack.c.b16 %v2282, %v2279
        %v2430 = vpack.c.b16 %v2283, %v2280
        %v2431 = vpack.c.b16 %v2284, %v2281
        %v2432 = vpack.c.b16 %v2288, %v2285
        %v2433 = vpack.c.b16 %v2289, %v2286
        %v2434 = vpack.c.b16 %v2290, %v2287
        %v2435 = vpack.c.b16 %v2294, %v2291
        %v2436 = vpack.c.b16 %v2295, %v2292
        %v2437 = vpack.c.b16 %v2296, %v2293
        %v2438 = vpack.c.b16 %v2300, %v2297
        %v2439 = vpack.c.b16 %v2301, %v2298
        %v2440 = vpack.c.b16 %v2302, %v2299
        %v2441 = vpack.c.b16 %v2306, %v2303
        %v2442 = vpack.c.b16 %v2307, %v2304
        %v2443 = vpack.c.b16 %v2308, %v2305
        %v2444 = vpack.c.b16 %v2312, %v2309
        %v2445 = vpack.c.b16 %v2313, %v2310
        %v2446 = vpack.c.b16 %v2314, %v2311
        %v2447 = vpack.c.b16 %v2318, %v2315
        %v2448 = vpack.c.b16 %v2319, %v2316
        %v2449 = vpack.c.b16 %v2320, %v2317
        %v2450 = vpack.c.b16 %v2324, %v2321
        %v2451 = vpack.c.b16 %v2325, %v2322
        %v2452 = vpack.c.b16 %v2326, %v2323
        %v2453 = vpack.c.b16 %v2330, %v2327
        %v2454 = vpack.c.b16 %v2331, %v2328
        %v2455 = vpack.c.b16 %v2332, %v2329
        %v2456 = vpack.c.b16 %v2336, %v2333
        %v2457 = vpack.c.b16 %v2337, %v2334
        %v2458 = vpack.c.b16 %v2338, %v2335
        %v2459 = vpack.c.b16 %v2342, %v2339
        %v2460 = vpack.c.b16 %v2343, %v2340
        %v2461 = vpack.c.b16 %v2344, %v2341
        %v2462 = vpack.c.b16 %v2348, %v2345
        %v2463 = vpack.c.b16 %v2349, %v2346
        %v2464 = vpack.c.b16 %v2350, %v2347
        %v2465 = vpack.c.b16 %v2354, %v2351
        %v2466 = vpack.c.b16 %v2355, %v2352
        %v2467 = vpack.c.b16 %v2356, %v2353
        %v2468 = vpack.c.b16 %v2360, %v2357
        %v2469 = vpack.c.b16 %v2361, %v2358
        %v2470 = vpack.c.b16 %v2362, %v2359
        %v2471 = vpack.c.b16 %v2366, %v2363
        %v2472 = vpack.c.b16 %v2367, %v2364
        %v2473 = vpack.c.b16 %v2368, %v2365
        %v2474 = vpack.c.b16 %v2372, %v2369
        %v2475 = vpack.c.b16 %v2373, %v2370
        %v2476 = vpack.c.b16 %v2374, %v2371
        %v2477 = vpack.c.b16 %v2378, %v2375
        %v2478 = vpack.c.b16 %v2379, %v2376
        %v2479 = vpack.c.b16 %v2380, %v2377
        %v2480 = vpack.c.b16 %v2384, %v2381
        %v2481 = vpack.c.b16 %v2385, %v2382
        %v2482 = vpack.c.b16 %v2386, %v2383
        %2579 = vmatpush.bf16.msra.mxu0 %v2408
        %2580 = vmatpush.bf16.msra.mxu0 %v2405
        %2581 = vmatpush.bf16.msra.mxu0 %v2402
        %2582 = vmatpush.bf16.msra.mxu0 %v2399
        %2583 = vmatpush.bf16.msra.mxu0 %v2396
        %2584 = vmatpush.bf16.msra.mxu0 %v2393
        %2585 = vmatpush.bf16.msra.mxu0 %v2390
        %2586 = vmatpush.bf16.msra.mxu0 %v2387
        %2587 = vmatmul.bf16.gmra.mxu0 %v1935
        %v2588 = vpop.f32.mrf.mxu0
        %v2589 = vadd.f32 0.0, %v2588
        %v2590 = vpop.f32.mrf.mxu0
        %2591 = vdwg.mxu0
        %2592 = vmatpush.bf16.msra.mxu0 %v2432
        %2593 = vmatpush.bf16.msra.mxu0 %v2429
        %2594 = vmatpush.bf16.msra.mxu0 %v2426
        %2595 = vmatpush.bf16.msra.mxu0 %v2423
        %2596 = vmatpush.bf16.msra.mxu0 %v2420
        %2597 = vmatpush.bf16.msra.mxu0 %v2417
        %2598 = vmatpush.bf16.msra.mxu0 %v2414
        %2599 = vmatpush.bf16.msra.mxu0 %v2411
        %2600 = vmatmul.bf16.gmra.mxu0 %v1936
        %v2601 = vpop.f32.mrf.mxu0
        %v2602 = vadd.f32 %v2589, %v2601
        %v2603 = vpop.f32.mrf.mxu0
        %2604 = vdwg.mxu0
        %2605 = vmatpush.bf16.msra.mxu0 %v2456
        %2606 = vmatpush.bf16.msra.mxu0 %v2453
        %2607 = vmatpush.bf16.msra.mxu0 %v2450
        %2608 = vmatpush.bf16.msra.mxu0 %v2447
        %2609 = vmatpush.bf16.msra.mxu0 %v2444
        %2610 = vmatpush.bf16.msra.mxu0 %v2441
        %2611 = vmatpush.bf16.msra.mxu0 %v2438
        %2612 = vmatpush.bf16.msra.mxu0 %v2435
        %2613 = vmatmul.bf16.gmra.mxu0 %v1937
        %v2614 = vpop.f32.mrf.mxu0
        %v2615 = vadd.f32 %v2602, %v2614
        %v2616 = vpop.f32.mrf.mxu0
        %2617 = vdwg.mxu0
        %2618 = vmatpush.bf16.msra.mxu0 %v2480
        %2619 = vmatpush.bf16.msra.mxu0 %v2477
        %2620 = vmatpush.bf16.msra.mxu0 %v2474
        %2621 = vmatpush.bf16.msra.mxu0 %v2471
        %2622 = vmatpush.bf16.msra.mxu0 %v2468
        %2623 = vmatpush.bf16.msra.mxu0 %v2465
        %2624 = vmatpush.bf16.msra.mxu0 %v2462
        %2625 = vmatpush.bf16.msra.mxu0 %v2459
        %2626 = vmatmul.bf16.gmra.mxu0 %v1938
        %v2627 = vpop.f32.mrf.mxu0
        %v2628 = vadd.f32 %v2615, %v2627
        %v2629 = vpop.f32.mrf.mxu0
        %2630 = vdwg.mxu0
        %2631 = vmatpush.bf16.msra.mxu0 %v2409
        %2632 = vmatpush.bf16.msra.mxu0 %v2406
        %2633 = vmatpush.bf16.msra.mxu0 %v2403
        %2634 = vmatpush.bf16.msra.mxu0 %v2400
        %2635 = vmatpush.bf16.msra.mxu0 %v2397
        %2636 = vmatpush.bf16.msra.mxu0 %v2394
        %2637 = vmatpush.bf16.msra.mxu0 %v2391
        %2638 = vmatpush.bf16.msra.mxu0 %v2388
        %2639 = vmatmul.bf16.gmra.mxu0 %v1935
        %v2640 = vpop.f32.mrf.mxu0
        %v2641 = vadd.f32 0.0, %v2640
        %v2642 = vpop.f32.mrf.mxu0
        %2643 = vdwg.mxu0
        %2644 = vmatpush.bf16.msra.mxu0 %v2433
        %2645 = vmatpush.bf16.msra.mxu0 %v2430
        %2646 = vmatpush.bf16.msra.mxu0 %v2427
        %2647 = vmatpush.bf16.msra.mxu0 %v2424
        %2648 = vmatpush.bf16.msra.mxu0 %v2421
        %2649 = vmatpush.bf16.msra.mxu0 %v2418
        %2650 = vmatpush.bf16.msra.mxu0 %v2415
        %2651 = vmatpush.bf16.msra.mxu0 %v2412
        %2652 = vmatmul.bf16.gmra.mxu0 %v1936
        %v2653 = vpop.f32.mrf.mxu0
        %v2654 = vadd.f32 %v2641, %v2653
        %v2655 = vpop.f32.mrf.mxu0
        %2656 = vdwg.mxu0
        %2657 = vmatpush.bf16.msra.mxu0 %v2457
        %2658 = vmatpush.bf16.msra.mxu0 %v2454
        %2659 = vmatpush.bf16.msra.mxu0 %v2451
        %2660 = vmatpush.bf16.msra.mxu0 %v2448
        %2661 = vmatpush.bf16.msra.mxu0 %v2445
        %2662 = vmatpush.bf16.msra.mxu0 %v2442
        %2663 = vmatpush.bf16.msra.mxu0 %v2439
        %2664 = vmatpush.bf16.msra.mxu0 %v2436
        %2665 = vmatmul.bf16.gmra.mxu0 %v1937
        %v2666 = vpop.f32.mrf.mxu0
        %v2667 = vadd.f32 %v2654, %v2666
        %v2668 = vpop.f32.mrf.mxu0
        %2669 = vdwg.mxu0
        %2670 = vmatpush.bf16.msra.mxu0 %v2481
        %2671 = vmatpush.bf16.msra.mxu0 %v2478
        %2672 = vmatpush.bf16.msra.mxu0 %v2475
        %2673 = vmatpush.bf16.msra.mxu0 %v2472
        %2674 = vmatpush.bf16.msra.mxu0 %v2469
        %2675 = vmatpush.bf16.msra.mxu0 %v2466
        %2676 = vmatpush.bf16.msra.mxu0 %v2463
        %2677 = vmatpush.bf16.msra.mxu0 %v2460
        %2678 = vmatmul.bf16.gmra.mxu0 %v1938
        %v2679 = vpop.f32.mrf.mxu0
        %v2680 = vadd.f32 %v2667, %v2679
        %v2681 = vpop.f32.mrf.mxu0
        %2682 = vdwg.mxu0
        %2683 = vmatpush.bf16.msra.mxu0 %v2410
        %2684 = vmatpush.bf16.msra.mxu0 %v2407
        %2685 = vmatpush.bf16.msra.mxu0 %v2404
        %2686 = vmatpush.bf16.msra.mxu0 %v2401
        %2687 = vmatpush.bf16.msra.mxu0 %v2398
        %2688 = vmatpush.bf16.msra.mxu0 %v2395
        %2689 = vmatpush.bf16.msra.mxu0 %v2392
        %2690 = vmatpush.bf16.msra.mxu0 %v2389
        %2691 = vmatmul.bf16.gmra.mxu0 %v1935
        %v2692 = vpop.f32.mrf.mxu0
        %v2693 = vadd.f32 0.0, %v2692
        %v2694 = vpop.f32.mrf.mxu0
        %2695 = vdwg.mxu0
        %2696 = vmatpush.bf16.msra.mxu0 %v2434
        %2697 = vmatpush.bf16.msra.mxu0 %v2431
        %2698 = vmatpush.bf16.msra.mxu0 %v2428
        %2699 = vmatpush.bf16.msra.mxu0 %v2425
        %2700 = vmatpush.bf16.msra.mxu0 %v2422
        %2701 = vmatpush.bf16.msra.mxu0 %v2419
        %2702 = vmatpush.bf16.msra.mxu0 %v2416
        %2703 = vmatpush.bf16.msra.mxu0 %v2413
        %2704 = vmatmul.bf16.gmra.mxu0 %v1936
        %v2705 = vpop.f32.mrf.mxu0
        %v2706 = vadd.f32 %v2693, %v2705
        %v2707 = vpop.f32.mrf.mxu0
        %2708 = vdwg.mxu0
        %2709 = vmatpush.bf16.msra.mxu0 %v2458
        %2710 = vmatpush.bf16.msra.mxu0 %v2455
        %2711 = vmatpush.bf16.msra.mxu0 %v2452
        %2712 = vmatpush.bf16.msra.mxu0 %v2449
        %2713 = vmatpush.bf16.msra.mxu0 %v2446
        %2714 = vmatpush.bf16.msra.mxu0 %v2443
        %2715 = vmatpush.bf16.msra.mxu0 %v2440
        %2716 = vmatpush.bf16.msra.mxu0 %v2437
        %2717 = vmatmul.bf16.gmra.mxu0 %v1937
        %v2718 = vpop.f32.mrf.mxu0
        %v2719 = vadd.f32 %v2706, %v2718
        %v2720 = vpop.f32.mrf.mxu0
        %2721 = vdwg.mxu0
        %2722 = vmatpush.bf16.msra.mxu0 %v2482
        %2723 = vmatpush.bf16.msra.mxu0 %v2479
        %2724 = vmatpush.bf16.msra.mxu0 %v2476
        %2725 = vmatpush.bf16.msra.mxu0 %v2473
        %2726 = vmatpush.bf16.msra.mxu0 %v2470
        %2727 = vmatpush.bf16.msra.mxu0 %v2467
        %2728 = vmatpush.bf16.msra.mxu0 %v2464
        %2729 = vmatpush.bf16.msra.mxu0 %v2461
        %2730 = vmatmul.bf16.gmra.mxu0 %v1938
        %v2731 = vpop.f32.mrf.mxu0
        %v2732 = vadd.f32 %v2719, %v2731
        %v2733 = vpop.f32.mrf.mxu0
        %2734 = vdwg.mxu0
        %v2863 = vunpack.c.l.b16 %v1061
        %v2864 = vunpack.c.h.b16 %v1061
        %v2865 = vunpack.c.l.b16 %v1062
        %v2866 = vunpack.c.l.b16 %v1063
        %v2867 = vunpack.c.h.b16 %v1063
        %v2868 = vunpack.c.l.b16 %v1064
        %v2869 = vunpack.c.l.b16 %v1065
        %v2870 = vunpack.c.h.b16 %v1065
        %v2871 = vunpack.c.l.b16 %v1066
        %v2872 = vunpack.c.l.b16 %v1067
        %v2873 = vunpack.c.h.b16 %v1067
        %v2874 = vunpack.c.l.b16 %v1068
        %v2875 = vunpack.c.l.b16 %v1069
        %v2876 = vunpack.c.h.b16 %v1069
        %v2877 = vunpack.c.l.b16 %v1070
        %v2878 = vunpack.c.l.b16 %v1071
        %v2879 = vunpack.c.h.b16 %v1071
        %v2880 = vunpack.c.l.b16 %v1072
        %v2881 = vunpack.c.l.b16 %v1073
        %v2882 = vunpack.c.h.b16 %v1073
        %v2883 = vunpack.c.l.b16 %v1074
        %v2884 = vunpack.c.l.b16 %v1075
        %v2885 = vunpack.c.h.b16 %v1075
        %v2886 = vunpack.c.l.b16 %v1076
        %v2887 = vunpack.c.l.b16 %v1077
        %v2888 = vunpack.c.h.b16 %v1077
        %v2889 = vunpack.c.l.b16 %v1078
        %v2890 = vunpack.c.l.b16 %v1079
        %v2891 = vunpack.c.h.b16 %v1079
        %v2892 = vunpack.c.l.b16 %v1080
        %v2893 = vunpack.c.l.b16 %v1081
        %v2894 = vunpack.c.h.b16 %v1081
        %v2895 = vunpack.c.l.b16 %v1082
        %v2896 = vunpack.c.l.b16 %v1083
        %v2897 = vunpack.c.h.b16 %v1083
        %v2898 = vunpack.c.l.b16 %v1084
        %v2899 = vunpack.c.l.b16 %v1085
        %v2900 = vunpack.c.h.b16 %v1085
        %v2901 = vunpack.c.l.b16 %v1086
        %v2902 = vunpack.c.l.b16 %v1087
        %v2903 = vunpack.c.h.b16 %v1087
        %v2904 = vunpack.c.l.b16 %v1088
        %v2905 = vunpack.c.l.b16 %v1089
        %v2906 = vunpack.c.h.b16 %v1089
        %v2907 = vunpack.c.l.b16 %v1090
        %v2908 = vunpack.c.l.b16 %v1091
        %v2909 = vunpack.c.h.b16 %v1091
        %v2910 = vunpack.c.l.b16 %v1092
        %v2911 = vunpack.c.l.b16 %v1093
        %v2912 = vunpack.c.h.b16 %v1093
        %v2913 = vunpack.c.l.b16 %v1094
        %v2914 = vunpack.c.l.b16 %v1095
        %v2915 = vunpack.c.h.b16 %v1095
        %v2916 = vunpack.c.l.b16 %v1096
        %v2917 = vunpack.c.l.b16 %v1097
        %v2918 = vunpack.c.h.b16 %v1097
        %v2919 = vunpack.c.l.b16 %v1098
        %v2920 = vunpack.c.l.b16 %v1099
        %v2921 = vunpack.c.h.b16 %v1099
        %v2922 = vunpack.c.l.b16 %v1100
        %v2923 = vunpack.c.l.b16 %v1101
        %v2924 = vunpack.c.h.b16 %v1101
        %v2925 = vunpack.c.l.b16 %v1102
        %v2926 = vunpack.c.l.b16 %v1103
        %v2927 = vunpack.c.h.b16 %v1103
        %v2928 = vunpack.c.l.b16 %v1104
        %v2929 = vunpack.c.l.b16 %v1105
        %v2930 = vunpack.c.h.b16 %v1105
        %v2931 = vunpack.c.l.b16 %v1106
        %v2932 = vunpack.c.l.b16 %v1107
        %v2933 = vunpack.c.h.b16 %v1107
        %v2934 = vunpack.c.l.b16 %v1108
        %v2935 = vunpack.c.l.b16 %v1109
        %v2936 = vunpack.c.h.b16 %v1109
        %v2937 = vunpack.c.l.b16 %v1110
        %v2938 = vunpack.c.l.b16 %v1111
        %v2939 = vunpack.c.h.b16 %v1111
        %v2940 = vunpack.c.l.b16 %v1112
        %v2941 = vunpack.c.l.b16 %v1113
        %v2942 = vunpack.c.h.b16 %v1113
        %v2943 = vunpack.c.l.b16 %v1114
        %v2944 = vunpack.c.l.b16 %v1115
        %v2945 = vunpack.c.h.b16 %v1115
        %v2946 = vunpack.c.l.b16 %v1116
        %v2947 = vunpack.c.l.b16 %v1117
        %v2948 = vunpack.c.h.b16 %v1117
        %v2949 = vunpack.c.l.b16 %v1118
        %v2950 = vunpack.c.l.b16 %v1119
        %v2951 = vunpack.c.h.b16 %v1119
        %v2952 = vunpack.c.l.b16 %v1120
        %v2953 = vunpack.c.l.b16 %v1121
        %v2954 = vunpack.c.h.b16 %v1121
        %v2955 = vunpack.c.l.b16 %v1122
        %v2956 = vunpack.c.l.b16 %v1123
        %v2957 = vunpack.c.h.b16 %v1123
        %v2958 = vunpack.c.l.b16 %v1124
        %v2959 = vunpack.c.l.b16 %v1125
        %v2960 = vunpack.c.h.b16 %v1125
        %v2961 = vunpack.c.l.b16 %v1126
        %v2962 = vunpack.c.l.b16 %v1127
        %v2963 = vunpack.c.h.b16 %v1127
        %v2964 = vunpack.c.l.b16 %v1128
        %v2965 = vunpack.c.l.b16 %v1129
        %v2966 = vunpack.c.h.b16 %v1129
        %v2967 = vunpack.c.l.b16 %v1130
        %v2968 = vunpack.c.l.b16 %v1131
        %v2969 = vunpack.c.h.b16 %v1131
        %v2970 = vunpack.c.l.b16 %v1132
        %v2971 = vunpack.c.l.b16 %v1133
        %v2972 = vunpack.c.h.b16 %v1133
        %v2973 = vunpack.c.l.b16 %v1134
        %v2974 = vunpack.c.l.b16 %v1135
        %v2975 = vunpack.c.h.b16 %v1135
        %v2976 = vunpack.c.l.b16 %v1136
        %v2977 = vunpack.c.l.b16 %v1137
        %v2978 = vunpack.c.h.b16 %v1137
        %v2979 = vunpack.c.l.b16 %v1138
        %v2980 = vunpack.c.l.b16 %v1139
        %v2981 = vunpack.c.h.b16 %v1139
        %v2982 = vunpack.c.l.b16 %v1140
        %v2983 = vunpack.c.l.b16 %v1141
        %v2984 = vunpack.c.h.b16 %v1141
        %v2985 = vunpack.c.l.b16 %v1142
        %v2986 = vunpack.c.l.b16 %v1143
        %v2987 = vunpack.c.h.b16 %v1143
        %v2988 = vunpack.c.l.b16 %v1144
        %v2989 = vunpack.c.l.b16 %v1145
        %v2990 = vunpack.c.h.b16 %v1145
        %v2991 = vunpack.c.l.b16 %v1146
        %v2992 = vunpack.c.l.b16 %v1147
        %v2993 = vunpack.c.h.b16 %v1147
        %v2994 = vunpack.c.l.b16 %v1148
        %v2995 = vunpack.c.l.b16 %v1149
        %v2996 = vunpack.c.h.b16 %v1149
        %v2997 = vunpack.c.l.b16 %v1150
        %v2998 = vunpack.c.l.b16 %v1151
        %v2999 = vunpack.c.h.b16 %v1151
        %v3000 = vunpack.c.l.b16 %v1152
        %v3001 = vunpack.c.l.b16 %v1153
        %v3002 = vunpack.c.h.b16 %v1153
        %v3003 = vunpack.c.l.b16 %v1154
        %v3004 = vunpack.c.l.b16 %v1155
        %v3005 = vunpack.c.h.b16 %v1155
        %v3006 = vunpack.c.l.b16 %v1156
        %v3007 = vunpack.c.l.b16 %v1157
        %v3008 = vunpack.c.h.b16 %v1157
        %v3009 = vunpack.c.l.b16 %v1158
        %v3010 = vunpack.c.l.b16 %v1159
        %v3011 = vunpack.c.h.b16 %v1159
        %v3012 = vunpack.c.l.b16 %v1160
        %v3013 = vunpack.c.l.b16 %v1161
        %v3014 = vunpack.c.h.b16 %v1161
        %v3015 = vunpack.c.l.b16 %v1162
        %v3016 = vunpack.c.l.b16 %v1163
        %v3017 = vunpack.c.h.b16 %v1163
        %v3018 = vunpack.c.l.b16 %v1164
        %v3019 = vunpack.c.l.b16 %v1165
        %v3020 = vunpack.c.h.b16 %v1165
        %v3021 = vunpack.c.l.b16 %v1166
        %v3022 = vunpack.c.l.b16 %v1167
        %v3023 = vunpack.c.h.b16 %v1167
        %v3024 = vunpack.c.l.b16 %v1168
        %v3025 = vunpack.c.l.b16 %v1169
        %v3026 = vunpack.c.h.b16 %v1169
        %v3027 = vunpack.c.l.b16 %v1170
        %v3028 = vunpack.c.l.b16 %v1171
        %v3029 = vunpack.c.h.b16 %v1171
        %v3030 = vunpack.c.l.b16 %v1172
        %v3031 = vunpack.c.l.b16 %v1173
        %v3032 = vunpack.c.h.b16 %v1173
        %v3033 = vunpack.c.l.b16 %v1174
        %v3034 = vunpack.c.l.b16 %v1175
        %v3035 = vunpack.c.h.b16 %v1175
        %v3036 = vunpack.c.l.b16 %v1176
        %v3037 = vunpack.c.l.b16 %v1177
        %v3038 = vunpack.c.h.b16 %v1177
        %v3039 = vunpack.c.l.b16 %v1178
        %v3040 = vunpack.c.l.b16 %v1179
        %v3041 = vunpack.c.h.b16 %v1179
        %v3042 = vunpack.c.l.b16 %v1180
        %v3043 = vunpack.c.l.b16 %v1181
        %v3044 = vunpack.c.h.b16 %v1181
        %v3045 = vunpack.c.l.b16 %v1182
        %v3046 = vunpack.c.l.b16 %v1183
        %v3047 = vunpack.c.h.b16 %v1183
        %v3048 = vunpack.c.l.b16 %v1184
        %v3049 = vunpack.c.l.b16 %v1185
        %v3050 = vunpack.c.h.b16 %v1185
        %v3051 = vunpack.c.l.b16 %v1186
        %v3052 = vunpack.c.l.b16 %v1187
        %v3053 = vunpack.c.h.b16 %v1187
        %v3054 = vunpack.c.l.b16 %v1188
        %v3055 = vpack.c.b16 %v2866, %v2863
        %v3056 = vpack.c.b16 %v2867, %v2864
        %v3057 = vpack.c.b16 %v2868, %v2865
        %v3058 = vpack.c.b16 %v2872, %v2869
        %v3059 = vpack.c.b16 %v2873, %v2870
        %v3060 = vpack.c.b16 %v2874, %v2871
        %v3061 = vpack.c.b16 %v2878, %v2875
        %v3062 = vpack.c.b16 %v2879, %v2876
        %v3063 = vpack.c.b16 %v2880, %v2877
        %v3064 = vpack.c.b16 %v2884, %v2881
        %v3065 = vpack.c.b16 %v2885, %v2882
        %v3066 = vpack.c.b16 %v2886, %v2883
        %v3067 = vpack.c.b16 %v2890, %v2887
        %v3068 = vpack.c.b16 %v2891, %v2888
        %v3069 = vpack.c.b16 %v2892, %v2889
        %v3070 = vpack.c.b16 %v2896, %v2893
        %v3071 = vpack.c.b16 %v2897, %v2894
        %v3072 = vpack.c.b16 %v2898, %v2895
        %v3073 = vpack.c.b16 %v2902, %v2899
        %v3074 = vpack.c.b16 %v2903, %v2900
        %v3075 = vpack.c.b16 %v2904, %v2901
        %v3076 = vpack.c.b16 %v2908, %v2905
        %v3077 = vpack.c.b16 %v2909, %v2906
        %v3078 = vpack.c.b16 %v2910, %v2907
        %v3079 = vpack.c.b16 %v2914, %v2911
        %v3080 = vpack.c.b16 %v2915, %v2912
        %v3081 = vpack.c.b16 %v2916, %v2913
        %v3082 = vpack.c.b16 %v2920, %v2917
        %v3083 = vpack.c.b16 %v2921, %v2918
        %v3084 = vpack.c.b16 %v2922, %v2919
        %v3085 = vpack.c.b16 %v2926, %v2923
        %v3086 = vpack.c.b16 %v2927, %v2924
        %v3087 = vpack.c.b16 %v2928, %v2925
        %v3088 = vpack.c.b16 %v2932, %v2929
        %v3089 = vpack.c.b16 %v2933, %v2930
        %v3090 = vpack.c.b16 %v2934, %v2931
        %v3091 = vpack.c.b16 %v2938, %v2935
        %v3092 = vpack.c.b16 %v2939, %v2936
        %v3093 = vpack.c.b16 %v2940, %v2937
        %v3094 = vpack.c.b16 %v2944, %v2941
        %v3095 = vpack.c.b16 %v2945, %v2942
        %v3096 = vpack.c.b16 %v2946, %v2943
        %v3097 = vpack.c.b16 %v2950, %v2947
        %v3098 = vpack.c.b16 %v2951, %v2948
        %v3099 = vpack.c.b16 %v2952, %v2949
        %v3100 = vpack.c.b16 %v2956, %v2953
        %v3101 = vpack.c.b16 %v2957, %v2954
        %v3102 = vpack.c.b16 %v2958, %v2955
        %v3103 = vpack.c.b16 %v2962, %v2959
        %v3104 = vpack.c.b16 %v2963, %v2960
        %v3105 = vpack.c.b16 %v2964, %v2961
        %v3106 = vpack.c.b16 %v2968, %v2965
        %v3107 = vpack.c.b16 %v2969, %v2966
        %v3108 = vpack.c.b16 %v2970, %v2967
        %v3109 = vpack.c.b16 %v2974, %v2971
        %v3110 = vpack.c.b16 %v2975, %v2972
        %v3111 = vpack.c.b16 %v2976, %v2973
        %v3112 = vpack.c.b16 %v2980, %v2977
        %v3113 = vpack.c.b16 %v2981, %v2978
        %v3114 = vpack.c.b16 %v2982, %v2979
        %v3115 = vpack.c.b16 %v2986, %v2983
        %v3116 = vpack.c.b16 %v2987, %v2984
        %v3117 = vpack.c.b16 %v2988, %v2985
        %v3118 = vpack.c.b16 %v2992, %v2989
        %v3119 = vpack.c.b16 %v2993, %v2990
        %v3120 = vpack.c.b16 %v2994, %v2991
        %v3121 = vpack.c.b16 %v2998, %v2995
        %v3122 = vpack.c.b16 %v2999, %v2996
        %v3123 = vpack.c.b16 %v3000, %v2997
        %v3124 = vpack.c.b16 %v3004, %v3001
        %v3125 = vpack.c.b16 %v3005, %v3002
        %v3126 = vpack.c.b16 %v3006, %v3003
        %v3127 = vpack.c.b16 %v3010, %v3007
        %v3128 = vpack.c.b16 %v3011, %v3008
        %v3129 = vpack.c.b16 %v3012, %v3009
        %v3130 = vpack.c.b16 %v3016, %v3013
        %v3131 = vpack.c.b16 %v3017, %v3014
        %v3132 = vpack.c.b16 %v3018, %v3015
        %v3133 = vpack.c.b16 %v3022, %v3019
        %v3134 = vpack.c.b16 %v3023, %v3020
        %v3135 = vpack.c.b16 %v3024, %v3021
        %v3136 = vpack.c.b16 %v3028, %v3025
        %v3137 = vpack.c.b16 %v3029, %v3026
        %v3138 = vpack.c.b16 %v3030, %v3027
        %v3139 = vpack.c.b16 %v3034, %v3031
        %v3140 = vpack.c.b16 %v3035, %v3032
        %v3141 = vpack.c.b16 %v3036, %v3033
        %v3142 = vpack.c.b16 %v3040, %v3037
        %v3143 = vpack.c.b16 %v3041, %v3038
        %v3144 = vpack.c.b16 %v3042, %v3039
        %v3145 = vpack.c.b16 %v3046, %v3043
        %v3146 = vpack.c.b16 %v3047, %v3044
        %v3147 = vpack.c.b16 %v3048, %v3045
        %v3148 = vpack.c.b16 %v3052, %v3049
        %v3149 = vpack.c.b16 %v3053, %v3050
        %v3150 = vpack.c.b16 %v3054, %v3051
        %3247 = vmatpush.bf16.msra.mxu0 %v3076
        %3248 = vmatpush.bf16.msra.mxu0 %v3073
        %3249 = vmatpush.bf16.msra.mxu0 %v3070
        %3250 = vmatpush.bf16.msra.mxu0 %v3067
        %3251 = vmatpush.bf16.msra.mxu0 %v3064
        %3252 = vmatpush.bf16.msra.mxu0 %v3061
        %3253 = vmatpush.bf16.msra.mxu0 %v3058
        %3254 = vmatpush.bf16.msra.mxu0 %v3055
        %3255 = vmatmul.bf16.gmra.mxu0 %v1057
        %v3256 = vpop.f32.mrf.mxu0
        %v3257 = vadd.f32 %v2628, %v3256
        %v3258 = vpop.f32.mrf.mxu0
        %3259 = vdwg.mxu0
        %3260 = vmatpush.bf16.msra.mxu0 %v3100
        %3261 = vmatpush.bf16.msra.mxu0 %v3097
        %3262 = vmatpush.bf16.msra.mxu0 %v3094
        %3263 = vmatpush.bf16.msra.mxu0 %v3091
        %3264 = vmatpush.bf16.msra.mxu0 %v3088
        %3265 = vmatpush.bf16.msra.mxu0 %v3085
        %3266 = vmatpush.bf16.msra.mxu0 %v3082
        %3267 = vmatpush.bf16.msra.mxu0 %v3079
        %3268 = vmatmul.bf16.gmra.mxu0 %v1058
        %v3269 = vpop.f32.mrf.mxu0
        %v3270 = vadd.f32 %v3257, %v3269
        %v3271 = vpop.f32.mrf.mxu0
        %3272 = vdwg.mxu0
        %3273 = vmatpush.bf16.msra.mxu0 %v3124
        %3274 = vmatpush.bf16.msra.mxu0 %v3121
        %3275 = vmatpush.bf16.msra.mxu0 %v3118
        %3276 = vmatpush.bf16.msra.mxu0 %v3115
        %3277 = vmatpush.bf16.msra.mxu0 %v3112
        %3278 = vmatpush.bf16.msra.mxu0 %v3109
        %3279 = vmatpush.bf16.msra.mxu0 %v3106
        %3280 = vmatpush.bf16.msra.mxu0 %v3103
        %3281 = vmatmul.bf16.gmra.mxu0 %v1059
        %v3282 = vpop.f32.mrf.mxu0
        %v3283 = vadd.f32 %v3270, %v3282
        %v3284 = vpop.f32.mrf.mxu0
        %3285 = vdwg.mxu0
        %3286 = vmatpush.bf16.msra.mxu0 %v3148
        %3287 = vmatpush.bf16.msra.mxu0 %v3145
        %3288 = vmatpush.bf16.msra.mxu0 %v3142
        %3289 = vmatpush.bf16.msra.mxu0 %v3139
        %3290 = vmatpush.bf16.msra.mxu0 %v3136
        %3291 = vmatpush.bf16.msra.mxu0 %v3133
        %3292 = vmatpush.bf16.msra.mxu0 %v3130
        %3293 = vmatpush.bf16.msra.mxu0 %v3127
        %3294 = vmatmul.bf16.gmra.mxu0 %v1060
        %v3295 = vpop.f32.mrf.mxu0
        %v3296 = vadd.f32 %v3283, %v3295
        %v3297 = vpop.f32.mrf.mxu0
        %3298 = vdwg.mxu0
        %3299 = vmatpush.bf16.msra.mxu0 %v3077
        %3300 = vmatpush.bf16.msra.mxu0 %v3074
        %3301 = vmatpush.bf16.msra.mxu0 %v3071
        %3302 = vmatpush.bf16.msra.mxu0 %v3068
        %3303 = vmatpush.bf16.msra.mxu0 %v3065
        %3304 = vmatpush.bf16.msra.mxu0 %v3062
        %3305 = vmatpush.bf16.msra.mxu0 %v3059
        %3306 = vmatpush.bf16.msra.mxu0 %v3056
        %3307 = vmatmul.bf16.gmra.mxu0 %v1057
        %v3308 = vpop.f32.mrf.mxu0
        %v3309 = vadd.f32 %v2680, %v3308
        %v3310 = vpop.f32.mrf.mxu0
        %3311 = vdwg.mxu0
        %3312 = vmatpush.bf16.msra.mxu0 %v3101
        %3313 = vmatpush.bf16.msra.mxu0 %v3098
        %3314 = vmatpush.bf16.msra.mxu0 %v3095
        %3315 = vmatpush.bf16.msra.mxu0 %v3092
        %3316 = vmatpush.bf16.msra.mxu0 %v3089
        %3317 = vmatpush.bf16.msra.mxu0 %v3086
        %3318 = vmatpush.bf16.msra.mxu0 %v3083
        %3319 = vmatpush.bf16.msra.mxu0 %v3080
        %3320 = vmatmul.bf16.gmra.mxu0 %v1058
        %v3321 = vpop.f32.mrf.mxu0
        %v3322 = vadd.f32 %v3309, %v3321
        %v3323 = vpop.f32.mrf.mxu0
        %3324 = vdwg.mxu0
        %3325 = vmatpush.bf16.msra.mxu0 %v3125
        %3326 = vmatpush.bf16.msra.mxu0 %v3122
        %3327 = vmatpush.bf16.msra.mxu0 %v3119
        %3328 = vmatpush.bf16.msra.mxu0 %v3116
        %3329 = vmatpush.bf16.msra.mxu0 %v3113
        %3330 = vmatpush.bf16.msra.mxu0 %v3110
        %3331 = vmatpush.bf16.msra.mxu0 %v3107
        %3332 = vmatpush.bf16.msra.mxu0 %v3104
        %3333 = vmatmul.bf16.gmra.mxu0 %v1059
        %v3334 = vpop.f32.mrf.mxu0
        %v3335 = vadd.f32 %v3322, %v3334
        %v3336 = vpop.f32.mrf.mxu0
        %3337 = vdwg.mxu0
        %3338 = vmatpush.bf16.msra.mxu0 %v3149
        %3339 = vmatpush.bf16.msra.mxu0 %v3146
        %3340 = vmatpush.bf16.msra.mxu0 %v3143
        %3341 = vmatpush.bf16.msra.mxu0 %v3140
        %3342 = vmatpush.bf16.msra.mxu0 %v3137
        %3343 = vmatpush.bf16.msra.mxu0 %v3134
        %3344 = vmatpush.bf16.msra.mxu0 %v3131
        %3345 = vmatpush.bf16.msra.mxu0 %v3128
        %3346 = vmatmul.bf16.gmra.mxu0 %v1060
        %v3347 = vpop.f32.mrf.mxu0
        %v3348 = vadd.f32 %v3335, %v3347
        %v3349 = vpop.f32.mrf.mxu0
        %3350 = vdwg.mxu0
        %3351 = vmatpush.bf16.msra.mxu0 %v3078
        %3352 = vmatpush.bf16.msra.mxu0 %v3075
        %3353 = vmatpush.bf16.msra.mxu0 %v3072
        %3354 = vmatpush.bf16.msra.mxu0 %v3069
        %3355 = vmatpush.bf16.msra.mxu0 %v3066
        %3356 = vmatpush.bf16.msra.mxu0 %v3063
        %3357 = vmatpush.bf16.msra.mxu0 %v3060
        %3358 = vmatpush.bf16.msra.mxu0 %v3057
        %3359 = vmatmul.bf16.gmra.mxu0 %v1057
        %v3360 = vpop.f32.mrf.mxu0
        %v3361 = vadd.f32 %v2732, %v3360
        %v3362 = vpop.f32.mrf.mxu0
        %3363 = vdwg.mxu0
        %3364 = vmatpush.bf16.msra.mxu0 %v3102
        %3365 = vmatpush.bf16.msra.mxu0 %v3099
        %3366 = vmatpush.bf16.msra.mxu0 %v3096
        %3367 = vmatpush.bf16.msra.mxu0 %v3093
        %3368 = vmatpush.bf16.msra.mxu0 %v3090
        %3369 = vmatpush.bf16.msra.mxu0 %v3087
        %3370 = vmatpush.bf16.msra.mxu0 %v3084
        %3371 = vmatpush.bf16.msra.mxu0 %v3081
        %3372 = vmatmul.bf16.gmra.mxu0 %v1058
        %v3373 = vpop.f32.mrf.mxu0
        %v3374 = vadd.f32 %v3361, %v3373
        %v3375 = vpop.f32.mrf.mxu0
        %3376 = vdwg.mxu0
        %3377 = vmatpush.bf16.msra.mxu0 %v3126
        %3378 = vmatpush.bf16.msra.mxu0 %v3123
        %3379 = vmatpush.bf16.msra.mxu0 %v3120
        %3380 = vmatpush.bf16.msra.mxu0 %v3117
        %3381 = vmatpush.bf16.msra.mxu0 %v3114
        %3382 = vmatpush.bf16.msra.mxu0 %v3111
        %3383 = vmatpush.bf16.msra.mxu0 %v3108
        %3384 = vmatpush.bf16.msra.mxu0 %v3105
        %3385 = vmatmul.bf16.gmra.mxu0 %v1059
        %v3386 = vpop.f32.mrf.mxu0
        %v3387 = vadd.f32 %v3374, %v3386
        %v3388 = vpop.f32.mrf.mxu0
        %3389 = vdwg.mxu0
        %3390 = vmatpush.bf16.msra.mxu0 %v3150
        %3391 = vmatpush.bf16.msra.mxu0 %v3147
        %3392 = vmatpush.bf16.msra.mxu0 %v3144
        %3393 = vmatpush.bf16.msra.mxu0 %v3141
        %3394 = vmatpush.bf16.msra.mxu0 %v3138
        %3395 = vmatpush.bf16.msra.mxu0 %v3135
        %3396 = vmatpush.bf16.msra.mxu0 %v3132
        %3397 = vmatpush.bf16.msra.mxu0 %v3129
        %3398 = vmatmul.bf16.gmra.mxu0 %v1060
        %v3399 = vpop.f32.mrf.mxu0
        %v3400 = vadd.f32 %v3387, %v3399
        %v3401 = vpop.f32.mrf.mxu0
        %3402 = vdwg.mxu0
        %v3403 = vld [vmem:[#allocation5 + $0x20] sm:$0xff]
        %v3404 = vld [vmem:[#allocation5 + $0x28] sm:$0xff]
        %v3405 = vld [vmem:[#allocation5 + $0x50] sm:$0xff]
        %v3406 = vld [vmem:[#allocation5 + $0x58] sm:$0xff]
        %v3407 = vld [vmem:[#allocation5 + $0x80] sm:$0xff]
        %v3408 = vld [vmem:[#allocation5 + $0x88] sm:$0xff]
        %v3409 = vld [vmem:[#allocation5 + $0xb0] sm:$0xff]
        %v3410 = vld [vmem:[#allocation5 + $0xb8] sm:$0xff]
        %v3411 = vld [vmem:[#allocation5 + $0xe0] sm:$0xff]
        %v3412 = vld [vmem:[#allocation5 + $0xe8] sm:$0xff]
        %v3413 = vld [vmem:[#allocation5 + $0x110] sm:$0xff]
        %v3414 = vld [vmem:[#allocation5 + $0x118] sm:$0xff]
        %v3415 = vld [vmem:[#allocation5 + $0x140] sm:$0xff]
        %v3416 = vld [vmem:[#allocation5 + $0x148] sm:$0xff]
        %v3417 = vld [vmem:[#allocation5 + $0x170] sm:$0xff]
        %v3418 = vld [vmem:[#allocation5 + $0x178] sm:$0xff]
        %v3419 = vld [vmem:[#allocation5 + $0x1a0] sm:$0xff]
        %v3420 = vld [vmem:[#allocation5 + $0x1a8] sm:$0xff]
        %v3421 = vld [vmem:[#allocation5 + $0x1d0] sm:$0xff]
        %v3422 = vld [vmem:[#allocation5 + $0x1d8] sm:$0xff]
        %v3423 = vld [vmem:[#allocation5 + $0x200] sm:$0xff]
        %v3424 = vld [vmem:[#allocation5 + $0x208] sm:$0xff]
        %v3425 = vld [vmem:[#allocation5 + $0x230] sm:$0xff]
        %v3426 = vld [vmem:[#allocation5 + $0x238] sm:$0xff]
        %v3427 = vld [vmem:[#allocation5 + $0x260] sm:$0xff]
        %v3428 = vld [vmem:[#allocation5 + $0x268] sm:$0xff]
        %v3429 = vld [vmem:[#allocation5 + $0x290] sm:$0xff]
        %v3430 = vld [vmem:[#allocation5 + $0x298] sm:$0xff]
        %v3431 = vld [vmem:[#allocation5 + $0x2c0] sm:$0xff]
        %v3432 = vld [vmem:[#allocation5 + $0x2c8] sm:$0xff]
        %v3433 = vld [vmem:[#allocation5 + $0x2f0] sm:$0xff]
        %v3434 = vld [vmem:[#allocation5 + $0x2f8] sm:$0xff]
        %v3435 = vld [vmem:[#allocation5 + $0x320] sm:$0xff]
        %v3436 = vld [vmem:[#allocation5 + $0x328] sm:$0xff]
        %v3437 = vld [vmem:[#allocation5 + $0x350] sm:$0xff]
        %v3438 = vld [vmem:[#allocation5 + $0x358] sm:$0xff]
        %v3439 = vld [vmem:[#allocation5 + $0x380] sm:$0xff]
        %v3440 = vld [vmem:[#allocation5 + $0x388] sm:$0xff]
        %v3441 = vld [vmem:[#allocation5 + $0x3b0] sm:$0xff]
        %v3442 = vld [vmem:[#allocation5 + $0x3b8] sm:$0xff]
        %v3443 = vld [vmem:[#allocation5 + $0x3e0] sm:$0xff]
        %v3444 = vld [vmem:[#allocation5 + $0x3e8] sm:$0xff]
        %v3445 = vld [vmem:[#allocation5 + $0x410] sm:$0xff]
        %v3446 = vld [vmem:[#allocation5 + $0x418] sm:$0xff]
        %v3447 = vld [vmem:[#allocation5 + $0x440] sm:$0xff]
        %v3448 = vld [vmem:[#allocation5 + $0x448] sm:$0xff]
        %v3449 = vld [vmem:[#allocation5 + $0x470] sm:$0xff]
        %v3450 = vld [vmem:[#allocation5 + $0x478] sm:$0xff]
        %v3451 = vld [vmem:[#allocation5 + $0x4a0] sm:$0xff]
        %v3452 = vld [vmem:[#allocation5 + $0x4a8] sm:$0xff]
        %v3453 = vld [vmem:[#allocation5 + $0x4d0] sm:$0xff]
        %v3454 = vld [vmem:[#allocation5 + $0x4d8] sm:$0xff]
        %v3455 = vld [vmem:[#allocation5 + $0x500] sm:$0xff]
        %v3456 = vld [vmem:[#allocation5 + $0x508] sm:$0xff]
        %v3457 = vld [vmem:[#allocation5 + $0x530] sm:$0xff]
        %v3458 = vld [vmem:[#allocation5 + $0x538] sm:$0xff]
        %v3459 = vld [vmem:[#allocation5 + $0x560] sm:$0xff]
        %v3460 = vld [vmem:[#allocation5 + $0x568] sm:$0xff]
        %v3461 = vld [vmem:[#allocation5 + $0x590] sm:$0xff]
        %v3462 = vld [vmem:[#allocation5 + $0x598] sm:$0xff]
        %v3463 = vld [vmem:[#allocation5 + $0x5c0] sm:$0xff]
        %v3464 = vld [vmem:[#allocation5 + $0x5c8] sm:$0xff]
        %v3465 = vld [vmem:[#allocation5 + $0x5f0] sm:$0xff]
        %v3466 = vld [vmem:[#allocation5 + $0x5f8] sm:$0xff]
        %v3467 = vld [vmem:[#allocation5 + $0x620] sm:$0xff]
        %v3468 = vld [vmem:[#allocation5 + $0x628] sm:$0xff]
        %v3469 = vld [vmem:[#allocation5 + $0x650] sm:$0xff]
        %v3470 = vld [vmem:[#allocation5 + $0x658] sm:$0xff]
        %v3471 = vld [vmem:[#allocation5 + $0x680] sm:$0xff]
        %v3472 = vld [vmem:[#allocation5 + $0x688] sm:$0xff]
        %v3473 = vld [vmem:[#allocation5 + $0x6b0] sm:$0xff]
        %v3474 = vld [vmem:[#allocation5 + $0x6b8] sm:$0xff]
        %v3475 = vld [vmem:[#allocation5 + $0x6e0] sm:$0xff]
        %v3476 = vld [vmem:[#allocation5 + $0x6e8] sm:$0xff]
        %v3477 = vld [vmem:[#allocation5 + $0x710] sm:$0xff]
        %v3478 = vld [vmem:[#allocation5 + $0x718] sm:$0xff]
        %v3479 = vld [vmem:[#allocation5 + $0x740] sm:$0xff]
        %v3480 = vld [vmem:[#allocation5 + $0x748] sm:$0xff]
        %v3481 = vld [vmem:[#allocation5 + $0x770] sm:$0xff]
        %v3482 = vld [vmem:[#allocation5 + $0x778] sm:$0xff]
        %v3483 = vld [vmem:[#allocation5 + $0x7a0] sm:$0xff]
        %v3484 = vld [vmem:[#allocation5 + $0x7a8] sm:$0xff]
        %v3485 = vld [vmem:[#allocation5 + $0x7d0] sm:$0xff]
        %v3486 = vld [vmem:[#allocation5 + $0x7d8] sm:$0xff]
        %v3487 = vld [vmem:[#allocation5 + $0x800] sm:$0xff]
        %v3488 = vld [vmem:[#allocation5 + $0x808] sm:$0xff]
        %v3489 = vld [vmem:[#allocation5 + $0x830] sm:$0xff]
        %v3490 = vld [vmem:[#allocation5 + $0x838] sm:$0xff]
        %v3491 = vld [vmem:[#allocation5 + $0x860] sm:$0xff]
        %v3492 = vld [vmem:[#allocation5 + $0x868] sm:$0xff]
        %v3493 = vld [vmem:[#allocation5 + $0x890] sm:$0xff]
        %v3494 = vld [vmem:[#allocation5 + $0x898] sm:$0xff]
        %v3495 = vld [vmem:[#allocation5 + $0x8c0] sm:$0xff]
        %v3496 = vld [vmem:[#allocation5 + $0x8c8] sm:$0xff]
        %v3497 = vld [vmem:[#allocation5 + $0x8f0] sm:$0xff]
        %v3498 = vld [vmem:[#allocation5 + $0x8f8] sm:$0xff]
        %v3499 = vld [vmem:[#allocation7 + $0x8] sm:$0xf]
        %v3501 = vperm.slane %v3499, 0
        %v3502 = vperm.slane %v3499, 1
        %v3503 = vperm.slane %v3499, 2
        %v3504 = vperm.slane %v3499, 3
        %v3605 = vunpack.c.l.b16 %v3403
        %v3606 = vunpack.c.h.b16 %v3403
        %v3607 = vunpack.c.l.b16 %v3404
        %v3608 = vunpack.c.h.b16 %v3404
        %v3609 = vunpack.c.l.b16 %v3405
        %v3610 = vunpack.c.h.b16 %v3405
        %v3611 = vunpack.c.l.b16 %v3406
        %v3612 = vunpack.c.h.b16 %v3406
        %v3613 = vunpack.c.l.b16 %v3407
        %v3614 = vunpack.c.h.b16 %v3407
        %v3615 = vunpack.c.l.b16 %v3408
        %v3616 = vunpack.c.h.b16 %v3408
        %v3617 = vunpack.c.l.b16 %v3409
        %v3618 = vunpack.c.h.b16 %v3409
        %v3619 = vunpack.c.l.b16 %v3410
        %v3620 = vunpack.c.h.b16 %v3410
        %v3621 = vunpack.c.l.b16 %v3411
        %v3622 = vunpack.c.h.b16 %v3411
        %v3623 = vunpack.c.l.b16 %v3412
        %v3624 = vunpack.c.h.b16 %v3412
        %v3625 = vunpack.c.l.b16 %v3413
        %v3626 = vunpack.c.h.b16 %v3413
        %v3627 = vunpack.c.l.b16 %v3414
        %v3628 = vunpack.c.h.b16 %v3414
        %v3629 = vunpack.c.l.b16 %v3415
        %v3630 = vunpack.c.h.b16 %v3415
        %v3631 = vunpack.c.l.b16 %v3416
        %v3632 = vunpack.c.h.b16 %v3416
        %v3633 = vunpack.c.l.b16 %v3417
        %v3634 = vunpack.c.h.b16 %v3417
        %v3635 = vunpack.c.l.b16 %v3418
        %v3636 = vunpack.c.h.b16 %v3418
        %v3637 = vunpack.c.l.b16 %v3419
        %v3638 = vunpack.c.h.b16 %v3419
        %v3639 = vunpack.c.l.b16 %v3420
        %v3640 = vunpack.c.h.b16 %v3420
        %v3641 = vunpack.c.l.b16 %v3421
        %v3642 = vunpack.c.h.b16 %v3421
        %v3643 = vunpack.c.l.b16 %v3422
        %v3644 = vunpack.c.h.b16 %v3422
        %v3645 = vunpack.c.l.b16 %v3423
        %v3646 = vunpack.c.h.b16 %v3423
        %v3647 = vunpack.c.l.b16 %v3424
        %v3648 = vunpack.c.h.b16 %v3424
        %v3649 = vunpack.c.l.b16 %v3425
        %v3650 = vunpack.c.h.b16 %v3425
        %v3651 = vunpack.c.l.b16 %v3426
        %v3652 = vunpack.c.h.b16 %v3426
        %v3653 = vunpack.c.l.b16 %v3427
        %v3654 = vunpack.c.h.b16 %v3427
        %v3655 = vunpack.c.l.b16 %v3428
        %v3656 = vunpack.c.h.b16 %v3428
        %v3657 = vunpack.c.l.b16 %v3429
        %v3658 = vunpack.c.h.b16 %v3429
        %v3659 = vunpack.c.l.b16 %v3430
        %v3660 = vunpack.c.h.b16 %v3430
        %v3661 = vunpack.c.l.b16 %v3431
        %v3662 = vunpack.c.h.b16 %v3431
        %v3663 = vunpack.c.l.b16 %v3432
        %v3664 = vunpack.c.h.b16 %v3432
        %v3665 = vunpack.c.l.b16 %v3433
        %v3666 = vunpack.c.h.b16 %v3433
        %v3667 = vunpack.c.l.b16 %v3434
        %v3668 = vunpack.c.h.b16 %v3434
        %v3669 = vunpack.c.l.b16 %v3435
        %v3670 = vunpack.c.h.b16 %v3435
        %v3671 = vunpack.c.l.b16 %v3436
        %v3672 = vunpack.c.h.b16 %v3436
        %v3673 = vunpack.c.l.b16 %v3437
        %v3674 = vunpack.c.h.b16 %v3437
        %v3675 = vunpack.c.l.b16 %v3438
        %v3676 = vunpack.c.h.b16 %v3438
        %v3677 = vunpack.c.l.b16 %v3439
        %v3678 = vunpack.c.h.b16 %v3439
        %v3679 = vunpack.c.l.b16 %v3440
        %v3680 = vunpack.c.h.b16 %v3440
        %v3681 = vunpack.c.l.b16 %v3441
        %v3682 = vunpack.c.h.b16 %v3441
        %v3683 = vunpack.c.l.b16 %v3442
        %v3684 = vunpack.c.h.b16 %v3442
        %v3685 = vunpack.c.l.b16 %v3443
        %v3686 = vunpack.c.h.b16 %v3443
        %v3687 = vunpack.c.l.b16 %v3444
        %v3688 = vunpack.c.h.b16 %v3444
        %v3689 = vunpack.c.l.b16 %v3445
        %v3690 = vunpack.c.h.b16 %v3445
        %v3691 = vunpack.c.l.b16 %v3446
        %v3692 = vunpack.c.h.b16 %v3446
        %v3693 = vunpack.c.l.b16 %v3447
        %v3694 = vunpack.c.h.b16 %v3447
        %v3695 = vunpack.c.l.b16 %v3448
        %v3696 = vunpack.c.h.b16 %v3448
        %v3697 = vunpack.c.l.b16 %v3449
        %v3698 = vunpack.c.h.b16 %v3449
        %v3699 = vunpack.c.l.b16 %v3450
        %v3700 = vunpack.c.h.b16 %v3450
        %v3701 = vunpack.c.l.b16 %v3451
        %v3702 = vunpack.c.h.b16 %v3451
        %v3703 = vunpack.c.l.b16 %v3452
        %v3704 = vunpack.c.h.b16 %v3452
        %v3705 = vunpack.c.l.b16 %v3453
        %v3706 = vunpack.c.h.b16 %v3453
        %v3707 = vunpack.c.l.b16 %v3454
        %v3708 = vunpack.c.h.b16 %v3454
        %v3709 = vunpack.c.l.b16 %v3455
        %v3710 = vunpack.c.h.b16 %v3455
        %v3711 = vunpack.c.l.b16 %v3456
        %v3712 = vunpack.c.h.b16 %v3456
        %v3713 = vunpack.c.l.b16 %v3457
        %v3714 = vunpack.c.h.b16 %v3457
        %v3715 = vunpack.c.l.b16 %v3458
        %v3716 = vunpack.c.h.b16 %v3458
        %v3717 = vunpack.c.l.b16 %v3459
        %v3718 = vunpack.c.h.b16 %v3459
        %v3719 = vunpack.c.l.b16 %v3460
        %v3720 = vunpack.c.h.b16 %v3460
        %v3721 = vunpack.c.l.b16 %v3461
        %v3722 = vunpack.c.h.b16 %v3461
        %v3723 = vunpack.c.l.b16 %v3462
        %v3724 = vunpack.c.h.b16 %v3462
        %v3725 = vunpack.c.l.b16 %v3463
        %v3726 = vunpack.c.h.b16 %v3463
        %v3727 = vunpack.c.l.b16 %v3464
        %v3728 = vunpack.c.h.b16 %v3464
        %v3729 = vunpack.c.l.b16 %v3465
        %v3730 = vunpack.c.h.b16 %v3465
        %v3731 = vunpack.c.l.b16 %v3466
        %v3732 = vunpack.c.h.b16 %v3466
        %v3733 = vunpack.c.l.b16 %v3467
        %v3734 = vunpack.c.h.b16 %v3467
        %v3735 = vunpack.c.l.b16 %v3468
        %v3736 = vunpack.c.h.b16 %v3468
        %v3737 = vunpack.c.l.b16 %v3469
        %v3738 = vunpack.c.h.b16 %v3469
        %v3739 = vunpack.c.l.b16 %v3470
        %v3740 = vunpack.c.h.b16 %v3470
        %v3741 = vunpack.c.l.b16 %v3471
        %v3742 = vunpack.c.h.b16 %v3471
        %v3743 = vunpack.c.l.b16 %v3472
        %v3744 = vunpack.c.h.b16 %v3472
        %v3745 = vunpack.c.l.b16 %v3473
        %v3746 = vunpack.c.h.b16 %v3473
        %v3747 = vunpack.c.l.b16 %v3474
        %v3748 = vunpack.c.h.b16 %v3474
        %v3749 = vunpack.c.l.b16 %v3475
        %v3750 = vunpack.c.h.b16 %v3475
        %v3751 = vunpack.c.l.b16 %v3476
        %v3752 = vunpack.c.h.b16 %v3476
        %v3753 = vunpack.c.l.b16 %v3477
        %v3754 = vunpack.c.h.b16 %v3477
        %v3755 = vunpack.c.l.b16 %v3478
        %v3756 = vunpack.c.h.b16 %v3478
        %v3757 = vunpack.c.l.b16 %v3479
        %v3758 = vunpack.c.h.b16 %v3479
        %v3759 = vunpack.c.l.b16 %v3480
        %v3760 = vunpack.c.h.b16 %v3480
        %v3761 = vunpack.c.l.b16 %v3481
        %v3762 = vunpack.c.h.b16 %v3481
        %v3763 = vunpack.c.l.b16 %v3482
        %v3764 = vunpack.c.h.b16 %v3482
        %v3765 = vunpack.c.l.b16 %v3483
        %v3766 = vunpack.c.h.b16 %v3483
        %v3767 = vunpack.c.l.b16 %v3484
        %v3768 = vunpack.c.h.b16 %v3484
        %v3769 = vunpack.c.l.b16 %v3485
        %v3770 = vunpack.c.h.b16 %v3485
        %v3771 = vunpack.c.l.b16 %v3486
        %v3772 = vunpack.c.h.b16 %v3486
        %v3773 = vunpack.c.l.b16 %v3487
        %v3774 = vunpack.c.h.b16 %v3487
        %v3775 = vunpack.c.l.b16 %v3488
        %v3776 = vunpack.c.h.b16 %v3488
        %v3777 = vunpack.c.l.b16 %v3489
        %v3778 = vunpack.c.h.b16 %v3489
        %v3779 = vunpack.c.l.b16 %v3490
        %v3780 = vunpack.c.h.b16 %v3490
        %v3781 = vunpack.c.l.b16 %v3491
        %v3782 = vunpack.c.h.b16 %v3491
        %v3783 = vunpack.c.l.b16 %v3492
        %v3784 = vunpack.c.h.b16 %v3492
        %v3785 = vunpack.c.l.b16 %v3493
        %v3786 = vunpack.c.h.b16 %v3493
        %v3787 = vunpack.c.l.b16 %v3494
        %v3788 = vunpack.c.h.b16 %v3494
        %v3789 = vunpack.c.l.b16 %v3495
        %v3790 = vunpack.c.h.b16 %v3495
        %v3791 = vunpack.c.l.b16 %v3496
        %v3792 = vunpack.c.h.b16 %v3496
        %v3793 = vunpack.c.l.b16 %v3497
        %v3794 = vunpack.c.h.b16 %v3497
        %v3795 = vunpack.c.l.b16 %v3498
        %v3796 = vunpack.c.h.b16 %v3498
        %v3797 = vpack.c.b16 %v3609, %v3605
        %v3798 = vpack.c.b16 %v3610, %v3606
        %v3799 = vpack.c.b16 %v3611, %v3607
        %v3800 = vpack.c.b16 %v3612, %v3608
        %v3801 = vpack.c.b16 %v3617, %v3613
        %v3802 = vpack.c.b16 %v3618, %v3614
        %v3803 = vpack.c.b16 %v3619, %v3615
        %v3804 = vpack.c.b16 %v3620, %v3616
        %v3805 = vpack.c.b16 %v3625, %v3621
        %v3806 = vpack.c.b16 %v3626, %v3622
        %v3807 = vpack.c.b16 %v3627, %v3623
        %v3808 = vpack.c.b16 %v3628, %v3624
        %v3809 = vpack.c.b16 %v3633, %v3629
        %v3810 = vpack.c.b16 %v3634, %v3630
        %v3811 = vpack.c.b16 %v3635, %v3631
        %v3812 = vpack.c.b16 %v3636, %v3632
        %v3813 = vpack.c.b16 %v3641, %v3637
        %v3814 = vpack.c.b16 %v3642, %v3638
        %v3815 = vpack.c.b16 %v3643, %v3639
        %v3816 = vpack.c.b16 %v3644, %v3640
        %v3817 = vpack.c.b16 %v3649, %v3645
        %v3818 = vpack.c.b16 %v3650, %v3646
        %v3819 = vpack.c.b16 %v3651, %v3647
        %v3820 = vpack.c.b16 %v3652, %v3648
        %v3821 = vpack.c.b16 %v3657, %v3653
        %v3822 = vpack.c.b16 %v3658, %v3654
        %v3823 = vpack.c.b16 %v3659, %v3655
        %v3824 = vpack.c.b16 %v3660, %v3656
        %v3825 = vpack.c.b16 %v3665, %v3661
        %v3826 = vpack.c.b16 %v3666, %v3662
        %v3827 = vpack.c.b16 %v3667, %v3663
        %v3828 = vpack.c.b16 %v3668, %v3664
        %v3829 = vpack.c.b16 %v3673, %v3669
        %v3830 = vpack.c.b16 %v3674, %v3670
        %v3831 = vpack.c.b16 %v3675, %v3671
        %v3832 = vpack.c.b16 %v3676, %v3672
        %v3833 = vpack.c.b16 %v3681, %v3677
        %v3834 = vpack.c.b16 %v3682, %v3678
        %v3835 = vpack.c.b16 %v3683, %v3679
        %v3836 = vpack.c.b16 %v3684, %v3680
        %v3837 = vpack.c.b16 %v3689, %v3685
        %v3838 = vpack.c.b16 %v3690, %v3686
        %v3839 = vpack.c.b16 %v3691, %v3687
        %v3840 = vpack.c.b16 %v3692, %v3688
        %v3841 = vpack.c.b16 %v3697, %v3693
        %v3842 = vpack.c.b16 %v3698, %v3694
        %v3843 = vpack.c.b16 %v3699, %v3695
        %v3844 = vpack.c.b16 %v3700, %v3696
        %v3845 = vpack.c.b16 %v3705, %v3701
        %v3846 = vpack.c.b16 %v3706, %v3702
        %v3847 = vpack.c.b16 %v3707, %v3703
        %v3848 = vpack.c.b16 %v3708, %v3704
        %v3849 = vpack.c.b16 %v3713, %v3709
        %v3850 = vpack.c.b16 %v3714, %v3710
        %v3851 = vpack.c.b16 %v3715, %v3711
        %v3852 = vpack.c.b16 %v3716, %v3712
        %v3853 = vpack.c.b16 %v3721, %v3717
        %v3854 = vpack.c.b16 %v3722, %v3718
        %v3855 = vpack.c.b16 %v3723, %v3719
        %v3856 = vpack.c.b16 %v3724, %v3720
        %v3857 = vpack.c.b16 %v3729, %v3725
        %v3858 = vpack.c.b16 %v3730, %v3726
        %v3859 = vpack.c.b16 %v3731, %v3727
        %v3860 = vpack.c.b16 %v3732, %v3728
        %v3861 = vpack.c.b16 %v3737, %v3733
        %v3862 = vpack.c.b16 %v3738, %v3734
        %v3863 = vpack.c.b16 %v3739, %v3735
        %v3864 = vpack.c.b16 %v3740, %v3736
        %v3865 = vpack.c.b16 %v3745, %v3741
        %v3866 = vpack.c.b16 %v3746, %v3742
        %v3867 = vpack.c.b16 %v3747, %v3743
        %v3868 = vpack.c.b16 %v3748, %v3744
        %v3869 = vpack.c.b16 %v3753, %v3749
        %v3870 = vpack.c.b16 %v3754, %v3750
        %v3871 = vpack.c.b16 %v3755, %v3751
        %v3872 = vpack.c.b16 %v3756, %v3752
        %v3873 = vpack.c.b16 %v3761, %v3757
        %v3874 = vpack.c.b16 %v3762, %v3758
        %v3875 = vpack.c.b16 %v3763, %v3759
        %v3876 = vpack.c.b16 %v3764, %v3760
        %v3877 = vpack.c.b16 %v3769, %v3765
        %v3878 = vpack.c.b16 %v3770, %v3766
        %v3879 = vpack.c.b16 %v3771, %v3767
        %v3880 = vpack.c.b16 %v3772, %v3768
        %v3881 = vpack.c.b16 %v3777, %v3773
        %v3882 = vpack.c.b16 %v3778, %v3774
        %v3883 = vpack.c.b16 %v3779, %v3775
        %v3884 = vpack.c.b16 %v3780, %v3776
        %v3885 = vpack.c.b16 %v3785, %v3781
        %v3886 = vpack.c.b16 %v3786, %v3782
        %v3887 = vpack.c.b16 %v3787, %v3783
        %v3888 = vpack.c.b16 %v3788, %v3784
        %v3889 = vpack.c.b16 %v3793, %v3789
        %v3890 = vpack.c.b16 %v3794, %v3790
        %v3891 = vpack.c.b16 %v3795, %v3791
        %v3892 = vpack.c.b16 %v3796, %v3792
        %3989 = vmatpush.bf16.msra.mxu0 %v3825
        %3990 = vmatpush.bf16.msra.mxu0 %v3821
        %3991 = vmatpush.bf16.msra.mxu0 %v3817
        %3992 = vmatpush.bf16.msra.mxu0 %v3813
        %3993 = vmatpush.bf16.msra.mxu0 %v3809
        %3994 = vmatpush.bf16.msra.mxu0 %v3805
        %3995 = vmatpush.bf16.msra.mxu0 %v3801
        %3996 = vmatpush.bf16.msra.mxu0 %v3797
        %3997 = vmatmul.bf16.gmra.mxu0 %v308
        %v3998 = vpop.f32.mrf.mxu0
        %v3999 = vadd.f32 %v3501, %v3998
        %v4000 = vpop.f32.mrf.mxu0
        %4001 = vdwg.mxu0
        %4002 = vmatpush.bf16.msra.mxu0 %v3857
        %4003 = vmatpush.bf16.msra.mxu0 %v3853
        %4004 = vmatpush.bf16.msra.mxu0 %v3849
        %4005 = vmatpush.bf16.msra.mxu0 %v3845
        %4006 = vmatpush.bf16.msra.mxu0 %v3841
        %4007 = vmatpush.bf16.msra.mxu0 %v3837
        %4008 = vmatpush.bf16.msra.mxu0 %v3833
        %4009 = vmatpush.bf16.msra.mxu0 %v3829
        %4010 = vmatmul.bf16.gmra.mxu0 %v309
        %v4011 = vpop.f32.mrf.mxu0
        %v4012 = vadd.f32 %v3999, %v4011
        %v4013 = vpop.f32.mrf.mxu0
        %4014 = vdwg.mxu0
        %4015 = vmatpush.bf16.msra.mxu0 %v3889
        %4016 = vmatpush.bf16.msra.mxu0 %v3885
        %4017 = vmatpush.bf16.msra.mxu0 %v3881
        %4018 = vmatpush.bf16.msra.mxu0 %v3877
        %4019 = vmatpush.bf16.msra.mxu0 %v3873
        %4020 = vmatpush.bf16.msra.mxu0 %v3869
        %4021 = vmatpush.bf16.msra.mxu0 %v3865
        %4022 = vmatpush.bf16.msra.mxu0 %v3861
        %4023 = vmatmul.bf16.gmra.mxu0 %v310
        %v4024 = vpop.f32.mrf.mxu0
        %v4025 = vadd.f32 %v4012, %v4024
        %v4026 = vpop.f32.mrf.mxu0
        %4027 = vdwg.mxu0
        %4028 = vmatpush.bf16.msra.mxu0 %v3826
        %4029 = vmatpush.bf16.msra.mxu0 %v3822
        %4030 = vmatpush.bf16.msra.mxu0 %v3818
        %4031 = vmatpush.bf16.msra.mxu0 %v3814
        %4032 = vmatpush.bf16.msra.mxu0 %v3810
        %4033 = vmatpush.bf16.msra.mxu0 %v3806
        %4034 = vmatpush.bf16.msra.mxu0 %v3802
        %4035 = vmatpush.bf16.msra.mxu0 %v3798
        %4036 = vmatmul.bf16.gmra.mxu0 %v308
        %v4037 = vpop.f32.mrf.mxu0
        %v4038 = vadd.f32 %v3502, %v4037
        %v4039 = vpop.f32.mrf.mxu0
        %4040 = vdwg.mxu0
        %4041 = vmatpush.bf16.msra.mxu0 %v3858
        %4042 = vmatpush.bf16.msra.mxu0 %v3854
        %4043 = vmatpush.bf16.msra.mxu0 %v3850
        %4044 = vmatpush.bf16.msra.mxu0 %v3846
        %4045 = vmatpush.bf16.msra.mxu0 %v3842
        %4046 = vmatpush.bf16.msra.mxu0 %v3838
        %4047 = vmatpush.bf16.msra.mxu0 %v3834
        %4048 = vmatpush.bf16.msra.mxu0 %v3830
        %4049 = vmatmul.bf16.gmra.mxu0 %v309
        %v4050 = vpop.f32.mrf.mxu0
        %v4051 = vadd.f32 %v4038, %v4050
        %v4052 = vpop.f32.mrf.mxu0
        %4053 = vdwg.mxu0
        %4054 = vmatpush.bf16.msra.mxu0 %v3890
        %4055 = vmatpush.bf16.msra.mxu0 %v3886
        %4056 = vmatpush.bf16.msra.mxu0 %v3882
        %4057 = vmatpush.bf16.msra.mxu0 %v3878
        %4058 = vmatpush.bf16.msra.mxu0 %v3874
        %4059 = vmatpush.bf16.msra.mxu0 %v3870
        %4060 = vmatpush.bf16.msra.mxu0 %v3866
        %4061 = vmatpush.bf16.msra.mxu0 %v3862
        %4062 = vmatmul.bf16.gmra.mxu0 %v310
        %v4063 = vpop.f32.mrf.mxu0
        %v4064 = vadd.f32 %v4051, %v4063
        %v4065 = vpop.f32.mrf.mxu0
        %4066 = vdwg.mxu0
        %4067 = vmatpush.bf16.msra.mxu0 %v3827
        %4068 = vmatpush.bf16.msra.mxu0 %v3823
        %4069 = vmatpush.bf16.msra.mxu0 %v3819
        %4070 = vmatpush.bf16.msra.mxu0 %v3815
        %4071 = vmatpush.bf16.msra.mxu0 %v3811
        %4072 = vmatpush.bf16.msra.mxu0 %v3807
        %4073 = vmatpush.bf16.msra.mxu0 %v3803
        %4074 = vmatpush.bf16.msra.mxu0 %v3799
        %4075 = vmatmul.bf16.gmra.mxu0 %v308
        %v4076 = vpop.f32.mrf.mxu0
        %v4077 = vadd.f32 %v3503, %v4076
        %v4078 = vpop.f32.mrf.mxu0
        %4079 = vdwg.mxu0
        %4080 = vmatpush.bf16.msra.mxu0 %v3859
        %4081 = vmatpush.bf16.msra.mxu0 %v3855
        %4082 = vmatpush.bf16.msra.mxu0 %v3851
        %4083 = vmatpush.bf16.msra.mxu0 %v3847
        %4084 = vmatpush.bf16.msra.mxu0 %v3843
        %4085 = vmatpush.bf16.msra.mxu0 %v3839
        %4086 = vmatpush.bf16.msra.mxu0 %v3835
        %4087 = vmatpush.bf16.msra.mxu0 %v3831
        %4088 = vmatmul.bf16.gmra.mxu0 %v309
        %v4089 = vpop.f32.mrf.mxu0
        %v4090 = vadd.f32 %v4077, %v4089
        %v4091 = vpop.f32.mrf.mxu0
        %4092 = vdwg.mxu0
        %4093 = vmatpush.bf16.msra.mxu0 %v3891
        %4094 = vmatpush.bf16.msra.mxu0 %v3887
        %4095 = vmatpush.bf16.msra.mxu0 %v3883
        %4096 = vmatpush.bf16.msra.mxu0 %v3879
        %4097 = vmatpush.bf16.msra.mxu0 %v3875
        %4098 = vmatpush.bf16.msra.mxu0 %v3871
        %4099 = vmatpush.bf16.msra.mxu0 %v3867
        %4100 = vmatpush.bf16.msra.mxu0 %v3863
        %4101 = vmatmul.bf16.gmra.mxu0 %v310
        %v4102 = vpop.f32.mrf.mxu0
        %v4103 = vadd.f32 %v4090, %v4102
        %v4104 = vpop.f32.mrf.mxu0
        %4105 = vdwg.mxu0
        %4106 = vmatpush.bf16.msra.mxu0 %v3828
        %4107 = vmatpush.bf16.msra.mxu0 %v3824
        %4108 = vmatpush.bf16.msra.mxu0 %v3820
        %4109 = vmatpush.bf16.msra.mxu0 %v3816
        %4110 = vmatpush.bf16.msra.mxu0 %v3812
        %4111 = vmatpush.bf16.msra.mxu0 %v3808
        %4112 = vmatpush.bf16.msra.mxu0 %v3804
        %4113 = vmatpush.bf16.msra.mxu0 %v3800
        %4114 = vmatmul.bf16.gmra.mxu0 %v308
        %v4115 = vpop.f32.mrf.mxu0
        %v4116 = vadd.f32 %v3504, %v4115
        %v4117 = vpop.f32.mrf.mxu0
        %4118 = vdwg.mxu0
        %4119 = vmatpush.bf16.msra.mxu0 %v3860
        %4120 = vmatpush.bf16.msra.mxu0 %v3856
        %4121 = vmatpush.bf16.msra.mxu0 %v3852
        %4122 = vmatpush.bf16.msra.mxu0 %v3848
        %4123 = vmatpush.bf16.msra.mxu0 %v3844
        %4124 = vmatpush.bf16.msra.mxu0 %v3840
        %4125 = vmatpush.bf16.msra.mxu0 %v3836
        %4126 = vmatpush.bf16.msra.mxu0 %v3832
        %4127 = vmatmul.bf16.gmra.mxu0 %v309
        %v4128 = vpop.f32.mrf.mxu0
        %v4129 = vadd.f32 %v4116, %v4128
        %v4130 = vpop.f32.mrf.mxu0
        %4131 = vdwg.mxu0
        %4132 = vmatpush.bf16.msra.mxu0 %v3892
        %4133 = vmatpush.bf16.msra.mxu0 %v3888
        %4134 = vmatpush.bf16.msra.mxu0 %v3884
        %4135 = vmatpush.bf16.msra.mxu0 %v3880
        %4136 = vmatpush.bf16.msra.mxu0 %v3876
        %4137 = vmatpush.bf16.msra.mxu0 %v3872
        %4138 = vmatpush.bf16.msra.mxu0 %v3868
        %4139 = vmatpush.bf16.msra.mxu0 %v3864
        %4140 = vmatmul.bf16.gmra.mxu0 %v310
        %v4141 = vpop.f32.mrf.mxu0
        %v4142 = vadd.f32 %v4129, %v4141
        %v4143 = vpop.f32.mrf.mxu0
        %4144 = vdwg.mxu0
        %v4145 = vmax.f32 %v4025, 0.0
        %v4146 = vmax.f32 %v4064, 0.0
        %v4147 = vmax.f32 %v4103, 0.0
        %v4148 = vmax.f32 %v4142, 0.0
        %v4149 = vpack.c.bf16 %v4145, %v4145
        %v4150 = vpack.c.bf16 %v4146, %v4146
        %v4151 = vpack.c.bf16 %v4147, %v4147
        %v4152 = vpack.c.bf16 %v4148, %v4148
        %v4153 = vld [vmem:[#allocation8 + $0x600] sm:$0xff]
        %v4154 = vld [vmem:[#allocation8 + $0x608] sm:$0xf]
        %v4155 = vld [vmem:[#allocation8 + $0x60c] sm:$0xff]
        %v4156 = vld [vmem:[#allocation8 + $0x614] sm:$0xf]
        %v4157 = vld [vmem:[#allocation8 + $0x618] sm:$0xff]
        %v4158 = vld [vmem:[#allocation8 + $0x620] sm:$0xf]
        %v4159 = vld [vmem:[#allocation8 + $0x624] sm:$0xff]
        %v4160 = vld [vmem:[#allocation8 + $0x62c] sm:$0xf]
        %v4161 = vld [vmem:[#allocation8 + $0x630] sm:$0xff]
        %v4162 = vld [vmem:[#allocation8 + $0x638] sm:$0xf]
        %v4163 = vld [vmem:[#allocation8 + $0x63c] sm:$0xff]
        %v4164 = vld [vmem:[#allocation8 + $0x644] sm:$0xf]
        %v4165 = vld [vmem:[#allocation8 + $0x648] sm:$0xff]
        %v4166 = vld [vmem:[#allocation8 + $0x650] sm:$0xf]
        %v4167 = vld [vmem:[#allocation8 + $0x654] sm:$0xff]
        %v4168 = vld [vmem:[#allocation8 + $0x65c] sm:$0xf]
        %v4169 = vld [vmem:[#allocation8 + $0x660] sm:$0xff]
        %v4170 = vld [vmem:[#allocation8 + $0x668] sm:$0xf]
        %v4171 = vld [vmem:[#allocation8 + $0x66c] sm:$0xff]
        %v4172 = vld [vmem:[#allocation8 + $0x674] sm:$0xf]
        %v4173 = vld [vmem:[#allocation8 + $0x678] sm:$0xff]
        %v4174 = vld [vmem:[#allocation8 + $0x680] sm:$0xf]
        %v4175 = vld [vmem:[#allocation8 + $0x684] sm:$0xff]
        %v4176 = vld [vmem:[#allocation8 + $0x68c] sm:$0xf]
        %v4177 = vld [vmem:[#allocation8 + $0x690] sm:$0xff]
        %v4178 = vld [vmem:[#allocation8 + $0x698] sm:$0xf]
        %v4179 = vld [vmem:[#allocation8 + $0x69c] sm:$0xff]
        %v4180 = vld [vmem:[#allocation8 + $0x6a4] sm:$0xf]
        %v4181 = vld [vmem:[#allocation8 + $0x6a8] sm:$0xff]
        %v4182 = vld [vmem:[#allocation8 + $0x6b0] sm:$0xf]
        %v4183 = vld [vmem:[#allocation8 + $0x6b4] sm:$0xff]
        %v4184 = vld [vmem:[#allocation8 + $0x6bc] sm:$0xf]
        %v4185 = vld [vmem:[#allocation8 + $0x6c0] sm:$0xff]
        %v4186 = vld [vmem:[#allocation8 + $0x6c8] sm:$0xf]
        %v4187 = vld [vmem:[#allocation8 + $0x6cc] sm:$0xff]
        %v4188 = vld [vmem:[#allocation8 + $0x6d4] sm:$0xf]
        %v4189 = vld [vmem:[#allocation8 + $0x6d8] sm:$0xff]
        %v4190 = vld [vmem:[#allocation8 + $0x6e0] sm:$0xf]
        %v4191 = vld [vmem:[#allocation8 + $0x6e4] sm:$0xff]
        %v4192 = vld [vmem:[#allocation8 + $0x6ec] sm:$0xf]
        %v4193 = vld [vmem:[#allocation8 + $0x6f0] sm:$0xff]
        %v4194 = vld [vmem:[#allocation8 + $0x6f8] sm:$0xf]
        %v4195 = vld [vmem:[#allocation8 + $0x6fc] sm:$0xff]
        %v4196 = vld [vmem:[#allocation8 + $0x704] sm:$0xf]
        %v4197 = vld [vmem:[#allocation8 + $0x708] sm:$0xff]
        %v4198 = vld [vmem:[#allocation8 + $0x710] sm:$0xf]
        %v4199 = vld [vmem:[#allocation8 + $0x714] sm:$0xff]
        %v4200 = vld [vmem:[#allocation8 + $0x71c] sm:$0xf]
        %v4201 = vld [vmem:[#allocation8 + $0x720] sm:$0xff]
        %v4202 = vld [vmem:[#allocation8 + $0x728] sm:$0xf]
        %v4203 = vld [vmem:[#allocation8 + $0x72c] sm:$0xff]
        %v4204 = vld [vmem:[#allocation8 + $0x734] sm:$0xf]
        %v4205 = vld [vmem:[#allocation8 + $0x738] sm:$0xff]
        %v4206 = vld [vmem:[#allocation8 + $0x740] sm:$0xf]
        %v4207 = vld [vmem:[#allocation8 + $0x744] sm:$0xff]
        %v4208 = vld [vmem:[#allocation8 + $0x74c] sm:$0xf]
        %v4209 = vld [vmem:[#allocation8 + $0x750] sm:$0xff]
        %v4210 = vld [vmem:[#allocation8 + $0x758] sm:$0xf]
        %v4211 = vld [vmem:[#allocation8 + $0x75c] sm:$0xff]
        %v4212 = vld [vmem:[#allocation8 + $0x764] sm:$0xf]
        %v4213 = vld [vmem:[#allocation8 + $0x768] sm:$0xff]
        %v4214 = vld [vmem:[#allocation8 + $0x770] sm:$0xf]
        %v4215 = vld [vmem:[#allocation8 + $0x774] sm:$0xff]
        %v4216 = vld [vmem:[#allocation8 + $0x77c] sm:$0xf]
        %v4217 = vld [vmem:[#allocation8 + $0x780] sm:$0xff]
        %v4218 = vld [vmem:[#allocation8 + $0x788] sm:$0xf]
        %v4219 = vld [vmem:[#allocation8 + $0x78c] sm:$0xff]
        %v4220 = vld [vmem:[#allocation8 + $0x794] sm:$0xf]
        %v4221 = vld [vmem:[#allocation8 + $0x798] sm:$0xff]
        %v4222 = vld [vmem:[#allocation8 + $0x7a0] sm:$0xf]
        %v4223 = vld [vmem:[#allocation8 + $0x7a4] sm:$0xff]
        %v4224 = vld [vmem:[#allocation8 + $0x7ac] sm:$0xf]
        %v4225 = vld [vmem:[#allocation8 + $0x7b0] sm:$0xff]
        %v4226 = vld [vmem:[#allocation8 + $0x7b8] sm:$0xf]
        %v4227 = vld [vmem:[#allocation8 + $0x7bc] sm:$0xff]
        %v4228 = vld [vmem:[#allocation8 + $0x7c4] sm:$0xf]
        %v4229 = vld [vmem:[#allocation8 + $0x7c8] sm:$0xff]
        %v4230 = vld [vmem:[#allocation8 + $0x7d0] sm:$0xf]
        %v4231 = vld [vmem:[#allocation8 + $0x7d4] sm:$0xff]
        %v4232 = vld [vmem:[#allocation8 + $0x7dc] sm:$0xf]
        %v4233 = vld [vmem:[#allocation8 + $0x7e0] sm:$0xff]
        %v4234 = vld [vmem:[#allocation8 + $0x7e8] sm:$0xf]
        %v4235 = vld [vmem:[#allocation8 + $0x7ec] sm:$0xff]
        %v4236 = vld [vmem:[#allocation8 + $0x7f4] sm:$0xf]
        %v4237 = vld [vmem:[#allocation8 + $0x7f8] sm:$0xff]
        %v4238 = vld [vmem:[#allocation8 + $0x800] sm:$0xf]
        %v4239 = vld [vmem:[#allocation8 + $0x804] sm:$0xff]
        %v4240 = vld [vmem:[#allocation8 + $0x80c] sm:$0xf]
        %v4241 = vld [vmem:[#allocation8 + $0x810] sm:$0xff]
        %v4242 = vld [vmem:[#allocation8 + $0x818] sm:$0xf]
        %v4243 = vld [vmem:[#allocation8 + $0x81c] sm:$0xff]
        %v4244 = vld [vmem:[#allocation8 + $0x824] sm:$0xf]
        %v4245 = vld [vmem:[#allocation8 + $0x828] sm:$0xff]
        %v4246 = vld [vmem:[#allocation8 + $0x830] sm:$0xf]
        %v4247 = vld [vmem:[#allocation8 + $0x834] sm:$0xff]
        %v4248 = vld [vmem:[#allocation8 + $0x83c] sm:$0xf]
        %v4249 = vld [vmem:[#allocation8 + $0x840] sm:$0xff]
        %v4250 = vld [vmem:[#allocation8 + $0x848] sm:$0xf]
        %v4251 = vld [vmem:[#allocation8 + $0x84c] sm:$0xff]
        %v4252 = vld [vmem:[#allocation8 + $0x854] sm:$0xf]
        %v4253 = vld [vmem:[#allocation8 + $0x858] sm:$0xff]
        %v4254 = vld [vmem:[#allocation8 + $0x860] sm:$0xf]
        %v4255 = vld [vmem:[#allocation8 + $0x864] sm:$0xff]
        %v4256 = vld [vmem:[#allocation8 + $0x86c] sm:$0xf]
        %v4257 = vld [vmem:[#allocation8 + $0x870] sm:$0xff]
        %v4258 = vld [vmem:[#allocation8 + $0x878] sm:$0xf]
        %v4259 = vld [vmem:[#allocation8 + $0x87c] sm:$0xff]
        %v4260 = vld [vmem:[#allocation8 + $0x884] sm:$0xf]
        %v4261 = vld [vmem:[#allocation8 + $0x888] sm:$0xff]
        %v4262 = vld [vmem:[#allocation8 + $0x890] sm:$0xf]
        %v4263 = vld [vmem:[#allocation8 + $0x894] sm:$0xff]
        %v4264 = vld [vmem:[#allocation8 + $0x89c] sm:$0xf]
        %v4265 = vld [vmem:[#allocation8 + $0x8a0] sm:$0xff]
        %v4266 = vld [vmem:[#allocation8 + $0x8a8] sm:$0xf]
        %v4267 = vld [vmem:[#allocation8 + $0x8ac] sm:$0xff]
        %v4268 = vld [vmem:[#allocation8 + $0x8b4] sm:$0xf]
        %v4269 = vld [vmem:[#allocation8 + $0x8b8] sm:$0xff]
        %v4270 = vld [vmem:[#allocation8 + $0x8c0] sm:$0xf]
        %v4271 = vld [vmem:[#allocation8 + $0x8c4] sm:$0xff]
        %v4272 = vld [vmem:[#allocation8 + $0x8cc] sm:$0xf]
        %v4273 = vld [vmem:[#allocation8 + $0x8d0] sm:$0xff]
        %v4274 = vld [vmem:[#allocation8 + $0x8d8] sm:$0xf]
        %v4275 = vld [vmem:[#allocation8 + $0x8dc] sm:$0xff]
        %v4276 = vld [vmem:[#allocation8 + $0x8e4] sm:$0xf]
        %v4277 = vld [vmem:[#allocation8 + $0x8e8] sm:$0xff]
        %v4278 = vld [vmem:[#allocation8 + $0x8f0] sm:$0xf]
        %v4279 = vld [vmem:[#allocation8 + $0x8f4] sm:$0xff]
        %v4280 = vld [vmem:[#allocation8 + $0x8fc] sm:$0xf]
        %v4409 = vunpack.c.l.b16 %v4153
        %v4410 = vunpack.c.h.b16 %v4153
        %v4411 = vunpack.c.l.b16 %v4154
        %v4412 = vunpack.c.l.b16 %v4155
        %v4413 = vunpack.c.h.b16 %v4155
        %v4414 = vunpack.c.l.b16 %v4156
        %v4415 = vunpack.c.l.b16 %v4157
        %v4416 = vunpack.c.h.b16 %v4157
        %v4417 = vunpack.c.l.b16 %v4158
        %v4418 = vunpack.c.l.b16 %v4159
        %v4419 = vunpack.c.h.b16 %v4159
        %v4420 = vunpack.c.l.b16 %v4160
        %v4421 = vunpack.c.l.b16 %v4161
        %v4422 = vunpack.c.h.b16 %v4161
        %v4423 = vunpack.c.l.b16 %v4162
        %v4424 = vunpack.c.l.b16 %v4163
        %v4425 = vunpack.c.h.b16 %v4163
        %v4426 = vunpack.c.l.b16 %v4164
        %v4427 = vunpack.c.l.b16 %v4165
        %v4428 = vunpack.c.h.b16 %v4165
        %v4429 = vunpack.c.l.b16 %v4166
        %v4430 = vunpack.c.l.b16 %v4167
        %v4431 = vunpack.c.h.b16 %v4167
        %v4432 = vunpack.c.l.b16 %v4168
        %v4433 = vunpack.c.l.b16 %v4169
        %v4434 = vunpack.c.h.b16 %v4169
        %v4435 = vunpack.c.l.b16 %v4170
        %v4436 = vunpack.c.l.b16 %v4171
        %v4437 = vunpack.c.h.b16 %v4171
        %v4438 = vunpack.c.l.b16 %v4172
        %v4439 = vunpack.c.l.b16 %v4173
        %v4440 = vunpack.c.h.b16 %v4173
        %v4441 = vunpack.c.l.b16 %v4174
        %v4442 = vunpack.c.l.b16 %v4175
        %v4443 = vunpack.c.h.b16 %v4175
        %v4444 = vunpack.c.l.b16 %v4176
        %v4445 = vunpack.c.l.b16 %v4177
        %v4446 = vunpack.c.h.b16 %v4177
        %v4447 = vunpack.c.l.b16 %v4178
        %v4448 = vunpack.c.l.b16 %v4179
        %v4449 = vunpack.c.h.b16 %v4179
        %v4450 = vunpack.c.l.b16 %v4180
        %v4451 = vunpack.c.l.b16 %v4181
        %v4452 = vunpack.c.h.b16 %v4181
        %v4453 = vunpack.c.l.b16 %v4182
        %v4454 = vunpack.c.l.b16 %v4183
        %v4455 = vunpack.c.h.b16 %v4183
        %v4456 = vunpack.c.l.b16 %v4184
        %v4457 = vunpack.c.l.b16 %v4185
        %v4458 = vunpack.c.h.b16 %v4185
        %v4459 = vunpack.c.l.b16 %v4186
        %v4460 = vunpack.c.l.b16 %v4187
        %v4461 = vunpack.c.h.b16 %v4187
        %v4462 = vunpack.c.l.b16 %v4188
        %v4463 = vunpack.c.l.b16 %v4189
        %v4464 = vunpack.c.h.b16 %v4189
        %v4465 = vunpack.c.l.b16 %v4190
        %v4466 = vunpack.c.l.b16 %v4191
        %v4467 = vunpack.c.h.b16 %v4191
        %v4468 = vunpack.c.l.b16 %v4192
        %v4469 = vunpack.c.l.b16 %v4193
        %v4470 = vunpack.c.h.b16 %v4193
        %v4471 = vunpack.c.l.b16 %v4194
        %v4472 = vunpack.c.l.b16 %v4195
        %v4473 = vunpack.c.h.b16 %v4195
        %v4474 = vunpack.c.l.b16 %v4196
        %v4475 = vunpack.c.l.b16 %v4197
        %v4476 = vunpack.c.h.b16 %v4197
        %v4477 = vunpack.c.l.b16 %v4198
        %v4478 = vunpack.c.l.b16 %v4199
        %v4479 = vunpack.c.h.b16 %v4199
        %v4480 = vunpack.c.l.b16 %v4200
        %v4481 = vunpack.c.l.b16 %v4201
        %v4482 = vunpack.c.h.b16 %v4201
        %v4483 = vunpack.c.l.b16 %v4202
        %v4484 = vunpack.c.l.b16 %v4203
        %v4485 = vunpack.c.h.b16 %v4203
        %v4486 = vunpack.c.l.b16 %v4204
        %v4487 = vunpack.c.l.b16 %v4205
        %v4488 = vunpack.c.h.b16 %v4205
        %v4489 = vunpack.c.l.b16 %v4206
        %v4490 = vunpack.c.l.b16 %v4207
        %v4491 = vunpack.c.h.b16 %v4207
        %v4492 = vunpack.c.l.b16 %v4208
        %v4493 = vunpack.c.l.b16 %v4209
        %v4494 = vunpack.c.h.b16 %v4209
        %v4495 = vunpack.c.l.b16 %v4210
        %v4496 = vunpack.c.l.b16 %v4211
        %v4497 = vunpack.c.h.b16 %v4211
        %v4498 = vunpack.c.l.b16 %v4212
        %v4499 = vunpack.c.l.b16 %v4213
        %v4500 = vunpack.c.h.b16 %v4213
        %v4501 = vunpack.c.l.b16 %v4214
        %v4502 = vunpack.c.l.b16 %v4215
        %v4503 = vunpack.c.h.b16 %v4215
        %v4504 = vunpack.c.l.b16 %v4216
        %v4505 = vunpack.c.l.b16 %v4217
        %v4506 = vunpack.c.h.b16 %v4217
        %v4507 = vunpack.c.l.b16 %v4218
        %v4508 = vunpack.c.l.b16 %v4219
        %v4509 = vunpack.c.h.b16 %v4219
        %v4510 = vunpack.c.l.b16 %v4220
        %v4511 = vunpack.c.l.b16 %v4221
        %v4512 = vunpack.c.h.b16 %v4221
        %v4513 = vunpack.c.l.b16 %v4222
        %v4514 = vunpack.c.l.b16 %v4223
        %v4515 = vunpack.c.h.b16 %v4223
        %v4516 = vunpack.c.l.b16 %v4224
        %v4517 = vunpack.c.l.b16 %v4225
        %v4518 = vunpack.c.h.b16 %v4225
        %v4519 = vunpack.c.l.b16 %v4226
        %v4520 = vunpack.c.l.b16 %v4227
        %v4521 = vunpack.c.h.b16 %v4227
        %v4522 = vunpack.c.l.b16 %v4228
        %v4523 = vunpack.c.l.b16 %v4229
        %v4524 = vunpack.c.h.b16 %v4229
        %v4525 = vunpack.c.l.b16 %v4230
        %v4526 = vunpack.c.l.b16 %v4231
        %v4527 = vunpack.c.h.b16 %v4231
        %v4528 = vunpack.c.l.b16 %v4232
        %v4529 = vunpack.c.l.b16 %v4233
        %v4530 = vunpack.c.h.b16 %v4233
        %v4531 = vunpack.c.l.b16 %v4234
        %v4532 = vunpack.c.l.b16 %v4235
        %v4533 = vunpack.c.h.b16 %v4235
        %v4534 = vunpack.c.l.b16 %v4236
        %v4535 = vunpack.c.l.b16 %v4237
        %v4536 = vunpack.c.h.b16 %v4237
        %v4537 = vunpack.c.l.b16 %v4238
        %v4538 = vunpack.c.l.b16 %v4239
        %v4539 = vunpack.c.h.b16 %v4239
        %v4540 = vunpack.c.l.b16 %v4240
        %v4541 = vunpack.c.l.b16 %v4241
        %v4542 = vunpack.c.h.b16 %v4241
        %v4543 = vunpack.c.l.b16 %v4242
        %v4544 = vunpack.c.l.b16 %v4243
        %v4545 = vunpack.c.h.b16 %v4243
        %v4546 = vunpack.c.l.b16 %v4244
        %v4547 = vunpack.c.l.b16 %v4245
        %v4548 = vunpack.c.h.b16 %v4245
        %v4549 = vunpack.c.l.b16 %v4246
        %v4550 = vunpack.c.l.b16 %v4247
        %v4551 = vunpack.c.h.b16 %v4247
        %v4552 = vunpack.c.l.b16 %v4248
        %v4553 = vunpack.c.l.b16 %v4249
        %v4554 = vunpack.c.h.b16 %v4249
        %v4555 = vunpack.c.l.b16 %v4250
        %v4556 = vunpack.c.l.b16 %v4251
        %v4557 = vunpack.c.h.b16 %v4251
        %v4558 = vunpack.c.l.b16 %v4252
        %v4559 = vunpack.c.l.b16 %v4253
        %v4560 = vunpack.c.h.b16 %v4253
        %v4561 = vunpack.c.l.b16 %v4254
        %v4562 = vunpack.c.l.b16 %v4255
        %v4563 = vunpack.c.h.b16 %v4255
        %v4564 = vunpack.c.l.b16 %v4256
        %v4565 = vunpack.c.l.b16 %v4257
        %v4566 = vunpack.c.h.b16 %v4257
        %v4567 = vunpack.c.l.b16 %v4258
        %v4568 = vunpack.c.l.b16 %v4259
        %v4569 = vunpack.c.h.b16 %v4259
        %v4570 = vunpack.c.l.b16 %v4260
        %v4571 = vunpack.c.l.b16 %v4261
        %v4572 = vunpack.c.h.b16 %v4261
        %v4573 = vunpack.c.l.b16 %v4262
        %v4574 = vunpack.c.l.b16 %v4263
        %v4575 = vunpack.c.h.b16 %v4263
        %v4576 = vunpack.c.l.b16 %v4264
        %v4577 = vunpack.c.l.b16 %v4265
        %v4578 = vunpack.c.h.b16 %v4265
        %v4579 = vunpack.c.l.b16 %v4266
        %v4580 = vunpack.c.l.b16 %v4267
        %v4581 = vunpack.c.h.b16 %v4267
        %v4582 = vunpack.c.l.b16 %v4268
        %v4583 = vunpack.c.l.b16 %v4269
        %v4584 = vunpack.c.h.b16 %v4269
        %v4585 = vunpack.c.l.b16 %v4270
        %v4586 = vunpack.c.l.b16 %v4271
        %v4587 = vunpack.c.h.b16 %v4271
        %v4588 = vunpack.c.l.b16 %v4272
        %v4589 = vunpack.c.l.b16 %v4273
        %v4590 = vunpack.c.h.b16 %v4273
        %v4591 = vunpack.c.l.b16 %v4274
        %v4592 = vunpack.c.l.b16 %v4275
        %v4593 = vunpack.c.h.b16 %v4275
        %v4594 = vunpack.c.l.b16 %v4276
        %v4595 = vunpack.c.l.b16 %v4277
        %v4596 = vunpack.c.h.b16 %v4277
        %v4597 = vunpack.c.l.b16 %v4278
        %v4598 = vunpack.c.l.b16 %v4279
        %v4599 = vunpack.c.h.b16 %v4279
        %v4600 = vunpack.c.l.b16 %v4280
        %v4601 = vpack.c.b16 %v4412, %v4409
        %v4602 = vpack.c.b16 %v4413, %v4410
        %v4603 = vpack.c.b16 %v4414, %v4411
        %v4604 = vpack.c.b16 %v4418, %v4415
        %v4605 = vpack.c.b16 %v4419, %v4416
        %v4606 = vpack.c.b16 %v4420, %v4417
        %v4607 = vpack.c.b16 %v4424, %v4421
        %v4608 = vpack.c.b16 %v4425, %v4422
        %v4609 = vpack.c.b16 %v4426, %v4423
        %v4610 = vpack.c.b16 %v4430, %v4427
        %v4611 = vpack.c.b16 %v4431, %v4428
        %v4612 = vpack.c.b16 %v4432, %v4429
        %v4613 = vpack.c.b16 %v4436, %v4433
        %v4614 = vpack.c.b16 %v4437, %v4434
        %v4615 = vpack.c.b16 %v4438, %v4435
        %v4616 = vpack.c.b16 %v4442, %v4439
        %v4617 = vpack.c.b16 %v4443, %v4440
        %v4618 = vpack.c.b16 %v4444, %v4441
        %v4619 = vpack.c.b16 %v4448, %v4445
        %v4620 = vpack.c.b16 %v4449, %v4446
        %v4621 = vpack.c.b16 %v4450, %v4447
        %v4622 = vpack.c.b16 %v4454, %v4451
        %v4623 = vpack.c.b16 %v4455, %v4452
        %v4624 = vpack.c.b16 %v4456, %v4453
        %v4625 = vpack.c.b16 %v4460, %v4457
        %v4626 = vpack.c.b16 %v4461, %v4458
        %v4627 = vpack.c.b16 %v4462, %v4459
        %v4628 = vpack.c.b16 %v4466, %v4463
        %v4629 = vpack.c.b16 %v4467, %v4464
        %v4630 = vpack.c.b16 %v4468, %v4465
        %v4631 = vpack.c.b16 %v4472, %v4469
        %v4632 = vpack.c.b16 %v4473, %v4470
        %v4633 = vpack.c.b16 %v4474, %v4471
        %v4634 = vpack.c.b16 %v4478, %v4475
        %v4635 = vpack.c.b16 %v4479, %v4476
        %v4636 = vpack.c.b16 %v4480, %v4477
        %v4637 = vpack.c.b16 %v4484, %v4481
        %v4638 = vpack.c.b16 %v4485, %v4482
        %v4639 = vpack.c.b16 %v4486, %v4483
        %v4640 = vpack.c.b16 %v4490, %v4487
        %v4641 = vpack.c.b16 %v4491, %v4488
        %v4642 = vpack.c.b16 %v4492, %v4489
        %v4643 = vpack.c.b16 %v4496, %v4493
        %v4644 = vpack.c.b16 %v4497, %v4494
        %v4645 = vpack.c.b16 %v4498, %v4495
        %v4646 = vpack.c.b16 %v4502, %v4499
        %v4647 = vpack.c.b16 %v4503, %v4500
        %v4648 = vpack.c.b16 %v4504, %v4501
        %v4649 = vpack.c.b16 %v4508, %v4505
        %v4650 = vpack.c.b16 %v4509, %v4506
        %v4651 = vpack.c.b16 %v4510, %v4507
        %v4652 = vpack.c.b16 %v4514, %v4511
        %v4653 = vpack.c.b16 %v4515, %v4512
        %v4654 = vpack.c.b16 %v4516, %v4513
        %v4655 = vpack.c.b16 %v4520, %v4517
        %v4656 = vpack.c.b16 %v4521, %v4518
        %v4657 = vpack.c.b16 %v4522, %v4519
        %v4658 = vpack.c.b16 %v4526, %v4523
        %v4659 = vpack.c.b16 %v4527, %v4524
        %v4660 = vpack.c.b16 %v4528, %v4525
        %v4661 = vpack.c.b16 %v4532, %v4529
        %v4662 = vpack.c.b16 %v4533, %v4530
        %v4663 = vpack.c.b16 %v4534, %v4531
        %v4664 = vpack.c.b16 %v4538, %v4535
        %v4665 = vpack.c.b16 %v4539, %v4536
        %v4666 = vpack.c.b16 %v4540, %v4537
        %v4667 = vpack.c.b16 %v4544, %v4541
        %v4668 = vpack.c.b16 %v4545, %v4542
        %v4669 = vpack.c.b16 %v4546, %v4543
        %v4670 = vpack.c.b16 %v4550, %v4547
        %v4671 = vpack.c.b16 %v4551, %v4548
        %v4672 = vpack.c.b16 %v4552, %v4549
        %v4673 = vpack.c.b16 %v4556, %v4553
        %v4674 = vpack.c.b16 %v4557, %v4554
        %v4675 = vpack.c.b16 %v4558, %v4555
        %v4676 = vpack.c.b16 %v4562, %v4559
        %v4677 = vpack.c.b16 %v4563, %v4560
        %v4678 = vpack.c.b16 %v4564, %v4561
        %v4679 = vpack.c.b16 %v4568, %v4565
        %v4680 = vpack.c.b16 %v4569, %v4566
        %v4681 = vpack.c.b16 %v4570, %v4567
        %v4682 = vpack.c.b16 %v4574, %v4571
        %v4683 = vpack.c.b16 %v4575, %v4572
        %v4684 = vpack.c.b16 %v4576, %v4573
        %v4685 = vpack.c.b16 %v4580, %v4577
        %v4686 = vpack.c.b16 %v4581, %v4578
        %v4687 = vpack.c.b16 %v4582, %v4579
        %v4688 = vpack.c.b16 %v4586, %v4583
        %v4689 = vpack.c.b16 %v4587, %v4584
        %v4690 = vpack.c.b16 %v4588, %v4585
        %v4691 = vpack.c.b16 %v4592, %v4589
        %v4692 = vpack.c.b16 %v4593, %v4590
        %v4693 = vpack.c.b16 %v4594, %v4591
        %v4694 = vpack.c.b16 %v4598, %v4595
        %v4695 = vpack.c.b16 %v4599, %v4596
        %v4696 = vpack.c.b16 %v4600, %v4597
        %4793 = vmatpush.bf16.msra.mxu0 %v4622
        %4794 = vmatpush.bf16.msra.mxu0 %v4619
        %4795 = vmatpush.bf16.msra.mxu0 %v4616
        %4796 = vmatpush.bf16.msra.mxu0 %v4613
        %4797 = vmatpush.bf16.msra.mxu0 %v4610
        %4798 = vmatpush.bf16.msra.mxu0 %v4607
        %4799 = vmatpush.bf16.msra.mxu0 %v4604
        %4800 = vmatpush.bf16.msra.mxu0 %v4601
        %4801 = vmatmul.bf16.gmra.mxu0 %v4149
        %v4802 = vpop.f32.mrf.mxu0
        %v4803 = vadd.f32 0.0, %v4802
        %v4804 = vpop.f32.mrf.mxu0
        %4805 = vdwg.mxu0
        %4806 = vmatpush.bf16.msra.mxu0 %v4646
        %4807 = vmatpush.bf16.msra.mxu0 %v4643
        %4808 = vmatpush.bf16.msra.mxu0 %v4640
        %4809 = vmatpush.bf16.msra.mxu0 %v4637
        %4810 = vmatpush.bf16.msra.mxu0 %v4634
        %4811 = vmatpush.bf16.msra.mxu0 %v4631
        %4812 = vmatpush.bf16.msra.mxu0 %v4628
        %4813 = vmatpush.bf16.msra.mxu0 %v4625
        %4814 = vmatmul.bf16.gmra.mxu0 %v4150
        %v4815 = vpop.f32.mrf.mxu0
        %v4816 = vadd.f32 %v4803, %v4815
        %v4817 = vpop.f32.mrf.mxu0
        %4818 = vdwg.mxu0
        %4819 = vmatpush.bf16.msra.mxu0 %v4670
        %4820 = vmatpush.bf16.msra.mxu0 %v4667
        %4821 = vmatpush.bf16.msra.mxu0 %v4664
        %4822 = vmatpush.bf16.msra.mxu0 %v4661
        %4823 = vmatpush.bf16.msra.mxu0 %v4658
        %4824 = vmatpush.bf16.msra.mxu0 %v4655
        %4825 = vmatpush.bf16.msra.mxu0 %v4652
        %4826 = vmatpush.bf16.msra.mxu0 %v4649
        %4827 = vmatmul.bf16.gmra.mxu0 %v4151
        %v4828 = vpop.f32.mrf.mxu0
        %v4829 = vadd.f32 %v4816, %v4828
        %v4830 = vpop.f32.mrf.mxu0
        %4831 = vdwg.mxu0
        %4832 = vmatpush.bf16.msra.mxu0 %v4694
        %4833 = vmatpush.bf16.msra.mxu0 %v4691
        %4834 = vmatpush.bf16.msra.mxu0 %v4688
        %4835 = vmatpush.bf16.msra.mxu0 %v4685
        %4836 = vmatpush.bf16.msra.mxu0 %v4682
        %4837 = vmatpush.bf16.msra.mxu0 %v4679
        %4838 = vmatpush.bf16.msra.mxu0 %v4676
        %4839 = vmatpush.bf16.msra.mxu0 %v4673
        %4840 = vmatmul.bf16.gmra.mxu0 %v4152
        %v4841 = vpop.f32.mrf.mxu0
        %v4842 = vadd.f32 %v4829, %v4841
        %v4843 = vpop.f32.mrf.mxu0
        %4844 = vdwg.mxu0
        %4845 = vmatpush.bf16.msra.mxu0 %v4623
        %4846 = vmatpush.bf16.msra.mxu0 %v4620
        %4847 = vmatpush.bf16.msra.mxu0 %v4617
        %4848 = vmatpush.bf16.msra.mxu0 %v4614
        %4849 = vmatpush.bf16.msra.mxu0 %v4611
        %4850 = vmatpush.bf16.msra.mxu0 %v4608
        %4851 = vmatpush.bf16.msra.mxu0 %v4605
        %4852 = vmatpush.bf16.msra.mxu0 %v4602
        %4853 = vmatmul.bf16.gmra.mxu0 %v4149
        %v4854 = vpop.f32.mrf.mxu0
        %v4855 = vadd.f32 0.0, %v4854
        %v4856 = vpop.f32.mrf.mxu0
        %4857 = vdwg.mxu0
        %4858 = vmatpush.bf16.msra.mxu0 %v4647
        %4859 = vmatpush.bf16.msra.mxu0 %v4644
        %4860 = vmatpush.bf16.msra.mxu0 %v4641
        %4861 = vmatpush.bf16.msra.mxu0 %v4638
        %4862 = vmatpush.bf16.msra.mxu0 %v4635
        %4863 = vmatpush.bf16.msra.mxu0 %v4632
        %4864 = vmatpush.bf16.msra.mxu0 %v4629
        %4865 = vmatpush.bf16.msra.mxu0 %v4626
        %4866 = vmatmul.bf16.gmra.mxu0 %v4150
        %v4867 = vpop.f32.mrf.mxu0
        %v4868 = vadd.f32 %v4855, %v4867
        %v4869 = vpop.f32.mrf.mxu0
        %4870 = vdwg.mxu0
        %4871 = vmatpush.bf16.msra.mxu0 %v4671
        %4872 = vmatpush.bf16.msra.mxu0 %v4668
        %4873 = vmatpush.bf16.msra.mxu0 %v4665
        %4874 = vmatpush.bf16.msra.mxu0 %v4662
        %4875 = vmatpush.bf16.msra.mxu0 %v4659
        %4876 = vmatpush.bf16.msra.mxu0 %v4656
        %4877 = vmatpush.bf16.msra.mxu0 %v4653
        %4878 = vmatpush.bf16.msra.mxu0 %v4650
        %4879 = vmatmul.bf16.gmra.mxu0 %v4151
        %v4880 = vpop.f32.mrf.mxu0
        %v4881 = vadd.f32 %v4868, %v4880
        %v4882 = vpop.f32.mrf.mxu0
        %4883 = vdwg.mxu0
        %4884 = vmatpush.bf16.msra.mxu0 %v4695
        %4885 = vmatpush.bf16.msra.mxu0 %v4692
        %4886 = vmatpush.bf16.msra.mxu0 %v4689
        %4887 = vmatpush.bf16.msra.mxu0 %v4686
        %4888 = vmatpush.bf16.msra.mxu0 %v4683
        %4889 = vmatpush.bf16.msra.mxu0 %v4680
        %4890 = vmatpush.bf16.msra.mxu0 %v4677
        %4891 = vmatpush.bf16.msra.mxu0 %v4674
        %4892 = vmatmul.bf16.gmra.mxu0 %v4152
        %v4893 = vpop.f32.mrf.mxu0
        %v4894 = vadd.f32 %v4881, %v4893
        %v4895 = vpop.f32.mrf.mxu0
        %4896 = vdwg.mxu0
        %4897 = vmatpush.bf16.msra.mxu0 %v4624
        %4898 = vmatpush.bf16.msra.mxu0 %v4621
        %4899 = vmatpush.bf16.msra.mxu0 %v4618
        %4900 = vmatpush.bf16.msra.mxu0 %v4615
        %4901 = vmatpush.bf16.msra.mxu0 %v4612
        %4902 = vmatpush.bf16.msra.mxu0 %v4609
        %4903 = vmatpush.bf16.msra.mxu0 %v4606
        %4904 = vmatpush.bf16.msra.mxu0 %v4603
        %4905 = vmatmul.bf16.gmra.mxu0 %v4149
        %v4906 = vpop.f32.mrf.mxu0
        %v4907 = vadd.f32 0.0, %v4906
        %v4908 = vpop.f32.mrf.mxu0
        %4909 = vdwg.mxu0
        %4910 = vmatpush.bf16.msra.mxu0 %v4648
        %4911 = vmatpush.bf16.msra.mxu0 %v4645
        %4912 = vmatpush.bf16.msra.mxu0 %v4642
        %4913 = vmatpush.bf16.msra.mxu0 %v4639
        %4914 = vmatpush.bf16.msra.mxu0 %v4636
        %4915 = vmatpush.bf16.msra.mxu0 %v4633
        %4916 = vmatpush.bf16.msra.mxu0 %v4630
        %4917 = vmatpush.bf16.msra.mxu0 %v4627
        %4918 = vmatmul.bf16.gmra.mxu0 %v4150
        %v4919 = vpop.f32.mrf.mxu0
        %v4920 = vadd.f32 %v4907, %v4919
        %v4921 = vpop.f32.mrf.mxu0
        %4922 = vdwg.mxu0
        %4923 = vmatpush.bf16.msra.mxu0 %v4672
        %4924 = vmatpush.bf16.msra.mxu0 %v4669
        %4925 = vmatpush.bf16.msra.mxu0 %v4666
        %4926 = vmatpush.bf16.msra.mxu0 %v4663
        %4927 = vmatpush.bf16.msra.mxu0 %v4660
        %4928 = vmatpush.bf16.msra.mxu0 %v4657
        %4929 = vmatpush.bf16.msra.mxu0 %v4654
        %4930 = vmatpush.bf16.msra.mxu0 %v4651
        %4931 = vmatmul.bf16.gmra.mxu0 %v4151
        %v4932 = vpop.f32.mrf.mxu0
        %v4933 = vadd.f32 %v4920, %v4932
        %v4934 = vpop.f32.mrf.mxu0
        %4935 = vdwg.mxu0
        %4936 = vmatpush.bf16.msra.mxu0 %v4696
        %4937 = vmatpush.bf16.msra.mxu0 %v4693
        %4938 = vmatpush.bf16.msra.mxu0 %v4690
        %4939 = vmatpush.bf16.msra.mxu0 %v4687
        %4940 = vmatpush.bf16.msra.mxu0 %v4684
        %4941 = vmatpush.bf16.msra.mxu0 %v4681
        %4942 = vmatpush.bf16.msra.mxu0 %v4678
        %4943 = vmatpush.bf16.msra.mxu0 %v4675
        %4944 = vmatmul.bf16.gmra.mxu0 %v4152
        %v4945 = vpop.f32.mrf.mxu0
        %v4946 = vadd.f32 %v4933, %v4945
        %v4947 = vpop.f32.mrf.mxu0
        %4948 = vdwg.mxu0
        %v4949 = vadd.f32 %v3296, %v4842
        %v4950 = vadd.f32 %v3348, %v4894
        %v4951 = vadd.f32 %v3400, %v4946
        %v4952 = vld [vmem:[#allocation10] sm:$0x7]
        %v4954 = vperm.slane %v4952, 0
        %v4955 = vperm.slane %v4952, 1
        %v4956 = vperm.slane %v4952, 2
        %v4960 = vadd.f32 %v4949, %v4954
        %v4961 = vadd.f32 %v4950, %v4955
        %v4962 = vadd.f32 %v4951, %v4956
        %4963 = vst [vmem:[%s304] sm:$0xff] %v4960
        %4964 = vst [vmem:[%s304 + $0x8] sm:$0xff] %v4961
        %4965 = vst [vmem:[%s304 + $0x10] sm:$0xff] %v4962
        %s4966 = sand.u32 %s142, 1
        %s4967 = scalar_lea.sflag [#allocation4], %s4966
        %s4968 = sand.u32 %s142, 1
        %s4969 = smul.addr %s4968, 24
        %s4970 = scalar_lea.vmem [#allocation11], %s4969
        // Predicated region
        $region61: #{tpu_custom_call.1} parent=39 // pred_check
          %p4971 = pneg %p152
        $region62: #{tpu_custom_call.1} parent=39 // pred_check_branch
          %4973 = sbr.rel (%p4971) target = $region64
        $region63: #{tpu_custom_call.1} parent=39 // pred_region
          %4975 = vsyncadd %s4967, 0
          %s4976 = smul.addr %s24, 3
          %s4977 = smul.addr %s4976, 8
          %s4978 = scalar_lea.hbm %s5, %s4977
          %s4980 = sshll.u32 %s4970, 4
          %s4981 = int_to_ptr.vmem [resolvable:$true] %s4980
          %s4982 = sshll.u32 %s4978, 4
          %s4983 = int_to_ptr.hbm [resolvable:$true] %s4982
          %4985 = dma.vmem_to_hbm [thread:$0]  %s4981, 384, %s4983, %s4967
        $region64: #{tpu_custom_call.1} parent=39 // pred_fallthru
          _
      $region40: #{tpu_custom_call.1} parent=5 // pred_fallthru
        _
      %p4986 = scmp.le.s32.totalorder 2, %s19
      // Predicated region
      $region65: #{tpu_custom_call.1} parent=5 // pred_check
        %p4987 = pneg %p4986
      $region66: #{tpu_custom_call.1} parent=5 // pred_check_branch
        %4989 = sbr.rel (%p4987) target = $region68
      $region67: #{tpu_custom_call.1} parent=5 // pred_region
        %s4990 = ssub.s32 %s19, 2
        // Predicated region
        $region69: #{tpu_custom_call.1} parent=67 // pred_check
          %p4991 = pneg %p158
        $region70: #{tpu_custom_call.1} parent=67 // pred_check_branch
          %4993 = sbr.rel (%p4991) target = $region72
        $region71: #{tpu_custom_call.1} parent=67 // pred_region
          %s4994 = sand.u32 %s143, 1
          %s4995 = scalar_lea.sflag [#allocation4], %s4994
          %s4996 = sand.u32 %s143, 1
          %s4997 = smul.addr %s4996, 24
          %s4998 = scalar_lea.vmem [#allocation11], %s4997
          %5000 = dma.done %s4995, 384
        $region72: #{tpu_custom_call.1} parent=67 // pred_fallthru
          _
      $region68: #{tpu_custom_call.1} parent=5 // pred_fallthru
        _
    $region6: #{tpu_custom_call.1} parent=1 // loop_footer
      %s23 = sadd.s32 1, %s19
    $region7: #{tpu_custom_call.1} parent=1 // loop_footer_branch
      %18 = sbr.rel target = $region3
    $region8: #{tpu_custom_call.1} parent=1 // loop_exit
      _
    %5001 = vsyncpa [#allocation3], 1
    %s5002 = scalar_lea.sflag [#allocation3], 1
    %5003 = vsyncpa %s5002, 1
    %5004 = vsyncpa [#allocation6], 1
    %5005 = vsyncpa [#allocation9], 1
    %5006 = vsyncpa [#allocation4], 1
    %s5007 = scalar_lea.sflag [#allocation4], 1
    %5008 = vsyncpa %s5007, 1

</llo_original>
